<compile_context>
chip_gen: v7x
topology: tpu7x:2x2x1
jax: 0.10.0
libtpu: 0.0.40
codegen_flags: <defaults>
</compile_context>

<pallas_src>
import jax
import jax.numpy as jnp
from jax.experimental import pallas as pl
from jax.experimental.pallas import tpu as pltpu


def _upconv_kernel(xa_ref, xb_ref, xc_ref, w_ref, b_ref, o_ref, col_ref):
    # xa/xb/xc: (1, TD, Hp, Wp, Cin) -- three consecutive TD-deep windows of the
    #           zero-padded SMALL input (same array, index_maps d, d+1, d+2).
    # w_ref:    (27*Cin, 8*Cout)  upsample-folded, weight-standardized weights
    # b_ref:    (1, 8*Cout)       bias tiled over the 8 parities
    # o_ref:    (1, TD, H*W, 8*Cout)
    # col_ref:  VMEM scratch (TD*H*W, 27*Cin) im2col buffer
    TD = xa_ref.shape[1]
    Hp, Wp, Cin = xa_ref.shape[2], xa_ref.shape[3], xa_ref.shape[4]
    H, W = Hp - 2, Wp - 2
    HW = H * W
    PCout = o_ref.shape[3]

    refs = (xa_ref, xb_ref, xc_ref)
    # padded-depth slabs local to this grid step (only TD+2 are actually used)
    slabs = [refs[j // TD][0, j % TD] for j in range(TD + 2)]   # each (Hp, Wp, Cin)

    # Build im2col: rows ordered (t, h, w); cols ordered (sd, sh, sw, ci).
    for t in range(TD):
        for sd in range(3):
            slab = slabs[t + sd]
            for sh in range(3):
                rows = slab[sh:sh + H]                            # (H, Wp, Cin)
                for sw in range(3):
                    patch = rows[:, sw:sw + W, :].reshape(HW, Cin)
                    c0 = ((sd * 3 + sh) * 3 + sw) * Cin
                    col_ref[t * HW:(t + 1) * HW, c0:c0 + Cin] = patch

    # Single MXU matmul per grid step: (TD*H*W, 27*Cin) @ (27*Cin, 8*Cout).
    acc = jnp.dot(col_ref[...], w_ref[...], preferred_element_type=jnp.float32)
    acc = acc + b_ref[...]
    for t in range(TD):
        o_ref[0, t] = acc[t * HW:(t + 1) * HW, :].astype(o_ref.dtype)


def upsample_forward(x_ncdhw, weight_oidhw, bias):
    """nn.Upsample(scale_factor=2, nearest) -> WeightStandardizedConv3d(k=3, padding=1)."""
    N, Cin, D, H, W = x_ncdhw.shape
    Cout = weight_oidhw.shape[0]
    eps = 1e-5 if x_ncdhw.dtype == jnp.float32 else 1e-3

    # --- weight standardization (tiny tensor, plain JAX; var with unbiased=False) ---
    mean = jnp.mean(weight_oidhw, axis=(1, 2, 3, 4), keepdims=True)
    var = jnp.var(weight_oidhw, axis=(1, 2, 3, 4), keepdims=True)
    w_std = (weight_oidhw - mean) * jax.lax.rsqrt(var + eps)          # (Cout, Cin, 3,3,3)

    # --- fold the nearest-x2 upsample into the weights (sub-pixel identity) ---
    # original tap k of output parity p reads zero-padded input slot s = (p + k + 1)//2
    s_idx = (jnp.arange(2)[:, None] + jnp.arange(3)[None, :] + 1) // 2          # (2, 3)
    sel = (s_idx[..., None] == jnp.arange(3)).astype(w_std.dtype)               # (2, 3, 3)
    # w_all[sd,sh,sw, ci, pd,ph,pw, co] = sum of original taps mapping to those slots
    w_all = jnp.einsum('oiabc,pax,qby,rcz->xyzipqro', w_std, sel, sel, sel)
    PCout = 8 * Cout
    w_all = w_all.reshape(27 * Cin, PCout).astype(x_ncdhw.dtype)
    bias8 = jnp.tile(bias, 8).reshape(1, PCout).astype(jnp.float32)

    # --- depth blocking: TD input slices (=> 2*TD output slices) per grid step ---
    TD = 4 if D % 4 == 0 else (2 if D % 2 == 0 else 1)

    # --- channels-last + zero halo on the SMALL (pre-upsample) input only ---
    x_cl = jnp.transpose(x_ncdhw, (0, 2, 3, 4, 1))                    # (N, D, H, W, Cin)
    # depth: 1 front halo + (2*TD-1) trailing zeros so the d+1 / d+2 window blocks stay in range
    xpad = jnp.pad(x_cl, ((0, 0), (1, 2 * TD - 1), (1, 1), (1, 1), (0, 0)))
    Hp, Wp = H + 2, W + 2

    cost = pl.CostEstimate(
        flops=2 * N * D * H * W * (27 * Cin) * PCout,
        transcendentals=0,
        bytes_accessed=(3 * xpad.size + w_all.size + N * D * H * W * PCout)
        * x_ncdhw.dtype.itemsize + bias8.size * 4,
    )

    y_flat = pl.pallas_call(
        _upconv_kernel,
        out_shape=jax.ShapeDtypeStruct((N, D, H * W, PCout), x_ncdhw.dtype),
        grid_spec=pltpu.PrefetchScalarGridSpec(
            num_scalar_prefetch=0,
            grid=(N, D // TD),
            in_specs=[
                pl.BlockSpec((1, TD, Hp, Wp, Cin), lambda n, d: (n, d, 0, 0, 0)),
                pl.BlockSpec((1, TD, Hp, Wp, Cin), lambda n, d: (n, d + 1, 0, 0, 0)),
                pl.BlockSpec((1, TD, Hp, Wp, Cin), lambda n, d: (n, d + 2, 0, 0, 0)),
                pl.BlockSpec((27 * Cin, PCout), lambda n, d: (0, 0)),
                pl.BlockSpec((1, PCout), lambda n, d: (0, 0)),
            ],
            out_specs=pl.BlockSpec((1, TD, H * W, PCout), lambda n, d: (n, d, 0, 0)),
            scratch_shapes=[pltpu.VMEM((TD * H * W, 27 * Cin), x_ncdhw.dtype)],
        ),
        compiler_params=pltpu.CompilerParams(
            dimension_semantics=("parallel", "parallel")),
        cost_estimate=cost,
    )(xpad, xpad, xpad, w_all, bias8)

    # --- un-interleave the 8 output parities -> NCDHW (one fused XLA transpose) ---
    y = y_flat.reshape(N, D, H, W, 2, 2, 2, Cout)        # n d h w pd ph pw co
    y = jnp.transpose(y, (0, 7, 1, 4, 2, 5, 3, 6))       # n co d pd h ph w pw
    return y.reshape(N, Cout, 2 * D, 2 * H, 2 * W)


if __name__ == "__main__":
    key = jax.random.PRNGKey(0)
    k1, k2, k3 = jax.random.split(key, 3)

    # small shapes: batch=2, in_channels=4, out_channels=8, spatial=8 (-> 16 after upsample)
    N, Cin, Cout = 2, 4, 8
    D = H = W = 8
    x = jax.random.normal(k1, (N, Cin, D, H, W), dtype=jnp.float32)
    weight = jax.random.normal(k2, (Cout, Cin, 3, 3, 3), dtype=jnp.float32) * 0.1
    bias = jax.random.normal(k3, (Cout,), dtype=jnp.float32) * 0.1

    y = jax.block_until_ready(jax.jit(upsample_forward)(x, weight, bias))

    # reference: nearest x2 upsample + weight-standardized conv3d via lax
    x_up = jnp.repeat(jnp.repeat(jnp.repeat(x, 2, 2), 2, 3), 2, 4)
    mean = jnp.mean(weight, axis=(1, 2, 3, 4), keepdims=True)
    var = jnp.var(weight, axis=(1, 2, 3, 4), keepdims=True)
    w_std = (weight - mean) * jax.lax.rsqrt(var + 1e-5)
    ref = jax.lax.conv_general_dilated(
        x_up, w_std, window_strides=(1, 1, 1),
        padding=((1, 1), (1, 1), (1, 1)),
        dimension_numbers=("NCDHW", "OIDHW", "NCDHW"),
    ) + bias.reshape(1, -1, 1, 1, 1)

    assert y.shape == (N, Cout, 2 * D, 2 * H, 2 * W)
    err = float(jnp.max(jnp.abs(y - ref)))
    assert jnp.allclose(y, ref, atol=5e-4, rtol=5e-4), err
    print("KERNEL_OK")
</pallas_src>

<mosaic_0001>
module attributes {stable_mosaic.version = 11 : i64} {
  func.func @_upconv_kernel(%arg0: i32, %arg1: i32, %arg2: memref<1x4x10x10x4xf32, #tpu.memory_space<vmem>>, %arg3: memref<1x4x10x10x4xf32, #tpu.memory_space<vmem>>, %arg4: memref<1x4x10x10x4xf32, #tpu.memory_space<vmem>>, %arg5: memref<108x64xf32, #tpu.memory_space<vmem>>, %arg6: memref<1x64xf32, #tpu.memory_space<vmem>>, %arg7: memref<1x4x64x64xf32, #tpu.memory_space<vmem>>, %arg8: memref<256x108xf32, #tpu.memory_space<vmem>>) attributes {dimension_semantics = [#tpu.dimension_semantics<parallel>, #tpu.dimension_semantics<parallel>], iteration_bounds = array<i64: 2, 2>, scalar_prefetch = 0 : i64, scratch_operands = 1 : i64, tpu.core_type = #tpu.core_type<tc>, window_params = [{transform_indices = @transform_0, window_bounds = array<i64: 1, 4, 10, 10, 4>}, {transform_indices = @transform_1, window_bounds = array<i64: 1, 4, 10, 10, 4>}, {transform_indices = @transform_2, window_bounds = array<i64: 1, 4, 10, 10, 4>}, {pipeline_mode = #tpu.pipeline_mode<synchronous>, transform_indices = @transform_3, window_bounds = array<i64: 108, 64>}, {pipeline_mode = #tpu.pipeline_mode<synchronous>, transform_indices = @transform_4, window_bounds = array<i64: 1, 64>}, {transform_indices = @transform_5, window_bounds = array<i64: 1, 4, 64, 64>}]} {
    %c0 = arith.constant 0 : index
    %c0_0 = arith.constant 0 : index
    %c0_1 = arith.constant 0 : index
    %c0_2 = arith.constant 0 : index
    %c0_3 = arith.constant 0 : index
    %0 = vector.load %arg2[%c0, %c0_0, %c0_1, %c0_2, %c0_3] : memref<1x4x10x10x4xf32, #tpu.memory_space<vmem>>, vector<1x1x10x10x4xf32>
    %1 = vector.shape_cast %0 : vector<1x1x10x10x4xf32> to vector<10x10x4xf32>
    %c0_4 = arith.constant 0 : index
    %c1 = arith.constant 1 : index
    %c0_5 = arith.constant 0 : index
    %c0_6 = arith.constant 0 : index
    %c0_7 = arith.constant 0 : index
    %2 = vector.load %arg2[%c0_4, %c1, %c0_5, %c0_6, %c0_7] : memref<1x4x10x10x4xf32, #tpu.memory_space<vmem>>, vector<1x1x10x10x4xf32>
    %3 = vector.shape_cast %2 : vector<1x1x10x10x4xf32> to vector<10x10x4xf32>
    %c0_8 = arith.constant 0 : index
    %c2 = arith.constant 2 : index
    %c0_9 = arith.constant 0 : index
    %c0_10 = arith.constant 0 : index
    %c0_11 = arith.constant 0 : index
    %4 = vector.load %arg2[%c0_8, %c2, %c0_9, %c0_10, %c0_11] : memref<1x4x10x10x4xf32, #tpu.memory_space<vmem>>, vector<1x1x10x10x4xf32>
    %5 = vector.shape_cast %4 : vector<1x1x10x10x4xf32> to vector<10x10x4xf32>
    %c0_12 = arith.constant 0 : index
    %c3 = arith.constant 3 : index
    %c0_13 = arith.constant 0 : index
    %c0_14 = arith.constant 0 : index
    %c0_15 = arith.constant 0 : index
    %6 = vector.load %arg2[%c0_12, %c3, %c0_13, %c0_14, %c0_15] : memref<1x4x10x10x4xf32, #tpu.memory_space<vmem>>, vector<1x1x10x10x4xf32>
    %7 = vector.shape_cast %6 : vector<1x1x10x10x4xf32> to vector<10x10x4xf32>
    %c0_16 = arith.constant 0 : index
    %c0_17 = arith.constant 0 : index
    %c0_18 = arith.constant 0 : index
    %c0_19 = arith.constant 0 : index
    %c0_20 = arith.constant 0 : index
    %8 = vector.load %arg3[%c0_16, %c0_17, %c0_18, %c0_19, %c0_20] : memref<1x4x10x10x4xf32, #tpu.memory_space<vmem>>, vector<1x1x10x10x4xf32>
    %9 = vector.shape_cast %8 : vector<1x1x10x10x4xf32> to vector<10x10x4xf32>
    %c0_21 = arith.constant 0 : index
    %c1_22 = arith.constant 1 : index
    %c0_23 = arith.constant 0 : index
    %c0_24 = arith.constant 0 : index
    %c0_25 = arith.constant 0 : index
    %10 = vector.load %arg3[%c0_21, %c1_22, %c0_23, %c0_24, %c0_25] : memref<1x4x10x10x4xf32, #tpu.memory_space<vmem>>, vector<1x1x10x10x4xf32>
    %11 = vector.shape_cast %10 : vector<1x1x10x10x4xf32> to vector<10x10x4xf32>
    %12 = vector.extract_strided_slice %1 {offsets = [0, 0, 0], sizes = [8, 10, 4], strides = [1, 1, 1]} : vector<10x10x4xf32> to vector<8x10x4xf32>
    %13 = vector.extract_strided_slice %12 {offsets = [0, 0, 0], sizes = [8, 8, 4], strides = [1, 1, 1]} : vector<8x10x4xf32> to vector<8x8x4xf32>
    %14 = vector.shape_cast %13 : vector<8x8x4xf32> to vector<64x4xf32>
    %c0_26 = arith.constant 0 : index
    %c0_27 = arith.constant 0 : index
    %15 = vector.load %arg8[%c0_26, %c0_27] : memref<256x108xf32, #tpu.memory_space<vmem>>, vector<64x4xf32>
    tpu.vector_store %arg8[%c0_26, %c0_27], %14 {strides = array<i32>} : memref<256x108xf32, #tpu.memory_space<vmem>>, vector<64x4xf32>,
    %16 = vector.extract_strided_slice %12 {offsets = [0, 1, 0], sizes = [8, 8, 4], strides = [1, 1, 1]} : vector<8x10x4xf32> to vector<8x8x4xf32>
    %17 = vector.shape_cast %16 : vector<8x8x4xf32> to vector<64x4xf32>
    %c0_28 = arith.constant 0 : index
    %c4 = arith.constant 4 : index
    %18 = vector.load %arg8[%c0_28, %c4] : memref<256x108xf32, #tpu.memory_space<vmem>>, vector<64x4xf32>
    tpu.vector_store %arg8[%c0_28, %c4], %17 {strides = array<i32>} : memref<256x108xf32, #tpu.memory_space<vmem>>, vector<64x4xf32>,
    %19 = vector.extract_strided_slice %12 {offsets = [0, 2, 0], sizes = [8, 8, 4], strides = [1, 1, 1]} : vector<8x10x4xf32> to vector<8x8x4xf32>
    %20 = vector.shape_cast %19 : vector<8x8x4xf32> to vector<64x4xf32>
    %c0_29 = arith.constant 0 : index
    %c8 = arith.constant 8 : index
    %21 = vector.load %arg8[%c0_29, %c8] : memref<256x108xf32, #tpu.memory_space<vmem>>, vector<64x4xf32>
    tpu.vector_store %arg8[%c0_29, %c8], %20 {strides = array<i32>} : memref<256x108xf32, #tpu.memory_space<vmem>>, vector<64x4xf32>,
    %22 = vector.extract_strided_slice %1 {offsets = [1, 0, 0], sizes = [8, 10, 4], strides = [1, 1, 1]} : vector<10x10x4xf32> to vector<8x10x4xf32>
    %23 = vector.extract_strided_slice %22 {offsets = [0, 0, 0], sizes = [8, 8, 4], strides = [1, 1, 1]} : vector<8x10x4xf32> to vector<8x8x4xf32>
    %24 = vector.shape_cast %23 : vector<8x8x4xf32> to vector<64x4xf32>
    %c0_30 = arith.constant 0 : index
    %c12 = arith.constant 12 : index
    %25 = vector.load %arg8[%c0_30, %c12] : memref<256x108xf32, #tpu.memory_space<vmem>>, vector<64x4xf32>
    tpu.vector_store %arg8[%c0_30, %c12], %24 {strides = array<i32>} : memref<256x108xf32, #tpu.memory_space<vmem>>, vector<64x4xf32>,
    %26 = vector.extract_strided_slice %22 {offsets = [0, 1, 0], sizes = [8, 8, 4], strides = [1, 1, 1]} : vector<8x10x4xf32> to vector<8x8x4xf32>
    %27 = vector.shape_cast %26 : vector<8x8x4xf32> to vector<64x4xf32>
    %c0_31 = arith.constant 0 : index
    %c16 = arith.constant 16 : index
    %28 = vector.load %arg8[%c0_31, %c16] : memref<256x108xf32, #tpu.memory_space<vmem>>, vector<64x4xf32>
    tpu.vector_store %arg8[%c0_31, %c16], %27 {strides = array<i32>} : memref<256x108xf32, #tpu.memory_space<vmem>>, vector<64x4xf32>,
    %29 = vector.extract_strided_slice %22 {offsets = [0, 2, 0], sizes = [8, 8, 4], strides = [1, 1, 1]} : vector<8x10x4xf32> to vector<8x8x4xf32>
    %30 = vector.shape_cast %29 : vector<8x8x4xf32> to vector<64x4xf32>
    %c0_32 = arith.constant 0 : index
    %c20 = arith.constant 20 : index
    %31 = vector.load %arg8[%c0_32, %c20] : memref<256x108xf32, #tpu.memory_space<vmem>>, vector<64x4xf32>
    tpu.vector_store %arg8[%c0_32, %c20], %30 {strides = array<i32>} : memref<256x108xf32, #tpu.memory_space<vmem>>, vector<64x4xf32>,
    %32 = vector.extract_strided_slice %1 {offsets = [2, 0, 0], sizes = [8, 10, 4], strides = [1, 1, 1]} : vector<10x10x4xf32> to vector<8x10x4xf32>
    %33 = vector.extract_strided_slice %32 {offsets = [0, 0, 0], sizes = [8, 8, 4], strides = [1, 1, 1]} : vector<8x10x4xf32> to vector<8x8x4xf32>
    %34 = vector.shape_cast %33 : vector<8x8x4xf32> to vector<64x4xf32>
    %c0_33 = arith.constant 0 : index
    %c24 = arith.constant 24 : index
    %35 = vector.load %arg8[%c0_33, %c24] : memref<256x108xf32, #tpu.memory_space<vmem>>, vector<64x4xf32>
    tpu.vector_store %arg8[%c0_33, %c24], %34 {strides = array<i32>} : memref<256x108xf32, #tpu.memory_space<vmem>>, vector<64x4xf32>,
    %36 = vector.extract_strided_slice %32 {offsets = [0, 1, 0], sizes = [8, 8, 4], strides = [1, 1, 1]} : vector<8x10x4xf32> to vector<8x8x4xf32>
    %37 = vector.shape_cast %36 : vector<8x8x4xf32> to vector<64x4xf32>
    %c0_34 = arith.constant 0 : index
    %c28 = arith.constant 28 : index
    %38 = vector.load %arg8[%c0_34, %c28] : memref<256x108xf32, #tpu.memory_space<vmem>>, vector<64x4xf32>
    tpu.vector_store %arg8[%c0_34, %c28], %37 {strides = array<i32>} : memref<256x108xf32, #tpu.memory_space<vmem>>, vector<64x4xf32>,
    %39 = vector.extract_strided_slice %32 {offsets = [0, 2, 0], sizes = [8, 8, 4], strides = [1, 1, 1]} : vector<8x10x4xf32> to vector<8x8x4xf32>
    %40 = vector.shape_cast %39 : vector<8x8x4xf32> to vector<64x4xf32>
    %c0_35 = arith.constant 0 : index
    %c32 = arith.constant 32 : index
    %41 = vector.load %arg8[%c0_35, %c32] : memref<256x108xf32, #tpu.memory_space<vmem>>, vector<64x4xf32>
    tpu.vector_store %arg8[%c0_35, %c32], %40 {strides = array<i32>} : memref<256x108xf32, #tpu.memory_space<vmem>>, vector<64x4xf32>,
    %42 = vector.extract_strided_slice %3 {offsets = [0, 0, 0], sizes = [8, 10, 4], strides = [1, 1, 1]} : vector<10x10x4xf32> to vector<8x10x4xf32>
    %43 = vector.extract_strided_slice %42 {offsets = [0, 0, 0], sizes = [8, 8, 4], strides = [1, 1, 1]} : vector<8x10x4xf32> to vector<8x8x4xf32>
    %44 = vector.shape_cast %43 : vector<8x8x4xf32> to vector<64x4xf32>
    %c0_36 = arith.constant 0 : index
    %c36 = arith.constant 36 : index
    %45 = vector.load %arg8[%c0_36, %c36] : memref<256x108xf32, #tpu.memory_space<vmem>>, vector<64x4xf32>
    tpu.vector_store %arg8[%c0_36, %c36], %44 {strides = array<i32>} : memref<256x108xf32, #tpu.memory_space<vmem>>, vector<64x4xf32>,
    %46 = vector.extract_strided_slice %42 {offsets = [0, 1, 0], sizes = [8, 8, 4], strides = [1, 1, 1]} : vector<8x10x4xf32> to vector<8x8x4xf32>
    %47 = vector.shape_cast %46 : vector<8x8x4xf32> to vector<64x4xf32>
    %c0_37 = arith.constant 0 : index
    %c40 = arith.constant 40 : index
    %48 = vector.load %arg8[%c0_37, %c40] : memref<256x108xf32, #tpu.memory_space<vmem>>, vector<64x4xf32>
    tpu.vector_store %arg8[%c0_37, %c40], %47 {strides = array<i32>} : memref<256x108xf32, #tpu.memory_space<vmem>>, vector<64x4xf32>,
    %49 = vector.extract_strided_slice %42 {offsets = [0, 2, 0], sizes = [8, 8, 4], strides = [1, 1, 1]} : vector<8x10x4xf32> to vector<8x8x4xf32>
    %50 = vector.shape_cast %49 : vector<8x8x4xf32> to vector<64x4xf32>
    %c0_38 = arith.constant 0 : index
    %c44 = arith.constant 44 : index
    %51 = vector.load %arg8[%c0_38, %c44] : memref<256x108xf32, #tpu.memory_space<vmem>>, vector<64x4xf32>
    tpu.vector_store %arg8[%c0_38, %c44], %50 {strides = array<i32>} : memref<256x108xf32, #tpu.memory_space<vmem>>, vector<64x4xf32>,
    %52 = vector.extract_strided_slice %3 {offsets = [1, 0, 0], sizes = [8, 10, 4], strides = [1, 1, 1]} : vector<10x10x4xf32> to vector<8x10x4xf32>
    %53 = vector.extract_strided_slice %52 {offsets = [0, 0, 0], sizes = [8, 8, 4], strides = [1, 1, 1]} : vector<8x10x4xf32> to vector<8x8x4xf32>
    %54 = vector.shape_cast %53 : vector<8x8x4xf32> to vector<64x4xf32>
    %c0_39 = arith.constant 0 : index
    %c48 = arith.constant 48 : index
    %55 = vector.load %arg8[%c0_39, %c48] : memref<256x108xf32, #tpu.memory_space<vmem>>, vector<64x4xf32>
    tpu.vector_store %arg8[%c0_39, %c48], %54 {strides = array<i32>} : memref<256x108xf32, #tpu.memory_space<vmem>>, vector<64x4xf32>,
    %56 = vector.extract_strided_slice %52 {offsets = [0, 1, 0], sizes = [8, 8, 4], strides = [1, 1, 1]} : vector<8x10x4xf32> to vector<8x8x4xf32>
    %57 = vector.shape_cast %56 : vector<8x8x4xf32> to vector<64x4xf32>
    %c0_40 = arith.constant 0 : index
    %c52 = arith.constant 52 : index
    %58 = vector.load %arg8[%c0_40, %c52] : memref<256x108xf32, #tpu.memory_space<vmem>>, vector<64x4xf32>
    tpu.vector_store %arg8[%c0_40, %c52], %57 {strides = array<i32>} : memref<256x108xf32, #tpu.memory_space<vmem>>, vector<64x4xf32>,
    %59 = vector.extract_strided_slice %52 {offsets = [0, 2, 0], sizes = [8, 8, 4], strides = [1, 1, 1]} : vector<8x10x4xf32> to vector<8x8x4xf32>
    %60 = vector.shape_cast %59 : vector<8x8x4xf32> to vector<64x4xf32>
    %c0_41 = arith.constant 0 : index
    %c56 = arith.constant 56 : index
    %61 = vector.load %arg8[%c0_41, %c56] : memref<256x108xf32, #tpu.memory_space<vmem>>, vector<64x4xf32>
    tpu.vector_store %arg8[%c0_41, %c56], %60 {strides = array<i32>} : memref<256x108xf32, #tpu.memory_space<vmem>>, vector<64x4xf32>,
    %62 = vector.extract_strided_slice %3 {offsets = [2, 0, 0], sizes = [8, 10, 4], strides = [1, 1, 1]} : vector<10x10x4xf32> to vector<8x10x4xf32>
    %63 = vector.extract_strided_slice %62 {offsets = [0, 0, 0], sizes = [8, 8, 4], strides = [1, 1, 1]} : vector<8x10x4xf32> to vector<8x8x4xf32>
    %64 = vector.shape_cast %63 : vector<8x8x4xf32> to vector<64x4xf32>
    %c0_42 = arith.constant 0 : index
    %c60 = arith.constant 60 : index
    %65 = vector.load %arg8[%c0_42, %c60] : memref<256x108xf32, #tpu.memory_space<vmem>>, vector<64x4xf32>
    tpu.vector_store %arg8[%c0_42, %c60], %64 {strides = array<i32>} : memref<256x108xf32, #tpu.memory_space<vmem>>, vector<64x4xf32>,
    %66 = vector.extract_strided_slice %62 {offsets = [0, 1, 0], sizes = [8, 8, 4], strides = [1, 1, 1]} : vector<8x10x4xf32> to vector<8x8x4xf32>
    %67 = vector.shape_cast %66 : vector<8x8x4xf32> to vector<64x4xf32>
    %c0_43 = arith.constant 0 : index
    %c64 = arith.constant 64 : index
    %68 = vector.load %arg8[%c0_43, %c64] : memref<256x108xf32, #tpu.memory_space<vmem>>, vector<64x4xf32>
    tpu.vector_store %arg8[%c0_43, %c64], %67 {strides = array<i32>} : memref<256x108xf32, #tpu.memory_space<vmem>>, vector<64x4xf32>,
    %69 = vector.extract_strided_slice %62 {offsets = [0, 2, 0], sizes = [8, 8, 4], strides = [1, 1, 1]} : vector<8x10x4xf32> to vector<8x8x4xf32>
    %70 = vector.shape_cast %69 : vector<8x8x4xf32> to vector<64x4xf32>
    %c0_44 = arith.constant 0 : index
    %c68 = arith.constant 68 : index
    %71 = vector.load %arg8[%c0_44, %c68] : memref<256x108xf32, #tpu.memory_space<vmem>>, vector<64x4xf32>
    tpu.vector_store %arg8[%c0_44, %c68], %70 {strides = array<i32>} : memref<256x108xf32, #tpu.memory_space<vmem>>, vector<64x4xf32>,
    %72 = vector.extract_strided_slice %5 {offsets = [0, 0, 0], sizes = [8, 10, 4], strides = [1, 1, 1]} : vector<10x10x4xf32> to vector<8x10x4xf32>
    %73 = vector.extract_strided_slice %72 {offsets = [0, 0, 0], sizes = [8, 8, 4], strides = [1, 1, 1]} : vector<8x10x4xf32> to vector<8x8x4xf32>
    %74 = vector.shape_cast %73 : vector<8x8x4xf32> to vector<64x4xf32>
    %c0_45 = arith.constant 0 : index
    %c72 = arith.constant 72 : index
    %75 = vector.load %arg8[%c0_45, %c72] : memref<256x108xf32, #tpu.memory_space<vmem>>, vector<64x4xf32>
    tpu.vector_store %arg8[%c0_45, %c72], %74 {strides = array<i32>} : memref<256x108xf32, #tpu.memory_space<vmem>>, vector<64x4xf32>,
    %76 = vector.extract_strided_slice %72 {offsets = [0, 1, 0], sizes = [8, 8, 4], strides = [1, 1, 1]} : vector<8x10x4xf32> to vector<8x8x4xf32>
    %77 = vector.shape_cast %76 : vector<8x8x4xf32> to vector<64x4xf32>
    %c0_46 = arith.constant 0 : index
    %c76 = arith.constant 76 : index
    %78 = vector.load %arg8[%c0_46, %c76] : memref<256x108xf32, #tpu.memory_space<vmem>>, vector<64x4xf32>
    tpu.vector_store %arg8[%c0_46, %c76], %77 {strides = array<i32>} : memref<256x108xf32, #tpu.memory_space<vmem>>, vector<64x4xf32>,
    %79 = vector.extract_strided_slice %72 {offsets = [0, 2, 0], sizes = [8, 8, 4], strides = [1, 1, 1]} : vector<8x10x4xf32> to vector<8x8x4xf32>
    %80 = vector.shape_cast %79 : vector<8x8x4xf32> to vector<64x4xf32>
    %c0_47 = arith.constant 0 : index
    %c80 = arith.constant 80 : index
    %81 = vector.load %arg8[%c0_47, %c80] : memref<256x108xf32, #tpu.memory_space<vmem>>, vector<64x4xf32>
    tpu.vector_store %arg8[%c0_47, %c80], %80 {strides = array<i32>} : memref<256x108xf32, #tpu.memory_space<vmem>>, vector<64x4xf32>,
    %82 = vector.extract_strided_slice %5 {offsets = [1, 0, 0], sizes = [8, 10, 4], strides = [1, 1, 1]} : vector<10x10x4xf32> to vector<8x10x4xf32>
    %83 = vector.extract_strided_slice %82 {offsets = [0, 0, 0], sizes = [8, 8, 4], strides = [1, 1, 1]} : vector<8x10x4xf32> to vector<8x8x4xf32>
    %84 = vector.shape_cast %83 : vector<8x8x4xf32> to vector<64x4xf32>
    %c0_48 = arith.constant 0 : index
    %c84 = arith.constant 84 : index
    %85 = vector.load %arg8[%c0_48, %c84] : memref<256x108xf32, #tpu.memory_space<vmem>>, vector<64x4xf32>
    tpu.vector_store %arg8[%c0_48, %c84], %84 {strides = array<i32>} : memref<256x108xf32, #tpu.memory_space<vmem>>, vector<64x4xf32>,
    %86 = vector.extract_strided_slice %82 {offsets = [0, 1, 0], sizes = [8, 8, 4], strides = [1, 1, 1]} : vector<8x10x4xf32> to vector<8x8x4xf32>
    %87 = vector.shape_cast %86 : vector<8x8x4xf32> to vector<64x4xf32>
    %c0_49 = arith.constant 0 : index
    %c88 = arith.constant 88 : index
    %88 = vector.load %arg8[%c0_49, %c88] : memref<256x108xf32, #tpu.memory_space<vmem>>, vector<64x4xf32>
    tpu.vector_store %arg8[%c0_49, %c88], %87 {strides = array<i32>} : memref<256x108xf32, #tpu.memory_space<vmem>>, vector<64x4xf32>,
    %89 = vector.extract_strided_slice %82 {offsets = [0, 2, 0], sizes = [8, 8, 4], strides = [1, 1, 1]} : vector<8x10x4xf32> to vector<8x8x4xf32>
    %90 = vector.shape_cast %89 : vector<8x8x4xf32> to vector<64x4xf32>
    %c0_50 = arith.constant 0 : index
    %c92 = arith.constant 92 : index
    %91 = vector.load %arg8[%c0_50, %c92] : memref<256x108xf32, #tpu.memory_space<vmem>>, vector<64x4xf32>
    tpu.vector_store %arg8[%c0_50, %c92], %90 {strides = array<i32>} : memref<256x108xf32, #tpu.memory_space<vmem>>, vector<64x4xf32>,
    %92 = vector.extract_strided_slice %5 {offsets = [2, 0, 0], sizes = [8, 10, 4], strides = [1, 1, 1]} : vector<10x10x4xf32> to vector<8x10x4xf32>
    %93 = vector.extract_strided_slice %92 {offsets = [0, 0, 0], sizes = [8, 8, 4], strides = [1, 1, 1]} : vector<8x10x4xf32> to vector<8x8x4xf32>
    %94 = vector.shape_cast %93 : vector<8x8x4xf32> to vector<64x4xf32>
    %c0_51 = arith.constant 0 : index
    %c96 = arith.constant 96 : index
    %95 = vector.load %arg8[%c0_51, %c96] : memref<256x108xf32, #tpu.memory_space<vmem>>, vector<64x4xf32>
    tpu.vector_store %arg8[%c0_51, %c96], %94 {strides = array<i32>} : memref<256x108xf32, #tpu.memory_space<vmem>>, vector<64x4xf32>,
    %96 = vector.extract_strided_slice %92 {offsets = [0, 1, 0], sizes = [8, 8, 4], strides = [1, 1, 1]} : vector<8x10x4xf32> to vector<8x8x4xf32>
    %97 = vector.shape_cast %96 : vector<8x8x4xf32> to vector<64x4xf32>
    %c0_52 = arith.constant 0 : index
    %c100 = arith.constant 100 : index
    %98 = vector.load %arg8[%c0_52, %c100] : memref<256x108xf32, #tpu.memory_space<vmem>>, vector<64x4xf32>
    tpu.vector_store %arg8[%c0_52, %c100], %97 {strides = array<i32>} : memref<256x108xf32, #tpu.memory_space<vmem>>, vector<64x4xf32>,
    %99 = vector.extract_strided_slice %92 {offsets = [0, 2, 0], sizes = [8, 8, 4], strides = [1, 1, 1]} : vector<8x10x4xf32> to vector<8x8x4xf32>
    %100 = vector.shape_cast %99 : vector<8x8x4xf32> to vector<64x4xf32>
    %c0_53 = arith.constant 0 : index
    %c104 = arith.constant 104 : index
    %101 = vector.load %arg8[%c0_53, %c104] : memref<256x108xf32, #tpu.memory_space<vmem>>, vector<64x4xf32>
    tpu.vector_store %arg8[%c0_53, %c104], %100 {strides = array<i32>} : memref<256x108xf32, #tpu.memory_space<vmem>>, vector<64x4xf32>,
    %102 = vector.extract_strided_slice %3 {offsets = [0, 0, 0], sizes = [8, 10, 4], strides = [1, 1, 1]} : vector<10x10x4xf32> to vector<8x10x4xf32>
    %103 = vector.extract_strided_slice %102 {offsets = [0, 0, 0], sizes = [8, 8, 4], strides = [1, 1, 1]} : vector<8x10x4xf32> to vector<8x8x4xf32>
    %104 = vector.shape_cast %103 : vector<8x8x4xf32> to vector<64x4xf32>
    %c64_54 = arith.constant 64 : index
    %c0_55 = arith.constant 0 : index
    %105 = vector.load %arg8[%c64_54, %c0_55] : memref<256x108xf32, #tpu.memory_space<vmem>>, vector<64x4xf32>
    tpu.vector_store %arg8[%c64_54, %c0_55], %104 {strides = array<i32>} : memref<256x108xf32, #tpu.memory_space<vmem>>, vector<64x4xf32>,
    %106 = vector.extract_strided_slice %102 {offsets = [0, 1, 0], sizes = [8, 8, 4], strides = [1, 1, 1]} : vector<8x10x4xf32> to vector<8x8x4xf32>
    %107 = vector.shape_cast %106 : vector<8x8x4xf32> to vector<64x4xf32>
    %c64_56 = arith.constant 64 : index
    %c4_57 = arith.constant 4 : index
    %108 = vector.load %arg8[%c64_56, %c4_57] : memref<256x108xf32, #tpu.memory_space<vmem>>, vector<64x4xf32>
    tpu.vector_store %arg8[%c64_56, %c4_57], %107 {strides = array<i32>} : memref<256x108xf32, #tpu.memory_space<vmem>>, vector<64x4xf32>,
    %109 = vector.extract_strided_slice %102 {offsets = [0, 2, 0], sizes = [8, 8, 4], strides = [1, 1, 1]} : vector<8x10x4xf32> to vector<8x8x4xf32>
    %110 = vector.shape_cast %109 : vector<8x8x4xf32> to vector<64x4xf32>
    %c64_58 = arith.constant 64 : index
    %c8_59 = arith.constant 8 : index
    %111 = vector.load %arg8[%c64_58, %c8_59] : memref<256x108xf32, #tpu.memory_space<vmem>>, vector<64x4xf32>
    tpu.vector_store %arg8[%c64_58, %c8_59], %110 {strides = array<i32>} : memref<256x108xf32, #tpu.memory_space<vmem>>, vector<64x4xf32>,
    %112 = vector.extract_strided_slice %3 {offsets = [1, 0, 0], sizes = [8, 10, 4], strides = [1, 1, 1]} : vector<10x10x4xf32> to vector<8x10x4xf32>
    %113 = vector.extract_strided_slice %112 {offsets = [0, 0, 0], sizes = [8, 8, 4], strides = [1, 1, 1]} : vector<8x10x4xf32> to vector<8x8x4xf32>
    %114 = vector.shape_cast %113 : vector<8x8x4xf32> to vector<64x4xf32>
    %c64_60 = arith.constant 64 : index
    %c12_61 = arith.constant 12 : index
    %115 = vector.load %arg8[%c64_60, %c12_61] : memref<256x108xf32, #tpu.memory_space<vmem>>, vector<64x4xf32>
    tpu.vector_store %arg8[%c64_60, %c12_61], %114 {strides = array<i32>} : memref<256x108xf32, #tpu.memory_space<vmem>>, vector<64x4xf32>,
    %116 = vector.extract_strided_slice %112 {offsets = [0, 1, 0], sizes = [8, 8, 4], strides = [1, 1, 1]} : vector<8x10x4xf32> to vector<8x8x4xf32>
    %117 = vector.shape_cast %116 : vector<8x8x4xf32> to vector<64x4xf32>
    %c64_62 = arith.constant 64 : index
    %c16_63 = arith.constant 16 : index
    %118 = vector.load %arg8[%c64_62, %c16_63] : memref<256x108xf32, #tpu.memory_space<vmem>>, vector<64x4xf32>
    tpu.vector_store %arg8[%c64_62, %c16_63], %117 {strides = array<i32>} : memref<256x108xf32, #tpu.memory_space<vmem>>, vector<64x4xf32>,
    %119 = vector.extract_strided_slice %112 {offsets = [0, 2, 0], sizes = [8, 8, 4], strides = [1, 1, 1]} : vector<8x10x4xf32> to vector<8x8x4xf32>
    %120 = vector.shape_cast %119 : vector<8x8x4xf32> to vector<64x4xf32>
    %c64_64 = arith.constant 64 : index
    %c20_65 = arith.constant 20 : index
    %121 = vector.load %arg8[%c64_64, %c20_65] : memref<256x108xf32, #tpu.memory_space<vmem>>, vector<64x4xf32>
    tpu.vector_store %arg8[%c64_64, %c20_65], %120 {strides = array<i32>} : memref<256x108xf32, #tpu.memory_space<vmem>>, vector<64x4xf32>,
    %122 = vector.extract_strided_slice %3 {offsets = [2, 0, 0], sizes = [8, 10, 4], strides = [1, 1, 1]} : vector<10x10x4xf32> to vector<8x10x4xf32>
    %123 = vector.extract_strided_slice %122 {offsets = [0, 0, 0], sizes = [8, 8, 4], strides = [1, 1, 1]} : vector<8x10x4xf32> to vector<8x8x4xf32>
    %124 = vector.shape_cast %123 : vector<8x8x4xf32> to vector<64x4xf32>
    %c64_66 = arith.constant 64 : index
    %c24_67 = arith.constant 24 : index
    %125 = vector.load %arg8[%c64_66, %c24_67] : memref<256x108xf32, #tpu.memory_space<vmem>>, vector<64x4xf32>
    tpu.vector_store %arg8[%c64_66, %c24_67], %124 {strides = array<i32>} : memref<256x108xf32, #tpu.memory_space<vmem>>, vector<64x4xf32>,
    %126 = vector.extract_strided_slice %122 {offsets = [0, 1, 0], sizes = [8, 8, 4], strides = [1, 1, 1]} : vector<8x10x4xf32> to vector<8x8x4xf32>
    %127 = vector.shape_cast %126 : vector<8x8x4xf32> to vector<64x4xf32>
    %c64_68 = arith.constant 64 : index
    %c28_69 = arith.constant 28 : index
    %128 = vector.load %arg8[%c64_68, %c28_69] : memref<256x108xf32, #tpu.memory_space<vmem>>, vector<64x4xf32>
    tpu.vector_store %arg8[%c64_68, %c28_69], %127 {strides = array<i32>} : memref<256x108xf32, #tpu.memory_space<vmem>>, vector<64x4xf32>,
    %129 = vector.extract_strided_slice %122 {offsets = [0, 2, 0], sizes = [8, 8, 4], strides = [1, 1, 1]} : vector<8x10x4xf32> to vector<8x8x4xf32>
    %130 = vector.shape_cast %129 : vector<8x8x4xf32> to vector<64x4xf32>
    %c64_70 = arith.constant 64 : index
    %c32_71 = arith.constant 32 : index
    %131 = vector.load %arg8[%c64_70, %c32_71] : memref<256x108xf32, #tpu.memory_space<vmem>>, vector<64x4xf32>
    tpu.vector_store %arg8[%c64_70, %c32_71], %130 {strides = array<i32>} : memref<256x108xf32, #tpu.memory_space<vmem>>, vector<64x4xf32>,
    %132 = vector.extract_strided_slice %5 {offsets = [0, 0, 0], sizes = [8, 10, 4], strides = [1, 1, 1]} : vector<10x10x4xf32> to vector<8x10x4xf32>
    %133 = vector.extract_strided_slice %132 {offsets = [0, 0, 0], sizes = [8, 8, 4], strides = [1, 1, 1]} : vector<8x10x4xf32> to vector<8x8x4xf32>
    %134 = vector.shape_cast %133 : vector<8x8x4xf32> to vector<64x4xf32>
    %c64_72 = arith.constant 64 : index
    %c36_73 = arith.constant 36 : index
    %135 = vector.load %arg8[%c64_72, %c36_73] : memref<256x108xf32, #tpu.memory_space<vmem>>, vector<64x4xf32>
    tpu.vector_store %arg8[%c64_72, %c36_73], %134 {strides = array<i32>} : memref<256x108xf32, #tpu.memory_space<vmem>>, vector<64x4xf32>,
    %136 = vector.extract_strided_slice %132 {offsets = [0, 1, 0], sizes = [8, 8, 4], strides = [1, 1, 1]} : vector<8x10x4xf32> to vector<8x8x4xf32>
    %137 = vector.shape_cast %136 : vector<8x8x4xf32> to vector<64x4xf32>
    %c64_74 = arith.constant 64 : index
    %c40_75 = arith.constant 40 : index
    %138 = vector.load %arg8[%c64_74, %c40_75] : memref<256x108xf32, #tpu.memory_space<vmem>>, vector<64x4xf32>
    tpu.vector_store %arg8[%c64_74, %c40_75], %137 {strides = array<i32>} : memref<256x108xf32, #tpu.memory_space<vmem>>, vector<64x4xf32>,
    %139 = vector.extract_strided_slice %132 {offsets = [0, 2, 0], sizes = [8, 8, 4], strides = [1, 1, 1]} : vector<8x10x4xf32> to vector<8x8x4xf32>
    %140 = vector.shape_cast %139 : vector<8x8x4xf32> to vector<64x4xf32>
    %c64_76 = arith.constant 64 : index
    %c44_77 = arith.constant 44 : index
    %141 = vector.load %arg8[%c64_76, %c44_77] : memref<256x108xf32, #tpu.memory_space<vmem>>, vector<64x4xf32>
    tpu.vector_store %arg8[%c64_76, %c44_77], %140 {strides = array<i32>} : memref<256x108xf32, #tpu.memory_space<vmem>>, vector<64x4xf32>,
    %142 = vector.extract_strided_slice %5 {offsets = [1, 0, 0], sizes = [8, 10, 4], strides = [1, 1, 1]} : vector<10x10x4xf32> to vector<8x10x4xf32>
    %143 = vector.extract_strided_slice %142 {offsets = [0, 0, 0], sizes = [8, 8, 4], strides = [1, 1, 1]} : vector<8x10x4xf32> to vector<8x8x4xf32>
    %144 = vector.shape_cast %143 : vector<8x8x4xf32> to vector<64x4xf32>
    %c64_78 = arith.constant 64 : index
    %c48_79 = arith.constant 48 : index
    %145 = vector.load %arg8[%c64_78, %c48_79] : memref<256x108xf32, #tpu.memory_space<vmem>>, vector<64x4xf32>
    tpu.vector_store %arg8[%c64_78, %c48_79], %144 {strides = array<i32>} : memref<256x108xf32, #tpu.memory_space<vmem>>, vector<64x4xf32>,
    %146 = vector.extract_strided_slice %142 {offsets = [0, 1, 0], sizes = [8, 8, 4], strides = [1, 1, 1]} : vector<8x10x4xf32> to vector<8x8x4xf32>
    %147 = vector.shape_cast %146 : vector<8x8x4xf32> to vector<64x4xf32>
    %c64_80 = arith.constant 64 : index
    %c52_81 = arith.constant 52 : index
    %148 = vector.load %arg8[%c64_80, %c52_81] : memref<256x108xf32, #tpu.memory_space<vmem>>, vector<64x4xf32>
    tpu.vector_store %arg8[%c64_80, %c52_81], %147 {strides = array<i32>} : memref<256x108xf32, #tpu.memory_space<vmem>>, vector<64x4xf32>,
    %149 = vector.extract_strided_slice %142 {offsets = [0, 2, 0], sizes = [8, 8, 4], strides = [1, 1, 1]} : vector<8x10x4xf32> to vector<8x8x4xf32>
    %150 = vector.shape_cast %149 : vector<8x8x4xf32> to vector<64x4xf32>
    %c64_82 = arith.constant 64 : index
    %c56_83 = arith.constant 56 : index
    %151 = vector.load %arg8[%c64_82, %c56_83] : memref<256x108xf32, #tpu.memory_space<vmem>>, vector<64x4xf32>
    tpu.vector_store %arg8[%c64_82, %c56_83], %150 {strides = array<i32>} : memref<256x108xf32, #tpu.memory_space<vmem>>, vector<64x4xf32>,
    %152 = vector.extract_strided_slice %5 {offsets = [2, 0, 0], sizes = [8, 10, 4], strides = [1, 1, 1]} : vector<10x10x4xf32> to vector<8x10x4xf32>
    %153 = vector.extract_strided_slice %152 {offsets = [0, 0, 0], sizes = [8, 8, 4], strides = [1, 1, 1]} : vector<8x10x4xf32> to vector<8x8x4xf32>
    %154 = vector.shape_cast %153 : vector<8x8x4xf32> to vector<64x4xf32>
    %c64_84 = arith.constant 64 : index
    %c60_85 = arith.constant 60 : index
    %155 = vector.load %arg8[%c64_84, %c60_85] : memref<256x108xf32, #tpu.memory_space<vmem>>, vector<64x4xf32>
    tpu.vector_store %arg8[%c64_84, %c60_85], %154 {strides = array<i32>} : memref<256x108xf32, #tpu.memory_space<vmem>>, vector<64x4xf32>,
    %156 = vector.extract_strided_slice %152 {offsets = [0, 1, 0], sizes = [8, 8, 4], strides = [1, 1, 1]} : vector<8x10x4xf32> to vector<8x8x4xf32>
    %157 = vector.shape_cast %156 : vector<8x8x4xf32> to vector<64x4xf32>
    %c64_86 = arith.constant 64 : index
    %c64_87 = arith.constant 64 : index
    %158 = vector.load %arg8[%c64_86, %c64_87] : memref<256x108xf32, #tpu.memory_space<vmem>>, vector<64x4xf32>
    tpu.vector_store %arg8[%c64_86, %c64_87], %157 {strides = array<i32>} : memref<256x108xf32, #tpu.memory_space<vmem>>, vector<64x4xf32>,
    %159 = vector.extract_strided_slice %152 {offsets = [0, 2, 0], sizes = [8, 8, 4], strides = [1, 1, 1]} : vector<8x10x4xf32> to vector<8x8x4xf32>
    %160 = vector.shape_cast %159 : vector<8x8x4xf32> to vector<64x4xf32>
    %c64_88 = arith.constant 64 : index
    %c68_89 = arith.constant 68 : index
    %161 = vector.load %arg8[%c64_88, %c68_89] : memref<256x108xf32, #tpu.memory_space<vmem>>, vector<64x4xf32>
    tpu.vector_store %arg8[%c64_88, %c68_89], %160 {strides = array<i32>} : memref<256x108xf32, #tpu.memory_space<vmem>>, vector<64x4xf32>,
    %162 = vector.extract_strided_slice %7 {offsets = [0, 0, 0], sizes = [8, 10, 4], strides = [1, 1, 1]} : vector<10x10x4xf32> to vector<8x10x4xf32>
    %163 = vector.extract_strided_slice %162 {offsets = [0, 0, 0], sizes = [8, 8, 4], strides = [1, 1, 1]} : vector<8x10x4xf32> to vector<8x8x4xf32>
    %164 = vector.shape_cast %163 : vector<8x8x4xf32> to vector<64x4xf32>
    %c64_90 = arith.constant 64 : index
    %c72_91 = arith.constant 72 : index
    %165 = vector.load %arg8[%c64_90, %c72_91] : memref<256x108xf32, #tpu.memory_space<vmem>>, vector<64x4xf32>
    tpu.vector_store %arg8[%c64_90, %c72_91], %164 {strides = array<i32>} : memref<256x108xf32, #tpu.memory_space<vmem>>, vector<64x4xf32>,
    %166 = vector.extract_strided_slice %162 {offsets = [0, 1, 0], sizes = [8, 8, 4], strides = [1, 1, 1]} : vector<8x10x4xf32> to vector<8x8x4xf32>
    %167 = vector.shape_cast %166 : vector<8x8x4xf32> to vector<64x4xf32>
    %c64_92 = arith.constant 64 : index
    %c76_93 = arith.constant 76 : index
    %168 = vector.load %arg8[%c64_92, %c76_93] : memref<256x108xf32, #tpu.memory_space<vmem>>, vector<64x4xf32>
    tpu.vector_store %arg8[%c64_92, %c76_93], %167 {strides = array<i32>} : memref<256x108xf32, #tpu.memory_space<vmem>>, vector<64x4xf32>,
    %169 = vector.extract_strided_slice %162 {offsets = [0, 2, 0], sizes = [8, 8, 4], strides = [1, 1, 1]} : vector<8x10x4xf32> to vector<8x8x4xf32>
    %170 = vector.shape_cast %169 : vector<8x8x4xf32> to vector<64x4xf32>
    %c64_94 = arith.constant 64 : index
    %c80_95 = arith.constant 80 : index
    %171 = vector.load %arg8[%c64_94, %c80_95] : memref<256x108xf32, #tpu.memory_space<vmem>>, vector<64x4xf32>
    tpu.vector_store %arg8[%c64_94, %c80_95], %170 {strides = array<i32>} : memref<256x108xf32, #tpu.memory_space<vmem>>, vector<64x4xf32>,
    %172 = vector.extract_strided_slice %7 {offsets = [1, 0, 0], sizes = [8, 10, 4], strides = [1, 1, 1]} : vector<10x10x4xf32> to vector<8x10x4xf32>
    %173 = vector.extract_strided_slice %172 {offsets = [0, 0, 0], sizes = [8, 8, 4], strides = [1, 1, 1]} : vector<8x10x4xf32> to vector<8x8x4xf32>
    %174 = vector.shape_cast %173 : vector<8x8x4xf32> to vector<64x4xf32>
    %c64_96 = arith.constant 64 : index
    %c84_97 = arith.constant 84 : index
    %175 = vector.load %arg8[%c64_96, %c84_97] : memref<256x108xf32, #tpu.memory_space<vmem>>, vector<64x4xf32>
    tpu.vector_store %arg8[%c64_96, %c84_97], %174 {strides = array<i32>} : memref<256x108xf32, #tpu.memory_space<vmem>>, vector<64x4xf32>,
    %176 = vector.extract_strided_slice %172 {offsets = [0, 1, 0], sizes = [8, 8, 4], strides = [1, 1, 1]} : vector<8x10x4xf32> to vector<8x8x4xf32>
    %177 = vector.shape_cast %176 : vector<8x8x4xf32> to vector<64x4xf32>
    %c64_98 = arith.constant 64 : index
    %c88_99 = arith.constant 88 : index
    %178 = vector.load %arg8[%c64_98, %c88_99] : memref<256x108xf32, #tpu.memory_space<vmem>>, vector<64x4xf32>
    tpu.vector_store %arg8[%c64_98, %c88_99], %177 {strides = array<i32>} : memref<256x108xf32, #tpu.memory_space<vmem>>, vector<64x4xf32>,
    %179 = vector.extract_strided_slice %172 {offsets = [0, 2, 0], sizes = [8, 8, 4], strides = [1, 1, 1]} : vector<8x10x4xf32> to vector<8x8x4xf32>
    %180 = vector.shape_cast %179 : vector<8x8x4xf32> to vector<64x4xf32>
    %c64_100 = arith.constant 64 : index
    %c92_101 = arith.constant 92 : index
    %181 = vector.load %arg8[%c64_100, %c92_101] : memref<256x108xf32, #tpu.memory_space<vmem>>, vector<64x4xf32>
    tpu.vector_store %arg8[%c64_100, %c92_101], %180 {strides = array<i32>} : memref<256x108xf32, #tpu.memory_space<vmem>>, vector<64x4xf32>,
    %182 = vector.extract_strided_slice %7 {offsets = [2, 0, 0], sizes = [8, 10, 4], strides = [1, 1, 1]} : vector<10x10x4xf32> to vector<8x10x4xf32>
    %183 = vector.extract_strided_slice %182 {offsets = [0, 0, 0], sizes = [8, 8, 4], strides = [1, 1, 1]} : vector<8x10x4xf32> to vector<8x8x4xf32>
    %184 = vector.shape_cast %183 : vector<8x8x4xf32> to vector<64x4xf32>
    %c64_102 = arith.constant 64 : index
    %c96_103 = arith.constant 96 : index
    %185 = vector.load %arg8[%c64_102, %c96_103] : memref<256x108xf32, #tpu.memory_space<vmem>>, vector<64x4xf32>
    tpu.vector_store %arg8[%c64_102, %c96_103], %184 {strides = array<i32>} : memref<256x108xf32, #tpu.memory_space<vmem>>, vector<64x4xf32>,
    %186 = vector.extract_strided_slice %182 {offsets = [0, 1, 0], sizes = [8, 8, 4], strides = [1, 1, 1]} : vector<8x10x4xf32> to vector<8x8x4xf32>
    %187 = vector.shape_cast %186 : vector<8x8x4xf32> to vector<64x4xf32>
    %c64_104 = arith.constant 64 : index
    %c100_105 = arith.constant 100 : index
    %188 = vector.load %arg8[%c64_104, %c100_105] : memref<256x108xf32, #tpu.memory_space<vmem>>, vector<64x4xf32>
    tpu.vector_store %arg8[%c64_104, %c100_105], %187 {strides = array<i32>} : memref<256x108xf32, #tpu.memory_space<vmem>>, vector<64x4xf32>,
    %189 = vector.extract_strided_slice %182 {offsets = [0, 2, 0], sizes = [8, 8, 4], strides = [1, 1, 1]} : vector<8x10x4xf32> to vector<8x8x4xf32>
    %190 = vector.shape_cast %189 : vector<8x8x4xf32> to vector<64x4xf32>
    %c64_106 = arith.constant 64 : index
    %c104_107 = arith.constant 104 : index
    %191 = vector.load %arg8[%c64_106, %c104_107] : memref<256x108xf32, #tpu.memory_space<vmem>>, vector<64x4xf32>
    tpu.vector_store %arg8[%c64_106, %c104_107], %190 {strides = array<i32>} : memref<256x108xf32, #tpu.memory_space<vmem>>, vector<64x4xf32>,
    %192 = vector.extract_strided_slice %5 {offsets = [0, 0, 0], sizes = [8, 10, 4], strides = [1, 1, 1]} : vector<10x10x4xf32> to vector<8x10x4xf32>
    %193 = vector.extract_strided_slice %192 {offsets = [0, 0, 0], sizes = [8, 8, 4], strides = [1, 1, 1]} : vector<8x10x4xf32> to vector<8x8x4xf32>
    %194 = vector.shape_cast %193 : vector<8x8x4xf32> to vector<64x4xf32>
    %c128 = arith.constant 128 : index
    %c0_108 = arith.constant 0 : index
    %195 = vector.load %arg8[%c128, %c0_108] : memref<256x108xf32, #tpu.memory_space<vmem>>, vector<64x4xf32>
    tpu.vector_store %arg8[%c128, %c0_108], %194 {strides = array<i32>} : memref<256x108xf32, #tpu.memory_space<vmem>>, vector<64x4xf32>,
    %196 = vector.extract_strided_slice %192 {offsets = [0, 1, 0], sizes = [8, 8, 4], strides = [1, 1, 1]} : vector<8x10x4xf32> to vector<8x8x4xf32>
    %197 = vector.shape_cast %196 : vector<8x8x4xf32> to vector<64x4xf32>
    %c128_109 = arith.constant 128 : index
    %c4_110 = arith.constant 4 : index
    %198 = vector.load %arg8[%c128_109, %c4_110] : memref<256x108xf32, #tpu.memory_space<vmem>>, vector<64x4xf32>
    tpu.vector_store %arg8[%c128_109, %c4_110], %197 {strides = array<i32>} : memref<256x108xf32, #tpu.memory_space<vmem>>, vector<64x4xf32>,
    %199 = vector.extract_strided_slice %192 {offsets = [0, 2, 0], sizes = [8, 8, 4], strides = [1, 1, 1]} : vector<8x10x4xf32> to vector<8x8x4xf32>
    %200 = vector.shape_cast %199 : vector<8x8x4xf32> to vector<64x4xf32>
    %c128_111 = arith.constant 128 : index
    %c8_112 = arith.constant 8 : index
    %201 = vector.load %arg8[%c128_111, %c8_112] : memref<256x108xf32, #tpu.memory_space<vmem>>, vector<64x4xf32>
    tpu.vector_store %arg8[%c128_111, %c8_112], %200 {strides = array<i32>} : memref<256x108xf32, #tpu.memory_space<vmem>>, vector<64x4xf32>,
    %202 = vector.extract_strided_slice %5 {offsets = [1, 0, 0], sizes = [8, 10, 4], strides = [1, 1, 1]} : vector<10x10x4xf32> to vector<8x10x4xf32>
    %203 = vector.extract_strided_slice %202 {offsets = [0, 0, 0], sizes = [8, 8, 4], strides = [1, 1, 1]} : vector<8x10x4xf32> to vector<8x8x4xf32>
    %204 = vector.shape_cast %203 : vector<8x8x4xf32> to vector<64x4xf32>
    %c128_113 = arith.constant 128 : index
    %c12_114 = arith.constant 12 : index
    %205 = vector.load %arg8[%c128_113, %c12_114] : memref<256x108xf32, #tpu.memory_space<vmem>>, vector<64x4xf32>
    tpu.vector_store %arg8[%c128_113, %c12_114], %204 {strides = array<i32>} : memref<256x108xf32, #tpu.memory_space<vmem>>, vector<64x4xf32>,
    %206 = vector.extract_strided_slice %202 {offsets = [0, 1, 0], sizes = [8, 8, 4], strides = [1, 1, 1]} : vector<8x10x4xf32> to vector<8x8x4xf32>
    %207 = vector.shape_cast %206 : vector<8x8x4xf32> to vector<64x4xf32>
    %c128_115 = arith.constant 128 : index
    %c16_116 = arith.constant 16 : index
    %208 = vector.load %arg8[%c128_115, %c16_116] : memref<256x108xf32, #tpu.memory_space<vmem>>, vector<64x4xf32>
    tpu.vector_store %arg8[%c128_115, %c16_116], %207 {strides = array<i32>} : memref<256x108xf32, #tpu.memory_space<vmem>>, vector<64x4xf32>,
    %209 = vector.extract_strided_slice %202 {offsets = [0, 2, 0], sizes = [8, 8, 4], strides = [1, 1, 1]} : vector<8x10x4xf32> to vector<8x8x4xf32>
    %210 = vector.shape_cast %209 : vector<8x8x4xf32> to vector<64x4xf32>
    %c128_117 = arith.constant 128 : index
    %c20_118 = arith.constant 20 : index
    %211 = vector.load %arg8[%c128_117, %c20_118] : memref<256x108xf32, #tpu.memory_space<vmem>>, vector<64x4xf32>
    tpu.vector_store %arg8[%c128_117, %c20_118], %210 {strides = array<i32>} : memref<256x108xf32, #tpu.memory_space<vmem>>, vector<64x4xf32>,
    %212 = vector.extract_strided_slice %5 {offsets = [2, 0, 0], sizes = [8, 10, 4], strides = [1, 1, 1]} : vector<10x10x4xf32> to vector<8x10x4xf32>
    %213 = vector.extract_strided_slice %212 {offsets = [0, 0, 0], sizes = [8, 8, 4], strides = [1, 1, 1]} : vector<8x10x4xf32> to vector<8x8x4xf32>
    %214 = vector.shape_cast %213 : vector<8x8x4xf32> to vector<64x4xf32>
    %c128_119 = arith.constant 128 : index
    %c24_120 = arith.constant 24 : index
    %215 = vector.load %arg8[%c128_119, %c24_120] : memref<256x108xf32, #tpu.memory_space<vmem>>, vector<64x4xf32>
    tpu.vector_store %arg8[%c128_119, %c24_120], %214 {strides = array<i32>} : memref<256x108xf32, #tpu.memory_space<vmem>>, vector<64x4xf32>,
    %216 = vector.extract_strided_slice %212 {offsets = [0, 1, 0], sizes = [8, 8, 4], strides = [1, 1, 1]} : vector<8x10x4xf32> to vector<8x8x4xf32>
    %217 = vector.shape_cast %216 : vector<8x8x4xf32> to vector<64x4xf32>
    %c128_121 = arith.constant 128 : index
    %c28_122 = arith.constant 28 : index
    %218 = vector.load %arg8[%c128_121, %c28_122] : memref<256x108xf32, #tpu.memory_space<vmem>>, vector<64x4xf32>
    tpu.vector_store %arg8[%c128_121, %c28_122], %217 {strides = array<i32>} : memref<256x108xf32, #tpu.memory_space<vmem>>, vector<64x4xf32>,
    %219 = vector.extract_strided_slice %212 {offsets = [0, 2, 0], sizes = [8, 8, 4], strides = [1, 1, 1]} : vector<8x10x4xf32> to vector<8x8x4xf32>
    %220 = vector.shape_cast %219 : vector<8x8x4xf32> to vector<64x4xf32>
    %c128_123 = arith.constant 128 : index
    %c32_124 = arith.constant 32 : index
    %221 = vector.load %arg8[%c128_123, %c32_124] : memref<256x108xf32, #tpu.memory_space<vmem>>, vector<64x4xf32>
    tpu.vector_store %arg8[%c128_123, %c32_124], %220 {strides = array<i32>} : memref<256x108xf32, #tpu.memory_space<vmem>>, vector<64x4xf32>,
    %222 = vector.extract_strided_slice %7 {offsets = [0, 0, 0], sizes = [8, 10, 4], strides = [1, 1, 1]} : vector<10x10x4xf32> to vector<8x10x4xf32>
    %223 = vector.extract_strided_slice %222 {offsets = [0, 0, 0], sizes = [8, 8, 4], strides = [1, 1, 1]} : vector<8x10x4xf32> to vector<8x8x4xf32>
    %224 = vector.shape_cast %223 : vector<8x8x4xf32> to vector<64x4xf32>
    %c128_125 = arith.constant 128 : index
    %c36_126 = arith.constant 36 : index
    %225 = vector.load %arg8[%c128_125, %c36_126] : memref<256x108xf32, #tpu.memory_space<vmem>>, vector<64x4xf32>
    tpu.vector_store %arg8[%c128_125, %c36_126], %224 {strides = array<i32>} : memref<256x108xf32, #tpu.memory_space<vmem>>, vector<64x4xf32>,
    %226 = vector.extract_strided_slice %222 {offsets = [0, 1, 0], sizes = [8, 8, 4], strides = [1, 1, 1]} : vector<8x10x4xf32> to vector<8x8x4xf32>
    %227 = vector.shape_cast %226 : vector<8x8x4xf32> to vector<64x4xf32>
    %c128_127 = arith.constant 128 : index
    %c40_128 = arith.constant 40 : index
    %228 = vector.load %arg8[%c128_127, %c40_128] : memref<256x108xf32, #tpu.memory_space<vmem>>, vector<64x4xf32>
    tpu.vector_store %arg8[%c128_127, %c40_128], %227 {strides = array<i32>} : memref<256x108xf32, #tpu.memory_space<vmem>>, vector<64x4xf32>,
    %229 = vector.extract_strided_slice %222 {offsets = [0, 2, 0], sizes = [8, 8, 4], strides = [1, 1, 1]} : vector<8x10x4xf32> to vector<8x8x4xf32>
    %230 = vector.shape_cast %229 : vector<8x8x4xf32> to vector<64x4xf32>
    %c128_129 = arith.constant 128 : index
    %c44_130 = arith.constant 44 : index
    %231 = vector.load %arg8[%c128_129, %c44_130] : memref<256x108xf32, #tpu.memory_space<vmem>>, vector<64x4xf32>
    tpu.vector_store %arg8[%c128_129, %c44_130], %230 {strides = array<i32>} : memref<256x108xf32, #tpu.memory_space<vmem>>, vector<64x4xf32>,
    %232 = vector.extract_strided_slice %7 {offsets = [1, 0, 0], sizes = [8, 10, 4], strides = [1, 1, 1]} : vector<10x10x4xf32> to vector<8x10x4xf32>
    %233 = vector.extract_strided_slice %232 {offsets = [0, 0, 0], sizes = [8, 8, 4], strides = [1, 1, 1]} : vector<8x10x4xf32> to vector<8x8x4xf32>
    %234 = vector.shape_cast %233 : vector<8x8x4xf32> to vector<64x4xf32>
    %c128_131 = arith.constant 128 : index
    %c48_132 = arith.constant 48 : index
    %235 = vector.load %arg8[%c128_131, %c48_132] : memref<256x108xf32, #tpu.memory_space<vmem>>, vector<64x4xf32>
    tpu.vector_store %arg8[%c128_131, %c48_132], %234 {strides = array<i32>} : memref<256x108xf32, #tpu.memory_space<vmem>>, vector<64x4xf32>,
    %236 = vector.extract_strided_slice %232 {offsets = [0, 1, 0], sizes = [8, 8, 4], strides = [1, 1, 1]} : vector<8x10x4xf32> to vector<8x8x4xf32>
    %237 = vector.shape_cast %236 : vector<8x8x4xf32> to vector<64x4xf32>
    %c128_133 = arith.constant 128 : index
    %c52_134 = arith.constant 52 : index
    %238 = vector.load %arg8[%c128_133, %c52_134] : memref<256x108xf32, #tpu.memory_space<vmem>>, vector<64x4xf32>
    tpu.vector_store %arg8[%c128_133, %c52_134], %237 {strides = array<i32>} : memref<256x108xf32, #tpu.memory_space<vmem>>, vector<64x4xf32>,
    %239 = vector.extract_strided_slice %232 {offsets = [0, 2, 0], sizes = [8, 8, 4], strides = [1, 1, 1]} : vector<8x10x4xf32> to vector<8x8x4xf32>
    %240 = vector.shape_cast %239 : vector<8x8x4xf32> to vector<64x4xf32>
    %c128_135 = arith.constant 128 : index
    %c56_136 = arith.constant 56 : index
    %241 = vector.load %arg8[%c128_135, %c56_136] : memref<256x108xf32, #tpu.memory_space<vmem>>, vector<64x4xf32>
    tpu.vector_store %arg8[%c128_135, %c56_136], %240 {strides = array<i32>} : memref<256x108xf32, #tpu.memory_space<vmem>>, vector<64x4xf32>,
    %242 = vector.extract_strided_slice %7 {offsets = [2, 0, 0], sizes = [8, 10, 4], strides = [1, 1, 1]} : vector<10x10x4xf32> to vector<8x10x4xf32>
    %243 = vector.extract_strided_slice %242 {offsets = [0, 0, 0], sizes = [8, 8, 4], strides = [1, 1, 1]} : vector<8x10x4xf32> to vector<8x8x4xf32>
    %244 = vector.shape_cast %243 : vector<8x8x4xf32> to vector<64x4xf32>
    %c128_137 = arith.constant 128 : index
    %c60_138 = arith.constant 60 : index
    %245 = vector.load %arg8[%c128_137, %c60_138] : memref<256x108xf32, #tpu.memory_space<vmem>>, vector<64x4xf32>
    tpu.vector_store %arg8[%c128_137, %c60_138], %244 {strides = array<i32>} : memref<256x108xf32, #tpu.memory_space<vmem>>, vector<64x4xf32>,
    %246 = vector.extract_strided_slice %242 {offsets = [0, 1, 0], sizes = [8, 8, 4], strides = [1, 1, 1]} : vector<8x10x4xf32> to vector<8x8x4xf32>
    %247 = vector.shape_cast %246 : vector<8x8x4xf32> to vector<64x4xf32>
    %c128_139 = arith.constant 128 : index
    %c64_140 = arith.constant 64 : index
    %248 = vector.load %arg8[%c128_139, %c64_140] : memref<256x108xf32, #tpu.memory_space<vmem>>, vector<64x4xf32>
    tpu.vector_store %arg8[%c128_139, %c64_140], %247 {strides = array<i32>} : memref<256x108xf32, #tpu.memory_space<vmem>>, vector<64x4xf32>,
    %249 = vector.extract_strided_slice %242 {offsets = [0, 2, 0], sizes = [8, 8, 4], strides = [1, 1, 1]} : vector<8x10x4xf32> to vector<8x8x4xf32>
    %250 = vector.shape_cast %249 : vector<8x8x4xf32> to vector<64x4xf32>
    %c128_141 = arith.constant 128 : index
    %c68_142 = arith.constant 68 : index
    %251 = vector.load %arg8[%c128_141, %c68_142] : memref<256x108xf32, #tpu.memory_space<vmem>>, vector<64x4xf32>
    tpu.vector_store %arg8[%c128_141, %c68_142], %250 {strides = array<i32>} : memref<256x108xf32, #tpu.memory_space<vmem>>, vector<64x4xf32>,
    %252 = vector.extract_strided_slice %9 {offsets = [0, 0, 0], sizes = [8, 10, 4], strides = [1, 1, 1]} : vector<10x10x4xf32> to vector<8x10x4xf32>
    %253 = vector.extract_strided_slice %252 {offsets = [0, 0, 0], sizes = [8, 8, 4], strides = [1, 1, 1]} : vector<8x10x4xf32> to vector<8x8x4xf32>
    %254 = vector.shape_cast %253 : vector<8x8x4xf32> to vector<64x4xf32>
    %c128_143 = arith.constant 128 : index
    %c72_144 = arith.constant 72 : index
    %255 = vector.load %arg8[%c128_143, %c72_144] : memref<256x108xf32, #tpu.memory_space<vmem>>, vector<64x4xf32>
    tpu.vector_store %arg8[%c128_143, %c72_144], %254 {strides = array<i32>} : memref<256x108xf32, #tpu.memory_space<vmem>>, vector<64x4xf32>,
    %256 = vector.extract_strided_slice %252 {offsets = [0, 1, 0], sizes = [8, 8, 4], strides = [1, 1, 1]} : vector<8x10x4xf32> to vector<8x8x4xf32>
    %257 = vector.shape_cast %256 : vector<8x8x4xf32> to vector<64x4xf32>
    %c128_145 = arith.constant 128 : index
    %c76_146 = arith.constant 76 : index
    %258 = vector.load %arg8[%c128_145, %c76_146] : memref<256x108xf32, #tpu.memory_space<vmem>>, vector<64x4xf32>
    tpu.vector_store %arg8[%c128_145, %c76_146], %257 {strides = array<i32>} : memref<256x108xf32, #tpu.memory_space<vmem>>, vector<64x4xf32>,
    %259 = vector.extract_strided_slice %252 {offsets = [0, 2, 0], sizes = [8, 8, 4], strides = [1, 1, 1]} : vector<8x10x4xf32> to vector<8x8x4xf32>
    %260 = vector.shape_cast %259 : vector<8x8x4xf32> to vector<64x4xf32>
    %c128_147 = arith.constant 128 : index
    %c80_148 = arith.constant 80 : index
    %261 = vector.load %arg8[%c128_147, %c80_148] : memref<256x108xf32, #tpu.memory_space<vmem>>, vector<64x4xf32>
    tpu.vector_store %arg8[%c128_147, %c80_148], %260 {strides = array<i32>} : memref<256x108xf32, #tpu.memory_space<vmem>>, vector<64x4xf32>,
    %262 = vector.extract_strided_slice %9 {offsets = [1, 0, 0], sizes = [8, 10, 4], strides = [1, 1, 1]} : vector<10x10x4xf32> to vector<8x10x4xf32>
    %263 = vector.extract_strided_slice %262 {offsets = [0, 0, 0], sizes = [8, 8, 4], strides = [1, 1, 1]} : vector<8x10x4xf32> to vector<8x8x4xf32>
    %264 = vector.shape_cast %263 : vector<8x8x4xf32> to vector<64x4xf32>
    %c128_149 = arith.constant 128 : index
    %c84_150 = arith.constant 84 : index
    %265 = vector.load %arg8[%c128_149, %c84_150] : memref<256x108xf32, #tpu.memory_space<vmem>>, vector<64x4xf32>
    tpu.vector_store %arg8[%c128_149, %c84_150], %264 {strides = array<i32>} : memref<256x108xf32, #tpu.memory_space<vmem>>, vector<64x4xf32>,
    %266 = vector.extract_strided_slice %262 {offsets = [0, 1, 0], sizes = [8, 8, 4], strides = [1, 1, 1]} : vector<8x10x4xf32> to vector<8x8x4xf32>
    %267 = vector.shape_cast %266 : vector<8x8x4xf32> to vector<64x4xf32>
    %c128_151 = arith.constant 128 : index
    %c88_152 = arith.constant 88 : index
    %268 = vector.load %arg8[%c128_151, %c88_152] : memref<256x108xf32, #tpu.memory_space<vmem>>, vector<64x4xf32>
    tpu.vector_store %arg8[%c128_151, %c88_152], %267 {strides = array<i32>} : memref<256x108xf32, #tpu.memory_space<vmem>>, vector<64x4xf32>,
    %269 = vector.extract_strided_slice %262 {offsets = [0, 2, 0], sizes = [8, 8, 4], strides = [1, 1, 1]} : vector<8x10x4xf32> to vector<8x8x4xf32>
    %270 = vector.shape_cast %269 : vector<8x8x4xf32> to vector<64x4xf32>
    %c128_153 = arith.constant 128 : index
    %c92_154 = arith.constant 92 : index
    %271 = vector.load %arg8[%c128_153, %c92_154] : memref<256x108xf32, #tpu.memory_space<vmem>>, vector<64x4xf32>
    tpu.vector_store %arg8[%c128_153, %c92_154], %270 {strides = array<i32>} : memref<256x108xf32, #tpu.memory_space<vmem>>, vector<64x4xf32>,
    %272 = vector.extract_strided_slice %9 {offsets = [2, 0, 0], sizes = [8, 10, 4], strides = [1, 1, 1]} : vector<10x10x4xf32> to vector<8x10x4xf32>
    %273 = vector.extract_strided_slice %272 {offsets = [0, 0, 0], sizes = [8, 8, 4], strides = [1, 1, 1]} : vector<8x10x4xf32> to vector<8x8x4xf32>
    %274 = vector.shape_cast %273 : vector<8x8x4xf32> to vector<64x4xf32>
    %c128_155 = arith.constant 128 : index
    %c96_156 = arith.constant 96 : index
    %275 = vector.load %arg8[%c128_155, %c96_156] : memref<256x108xf32, #tpu.memory_space<vmem>>, vector<64x4xf32>
    tpu.vector_store %arg8[%c128_155, %c96_156], %274 {strides = array<i32>} : memref<256x108xf32, #tpu.memory_space<vmem>>, vector<64x4xf32>,
    %276 = vector.extract_strided_slice %272 {offsets = [0, 1, 0], sizes = [8, 8, 4], strides = [1, 1, 1]} : vector<8x10x4xf32> to vector<8x8x4xf32>
    %277 = vector.shape_cast %276 : vector<8x8x4xf32> to vector<64x4xf32>
    %c128_157 = arith.constant 128 : index
    %c100_158 = arith.constant 100 : index
    %278 = vector.load %arg8[%c128_157, %c100_158] : memref<256x108xf32, #tpu.memory_space<vmem>>, vector<64x4xf32>
    tpu.vector_store %arg8[%c128_157, %c100_158], %277 {strides = array<i32>} : memref<256x108xf32, #tpu.memory_space<vmem>>, vector<64x4xf32>,
    %279 = vector.extract_strided_slice %272 {offsets = [0, 2, 0], sizes = [8, 8, 4], strides = [1, 1, 1]} : vector<8x10x4xf32> to vector<8x8x4xf32>
    %280 = vector.shape_cast %279 : vector<8x8x4xf32> to vector<64x4xf32>
    %c128_159 = arith.constant 128 : index
    %c104_160 = arith.constant 104 : index
    %281 = vector.load %arg8[%c128_159, %c104_160] : memref<256x108xf32, #tpu.memory_space<vmem>>, vector<64x4xf32>
    tpu.vector_store %arg8[%c128_159, %c104_160], %280 {strides = array<i32>} : memref<256x108xf32, #tpu.memory_space<vmem>>, vector<64x4xf32>,
    %282 = vector.extract_strided_slice %7 {offsets = [0, 0, 0], sizes = [8, 10, 4], strides = [1, 1, 1]} : vector<10x10x4xf32> to vector<8x10x4xf32>
    %283 = vector.extract_strided_slice %282 {offsets = [0, 0, 0], sizes = [8, 8, 4], strides = [1, 1, 1]} : vector<8x10x4xf32> to vector<8x8x4xf32>
    %284 = vector.shape_cast %283 : vector<8x8x4xf32> to vector<64x4xf32>
    %c192 = arith.constant 192 : index
    %c0_161 = arith.constant 0 : index
    %285 = vector.load %arg8[%c192, %c0_161] : memref<256x108xf32, #tpu.memory_space<vmem>>, vector<64x4xf32>
    tpu.vector_store %arg8[%c192, %c0_161], %284 {strides = array<i32>} : memref<256x108xf32, #tpu.memory_space<vmem>>, vector<64x4xf32>,
    %286 = vector.extract_strided_slice %282 {offsets = [0, 1, 0], sizes = [8, 8, 4], strides = [1, 1, 1]} : vector<8x10x4xf32> to vector<8x8x4xf32>
    %287 = vector.shape_cast %286 : vector<8x8x4xf32> to vector<64x4xf32>
    %c192_162 = arith.constant 192 : index
    %c4_163 = arith.constant 4 : index
    %288 = vector.load %arg8[%c192_162, %c4_163] : memref<256x108xf32, #tpu.memory_space<vmem>>, vector<64x4xf32>
    tpu.vector_store %arg8[%c192_162, %c4_163], %287 {strides = array<i32>} : memref<256x108xf32, #tpu.memory_space<vmem>>, vector<64x4xf32>,
    %289 = vector.extract_strided_slice %282 {offsets = [0, 2, 0], sizes = [8, 8, 4], strides = [1, 1, 1]} : vector<8x10x4xf32> to vector<8x8x4xf32>
    %290 = vector.shape_cast %289 : vector<8x8x4xf32> to vector<64x4xf32>
    %c192_164 = arith.constant 192 : index
    %c8_165 = arith.constant 8 : index
    %291 = vector.load %arg8[%c192_164, %c8_165] : memref<256x108xf32, #tpu.memory_space<vmem>>, vector<64x4xf32>
    tpu.vector_store %arg8[%c192_164, %c8_165], %290 {strides = array<i32>} : memref<256x108xf32, #tpu.memory_space<vmem>>, vector<64x4xf32>,
    %292 = vector.extract_strided_slice %7 {offsets = [1, 0, 0], sizes = [8, 10, 4], strides = [1, 1, 1]} : vector<10x10x4xf32> to vector<8x10x4xf32>
    %293 = vector.extract_strided_slice %292 {offsets = [0, 0, 0], sizes = [8, 8, 4], strides = [1, 1, 1]} : vector<8x10x4xf32> to vector<8x8x4xf32>
    %294 = vector.shape_cast %293 : vector<8x8x4xf32> to vector<64x4xf32>
    %c192_166 = arith.constant 192 : index
    %c12_167 = arith.constant 12 : index
    %295 = vector.load %arg8[%c192_166, %c12_167] : memref<256x108xf32, #tpu.memory_space<vmem>>, vector<64x4xf32>
    tpu.vector_store %arg8[%c192_166, %c12_167], %294 {strides = array<i32>} : memref<256x108xf32, #tpu.memory_space<vmem>>, vector<64x4xf32>,
    %296 = vector.extract_strided_slice %292 {offsets = [0, 1, 0], sizes = [8, 8, 4], strides = [1, 1, 1]} : vector<8x10x4xf32> to vector<8x8x4xf32>
    %297 = vector.shape_cast %296 : vector<8x8x4xf32> to vector<64x4xf32>
    %c192_168 = arith.constant 192 : index
    %c16_169 = arith.constant 16 : index
    %298 = vector.load %arg8[%c192_168, %c16_169] : memref<256x108xf32, #tpu.memory_space<vmem>>, vector<64x4xf32>
    tpu.vector_store %arg8[%c192_168, %c16_169], %297 {strides = array<i32>} : memref<256x108xf32, #tpu.memory_space<vmem>>, vector<64x4xf32>,
    %299 = vector.extract_strided_slice %292 {offsets = [0, 2, 0], sizes = [8, 8, 4], strides = [1, 1, 1]} : vector<8x10x4xf32> to vector<8x8x4xf32>
    %300 = vector.shape_cast %299 : vector<8x8x4xf32> to vector<64x4xf32>
    %c192_170 = arith.constant 192 : index
    %c20_171 = arith.constant 20 : index
    %301 = vector.load %arg8[%c192_170, %c20_171] : memref<256x108xf32, #tpu.memory_space<vmem>>, vector<64x4xf32>
    tpu.vector_store %arg8[%c192_170, %c20_171], %300 {strides = array<i32>} : memref<256x108xf32, #tpu.memory_space<vmem>>, vector<64x4xf32>,
    %302 = vector.extract_strided_slice %7 {offsets = [2, 0, 0], sizes = [8, 10, 4], strides = [1, 1, 1]} : vector<10x10x4xf32> to vector<8x10x4xf32>
    %303 = vector.extract_strided_slice %302 {offsets = [0, 0, 0], sizes = [8, 8, 4], strides = [1, 1, 1]} : vector<8x10x4xf32> to vector<8x8x4xf32>
    %304 = vector.shape_cast %303 : vector<8x8x4xf32> to vector<64x4xf32>
    %c192_172 = arith.constant 192 : index
    %c24_173 = arith.constant 24 : index
    %305 = vector.load %arg8[%c192_172, %c24_173] : memref<256x108xf32, #tpu.memory_space<vmem>>, vector<64x4xf32>
    tpu.vector_store %arg8[%c192_172, %c24_173], %304 {strides = array<i32>} : memref<256x108xf32, #tpu.memory_space<vmem>>, vector<64x4xf32>,
    %306 = vector.extract_strided_slice %302 {offsets = [0, 1, 0], sizes = [8, 8, 4], strides = [1, 1, 1]} : vector<8x10x4xf32> to vector<8x8x4xf32>
    %307 = vector.shape_cast %306 : vector<8x8x4xf32> to vector<64x4xf32>
    %c192_174 = arith.constant 192 : index
    %c28_175 = arith.constant 28 : index
    %308 = vector.load %arg8[%c192_174, %c28_175] : memref<256x108xf32, #tpu.memory_space<vmem>>, vector<64x4xf32>
    tpu.vector_store %arg8[%c192_174, %c28_175], %307 {strides = array<i32>} : memref<256x108xf32, #tpu.memory_space<vmem>>, vector<64x4xf32>,
    %309 = vector.extract_strided_slice %302 {offsets = [0, 2, 0], sizes = [8, 8, 4], strides = [1, 1, 1]} : vector<8x10x4xf32> to vector<8x8x4xf32>
    %310 = vector.shape_cast %309 : vector<8x8x4xf32> to vector<64x4xf32>
    %c192_176 = arith.constant 192 : index
    %c32_177 = arith.constant 32 : index
    %311 = vector.load %arg8[%c192_176, %c32_177] : memref<256x108xf32, #tpu.memory_space<vmem>>, vector<64x4xf32>
    tpu.vector_store %arg8[%c192_176, %c32_177], %310 {strides = array<i32>} : memref<256x108xf32, #tpu.memory_space<vmem>>, vector<64x4xf32>,
    %312 = vector.extract_strided_slice %9 {offsets = [0, 0, 0], sizes = [8, 10, 4], strides = [1, 1, 1]} : vector<10x10x4xf32> to vector<8x10x4xf32>
    %313 = vector.extract_strided_slice %312 {offsets = [0, 0, 0], sizes = [8, 8, 4], strides = [1, 1, 1]} : vector<8x10x4xf32> to vector<8x8x4xf32>
    %314 = vector.shape_cast %313 : vector<8x8x4xf32> to vector<64x4xf32>
    %c192_178 = arith.constant 192 : index
    %c36_179 = arith.constant 36 : index
    %315 = vector.load %arg8[%c192_178, %c36_179] : memref<256x108xf32, #tpu.memory_space<vmem>>, vector<64x4xf32>
    tpu.vector_store %arg8[%c192_178, %c36_179], %314 {strides = array<i32>} : memref<256x108xf32, #tpu.memory_space<vmem>>, vector<64x4xf32>,
    %316 = vector.extract_strided_slice %312 {offsets = [0, 1, 0], sizes = [8, 8, 4], strides = [1, 1, 1]} : vector<8x10x4xf32> to vector<8x8x4xf32>
    %317 = vector.shape_cast %316 : vector<8x8x4xf32> to vector<64x4xf32>
    %c192_180 = arith.constant 192 : index
    %c40_181 = arith.constant 40 : index
    %318 = vector.load %arg8[%c192_180, %c40_181] : memref<256x108xf32, #tpu.memory_space<vmem>>, vector<64x4xf32>
    tpu.vector_store %arg8[%c192_180, %c40_181], %317 {strides = array<i32>} : memref<256x108xf32, #tpu.memory_space<vmem>>, vector<64x4xf32>,
    %319 = vector.extract_strided_slice %312 {offsets = [0, 2, 0], sizes = [8, 8, 4], strides = [1, 1, 1]} : vector<8x10x4xf32> to vector<8x8x4xf32>
    %320 = vector.shape_cast %319 : vector<8x8x4xf32> to vector<64x4xf32>
    %c192_182 = arith.constant 192 : index
    %c44_183 = arith.constant 44 : index
    %321 = vector.load %arg8[%c192_182, %c44_183] : memref<256x108xf32, #tpu.memory_space<vmem>>, vector<64x4xf32>
    tpu.vector_store %arg8[%c192_182, %c44_183], %320 {strides = array<i32>} : memref<256x108xf32, #tpu.memory_space<vmem>>, vector<64x4xf32>,
    %322 = vector.extract_strided_slice %9 {offsets = [1, 0, 0], sizes = [8, 10, 4], strides = [1, 1, 1]} : vector<10x10x4xf32> to vector<8x10x4xf32>
    %323 = vector.extract_strided_slice %322 {offsets = [0, 0, 0], sizes = [8, 8, 4], strides = [1, 1, 1]} : vector<8x10x4xf32> to vector<8x8x4xf32>
    %324 = vector.shape_cast %323 : vector<8x8x4xf32> to vector<64x4xf32>
    %c192_184 = arith.constant 192 : index
    %c48_185 = arith.constant 48 : index
    %325 = vector.load %arg8[%c192_184, %c48_185] : memref<256x108xf32, #tpu.memory_space<vmem>>, vector<64x4xf32>
    tpu.vector_store %arg8[%c192_184, %c48_185], %324 {strides = array<i32>} : memref<256x108xf32, #tpu.memory_space<vmem>>, vector<64x4xf32>,
    %326 = vector.extract_strided_slice %322 {offsets = [0, 1, 0], sizes = [8, 8, 4], strides = [1, 1, 1]} : vector<8x10x4xf32> to vector<8x8x4xf32>
    %327 = vector.shape_cast %326 : vector<8x8x4xf32> to vector<64x4xf32>
    %c192_186 = arith.constant 192 : index
    %c52_187 = arith.constant 52 : index
    %328 = vector.load %arg8[%c192_186, %c52_187] : memref<256x108xf32, #tpu.memory_space<vmem>>, vector<64x4xf32>
    tpu.vector_store %arg8[%c192_186, %c52_187], %327 {strides = array<i32>} : memref<256x108xf32, #tpu.memory_space<vmem>>, vector<64x4xf32>,
    %329 = vector.extract_strided_slice %322 {offsets = [0, 2, 0], sizes = [8, 8, 4], strides = [1, 1, 1]} : vector<8x10x4xf32> to vector<8x8x4xf32>
    %330 = vector.shape_cast %329 : vector<8x8x4xf32> to vector<64x4xf32>
    %c192_188 = arith.constant 192 : index
    %c56_189 = arith.constant 56 : index
    %331 = vector.load %arg8[%c192_188, %c56_189] : memref<256x108xf32, #tpu.memory_space<vmem>>, vector<64x4xf32>
    tpu.vector_store %arg8[%c192_188, %c56_189], %330 {strides = array<i32>} : memref<256x108xf32, #tpu.memory_space<vmem>>, vector<64x4xf32>,
    %332 = vector.extract_strided_slice %9 {offsets = [2, 0, 0], sizes = [8, 10, 4], strides = [1, 1, 1]} : vector<10x10x4xf32> to vector<8x10x4xf32>
    %333 = vector.extract_strided_slice %332 {offsets = [0, 0, 0], sizes = [8, 8, 4], strides = [1, 1, 1]} : vector<8x10x4xf32> to vector<8x8x4xf32>
    %334 = vector.shape_cast %333 : vector<8x8x4xf32> to vector<64x4xf32>
    %c192_190 = arith.constant 192 : index
    %c60_191 = arith.constant 60 : index
    %335 = vector.load %arg8[%c192_190, %c60_191] : memref<256x108xf32, #tpu.memory_space<vmem>>, vector<64x4xf32>
    tpu.vector_store %arg8[%c192_190, %c60_191], %334 {strides = array<i32>} : memref<256x108xf32, #tpu.memory_space<vmem>>, vector<64x4xf32>,
    %336 = vector.extract_strided_slice %332 {offsets = [0, 1, 0], sizes = [8, 8, 4], strides = [1, 1, 1]} : vector<8x10x4xf32> to vector<8x8x4xf32>
    %337 = vector.shape_cast %336 : vector<8x8x4xf32> to vector<64x4xf32>
    %c192_192 = arith.constant 192 : index
    %c64_193 = arith.constant 64 : index
    %338 = vector.load %arg8[%c192_192, %c64_193] : memref<256x108xf32, #tpu.memory_space<vmem>>, vector<64x4xf32>
    tpu.vector_store %arg8[%c192_192, %c64_193], %337 {strides = array<i32>} : memref<256x108xf32, #tpu.memory_space<vmem>>, vector<64x4xf32>,
    %339 = vector.extract_strided_slice %332 {offsets = [0, 2, 0], sizes = [8, 8, 4], strides = [1, 1, 1]} : vector<8x10x4xf32> to vector<8x8x4xf32>
    %340 = vector.shape_cast %339 : vector<8x8x4xf32> to vector<64x4xf32>
    %c192_194 = arith.constant 192 : index
    %c68_195 = arith.constant 68 : index
    %341 = vector.load %arg8[%c192_194, %c68_195] : memref<256x108xf32, #tpu.memory_space<vmem>>, vector<64x4xf32>
    tpu.vector_store %arg8[%c192_194, %c68_195], %340 {strides = array<i32>} : memref<256x108xf32, #tpu.memory_space<vmem>>, vector<64x4xf32>,
    %342 = vector.extract_strided_slice %11 {offsets = [0, 0, 0], sizes = [8, 10, 4], strides = [1, 1, 1]} : vector<10x10x4xf32> to vector<8x10x4xf32>
    %343 = vector.extract_strided_slice %342 {offsets = [0, 0, 0], sizes = [8, 8, 4], strides = [1, 1, 1]} : vector<8x10x4xf32> to vector<8x8x4xf32>
    %344 = vector.shape_cast %343 : vector<8x8x4xf32> to vector<64x4xf32>
    %c192_196 = arith.constant 192 : index
    %c72_197 = arith.constant 72 : index
    %345 = vector.load %arg8[%c192_196, %c72_197] : memref<256x108xf32, #tpu.memory_space<vmem>>, vector<64x4xf32>
    tpu.vector_store %arg8[%c192_196, %c72_197], %344 {strides = array<i32>} : memref<256x108xf32, #tpu.memory_space<vmem>>, vector<64x4xf32>,
    %346 = vector.extract_strided_slice %342 {offsets = [0, 1, 0], sizes = [8, 8, 4], strides = [1, 1, 1]} : vector<8x10x4xf32> to vector<8x8x4xf32>
    %347 = vector.shape_cast %346 : vector<8x8x4xf32> to vector<64x4xf32>
    %c192_198 = arith.constant 192 : index
    %c76_199 = arith.constant 76 : index
    %348 = vector.load %arg8[%c192_198, %c76_199] : memref<256x108xf32, #tpu.memory_space<vmem>>, vector<64x4xf32>
    tpu.vector_store %arg8[%c192_198, %c76_199], %347 {strides = array<i32>} : memref<256x108xf32, #tpu.memory_space<vmem>>, vector<64x4xf32>,
    %349 = vector.extract_strided_slice %342 {offsets = [0, 2, 0], sizes = [8, 8, 4], strides = [1, 1, 1]} : vector<8x10x4xf32> to vector<8x8x4xf32>
    %350 = vector.shape_cast %349 : vector<8x8x4xf32> to vector<64x4xf32>
    %c192_200 = arith.constant 192 : index
    %c80_201 = arith.constant 80 : index
    %351 = vector.load %arg8[%c192_200, %c80_201] : memref<256x108xf32, #tpu.memory_space<vmem>>, vector<64x4xf32>
    tpu.vector_store %arg8[%c192_200, %c80_201], %350 {strides = array<i32>} : memref<256x108xf32, #tpu.memory_space<vmem>>, vector<64x4xf32>,
    %352 = vector.extract_strided_slice %11 {offsets = [1, 0, 0], sizes = [8, 10, 4], strides = [1, 1, 1]} : vector<10x10x4xf32> to vector<8x10x4xf32>
    %353 = vector.extract_strided_slice %352 {offsets = [0, 0, 0], sizes = [8, 8, 4], strides = [1, 1, 1]} : vector<8x10x4xf32> to vector<8x8x4xf32>
    %354 = vector.shape_cast %353 : vector<8x8x4xf32> to vector<64x4xf32>
    %c192_202 = arith.constant 192 : index
    %c84_203 = arith.constant 84 : index
    %355 = vector.load %arg8[%c192_202, %c84_203] : memref<256x108xf32, #tpu.memory_space<vmem>>, vector<64x4xf32>
    tpu.vector_store %arg8[%c192_202, %c84_203], %354 {strides = array<i32>} : memref<256x108xf32, #tpu.memory_space<vmem>>, vector<64x4xf32>,
    %356 = vector.extract_strided_slice %352 {offsets = [0, 1, 0], sizes = [8, 8, 4], strides = [1, 1, 1]} : vector<8x10x4xf32> to vector<8x8x4xf32>
    %357 = vector.shape_cast %356 : vector<8x8x4xf32> to vector<64x4xf32>
    %c192_204 = arith.constant 192 : index
    %c88_205 = arith.constant 88 : index
    %358 = vector.load %arg8[%c192_204, %c88_205] : memref<256x108xf32, #tpu.memory_space<vmem>>, vector<64x4xf32>
    tpu.vector_store %arg8[%c192_204, %c88_205], %357 {strides = array<i32>} : memref<256x108xf32, #tpu.memory_space<vmem>>, vector<64x4xf32>,
    %359 = vector.extract_strided_slice %352 {offsets = [0, 2, 0], sizes = [8, 8, 4], strides = [1, 1, 1]} : vector<8x10x4xf32> to vector<8x8x4xf32>
    %360 = vector.shape_cast %359 : vector<8x8x4xf32> to vector<64x4xf32>
    %c192_206 = arith.constant 192 : index
    %c92_207 = arith.constant 92 : index
    %361 = vector.load %arg8[%c192_206, %c92_207] : memref<256x108xf32, #tpu.memory_space<vmem>>, vector<64x4xf32>
    tpu.vector_store %arg8[%c192_206, %c92_207], %360 {strides = array<i32>} : memref<256x108xf32, #tpu.memory_space<vmem>>, vector<64x4xf32>,
    %362 = vector.extract_strided_slice %11 {offsets = [2, 0, 0], sizes = [8, 10, 4], strides = [1, 1, 1]} : vector<10x10x4xf32> to vector<8x10x4xf32>
    %363 = vector.extract_strided_slice %362 {offsets = [0, 0, 0], sizes = [8, 8, 4], strides = [1, 1, 1]} : vector<8x10x4xf32> to vector<8x8x4xf32>
    %364 = vector.shape_cast %363 : vector<8x8x4xf32> to vector<64x4xf32>
    %c192_208 = arith.constant 192 : index
    %c96_209 = arith.constant 96 : index
    %365 = vector.load %arg8[%c192_208, %c96_209] : memref<256x108xf32, #tpu.memory_space<vmem>>, vector<64x4xf32>
    tpu.vector_store %arg8[%c192_208, %c96_209], %364 {strides = array<i32>} : memref<256x108xf32, #tpu.memory_space<vmem>>, vector<64x4xf32>,
    %366 = vector.extract_strided_slice %362 {offsets = [0, 1, 0], sizes = [8, 8, 4], strides = [1, 1, 1]} : vector<8x10x4xf32> to vector<8x8x4xf32>
    %367 = vector.shape_cast %366 : vector<8x8x4xf32> to vector<64x4xf32>
    %c192_210 = arith.constant 192 : index
    %c100_211 = arith.constant 100 : index
    %368 = vector.load %arg8[%c192_210, %c100_211] : memref<256x108xf32, #tpu.memory_space<vmem>>, vector<64x4xf32>
    tpu.vector_store %arg8[%c192_210, %c100_211], %367 {strides = array<i32>} : memref<256x108xf32, #tpu.memory_space<vmem>>, vector<64x4xf32>,
    %369 = vector.extract_strided_slice %362 {offsets = [0, 2, 0], sizes = [8, 8, 4], strides = [1, 1, 1]} : vector<8x10x4xf32> to vector<8x8x4xf32>
    %370 = vector.shape_cast %369 : vector<8x8x4xf32> to vector<64x4xf32>
    %c192_212 = arith.constant 192 : index
    %c104_213 = arith.constant 104 : index
    %371 = vector.load %arg8[%c192_212, %c104_213] : memref<256x108xf32, #tpu.memory_space<vmem>>, vector<64x4xf32>
    tpu.vector_store %arg8[%c192_212, %c104_213], %370 {strides = array<i32>} : memref<256x108xf32, #tpu.memory_space<vmem>>, vector<64x4xf32>,
    %c0_214 = arith.constant 0 : index
    %c0_215 = arith.constant 0 : index
    %372 = vector.load %arg8[%c0_214, %c0_215] : memref<256x108xf32, #tpu.memory_space<vmem>>, vector<256x108xf32>
    %c0_216 = arith.constant 0 : index
    %c0_217 = arith.constant 0 : index
    %373 = vector.load %arg5[%c0_216, %c0_217] : memref<108x64xf32, #tpu.memory_space<vmem>>, vector<108x64xf32>
    %cst = arith.constant dense<0.000000e+00> : vector<256x64xf32>
    %374 = tpu.matmul %372, %373, %cst {dimension_numbers = #tpu.dot_dimension_numbers<[1], [0], [0], [1], [0, 0, 1, 1], [], []>} : vector<256x108xf32>, vector<108x64xf32>, vector<256x64xf32> -> vector<256x64xf32>
    %c0_218 = arith.constant 0 : index
    %c0_219 = arith.constant 0 : index
    %375 = vector.load %arg6[%c0_218, %c0_219] : memref<1x64xf32, #tpu.memory_space<vmem>>, vector<1x64xf32>
    %376 = vector.broadcast %375 : vector<1x64xf32> to vector<256x64xf32>
    %377 = arith.addf %374, %376 : vector<256x64xf32>
    %378 = vector.extract_strided_slice %377 {offsets = [0, 0], sizes = [64, 64], strides = [1, 1]} : vector<256x64xf32> to vector<64x64xf32>
    %c0_220 = arith.constant 0 : index
    %c0_221 = arith.constant 0 : index
    %c0_222 = arith.constant 0 : index
    %c0_223 = arith.constant 0 : index
    %379 = vector.load %arg7[%c0_220, %c0_221, %c0_222, %c0_223] : memref<1x4x64x64xf32, #tpu.memory_space<vmem>>, vector<1x1x64x64xf32>
    %380 = vector.shape_cast %379 : vector<1x1x64x64xf32> to vector<64x64xf32>
    %381 = vector.shape_cast %378 : vector<64x64xf32> to vector<1x1x64x64xf32>
    tpu.vector_store %arg7[%c0_220, %c0_221, %c0_222, %c0_223], %381 {strides = array<i32>} : memref<1x4x64x64xf32, #tpu.memory_space<vmem>>, vector<1x1x64x64xf32>,
    %382 = vector.extract_strided_slice %377 {offsets = [64, 0], sizes = [64, 64], strides = [1, 1]} : vector<256x64xf32> to vector<64x64xf32>
    %c0_224 = arith.constant 0 : index
    %c1_225 = arith.constant 1 : index
    %c0_226 = arith.constant 0 : index
    %c0_227 = arith.constant 0 : index
    %383 = vector.load %arg7[%c0_224, %c1_225, %c0_226, %c0_227] : memref<1x4x64x64xf32, #tpu.memory_space<vmem>>, vector<1x1x64x64xf32>
    %384 = vector.shape_cast %383 : vector<1x1x64x64xf32> to vector<64x64xf32>
    %385 = vector.shape_cast %382 : vector<64x64xf32> to vector<1x1x64x64xf32>
    tpu.vector_store %arg7[%c0_224, %c1_225, %c0_226, %c0_227], %385 {strides = array<i32>} : memref<1x4x64x64xf32, #tpu.memory_space<vmem>>, vector<1x1x64x64xf32>,
    %386 = vector.extract_strided_slice %377 {offsets = [128, 0], sizes = [64, 64], strides = [1, 1]} : vector<256x64xf32> to vector<64x64xf32>
    %c0_228 = arith.constant 0 : index
    %c2_229 = arith.constant 2 : index
    %c0_230 = arith.constant 0 : index
    %c0_231 = arith.constant 0 : index
    %387 = vector.load %arg7[%c0_228, %c2_229, %c0_230, %c0_231] : memref<1x4x64x64xf32, #tpu.memory_space<vmem>>, vector<1x1x64x64xf32>
    %388 = vector.shape_cast %387 : vector<1x1x64x64xf32> to vector<64x64xf32>
    %389 = vector.shape_cast %386 : vector<64x64xf32> to vector<1x1x64x64xf32>
    tpu.vector_store %arg7[%c0_228, %c2_229, %c0_230, %c0_231], %389 {strides = array<i32>} : memref<1x4x64x64xf32, #tpu.memory_space<vmem>>, vector<1x1x64x64xf32>,
    %390 = vector.extract_strided_slice %377 {offsets = [192, 0], sizes = [64, 64], strides = [1, 1]} : vector<256x64xf32> to vector<64x64xf32>
    %c0_232 = arith.constant 0 : index
    %c3_233 = arith.constant 3 : index
    %c0_234 = arith.constant 0 : index
    %c0_235 = arith.constant 0 : index
    %391 = vector.load %arg7[%c0_232, %c3_233, %c0_234, %c0_235] : memref<1x4x64x64xf32, #tpu.memory_space<vmem>>, vector<1x1x64x64xf32>
    %392 = vector.shape_cast %391 : vector<1x1x64x64xf32> to vector<64x64xf32>
    %393 = vector.shape_cast %390 : vector<64x64xf32> to vector<1x1x64x64xf32>
    tpu.vector_store %arg7[%c0_232, %c3_233, %c0_234, %c0_235], %393 {strides = array<i32>} : memref<1x4x64x64xf32, #tpu.memory_space<vmem>>, vector<1x1x64x64xf32>,
    return
  }
  func.func @transform_0(%arg0: i32, %arg1: i32) -> (i32, i32, i32, i32, i32) {
    %c0_i32 = arith.constant 0 : i32
    %c0_i32_0 = arith.constant 0 : i32
    %c0_i32_1 = arith.constant 0 : i32
    %c0_i32_2 = arith.constant 0 : i32
    return %arg0, %arg1, %c0_i32, %c0_i32_0, %c0_i32_1 : i32, i32, i32, i32, i32
  }
  func.func @transform_1(%arg0: i32, %arg1: i32) -> (i32, i32, i32, i32, i32) {
    %c1_i32 = arith.constant 1 : i32
    %0 = arith.addi %arg1, %c1_i32 : i32
    %c0_i32 = arith.constant 0 : i32
    %c0_i32_0 = arith.constant 0 : i32
    %c0_i32_1 = arith.constant 0 : i32
    %c0_i32_2 = arith.constant 0 : i32
    return %arg0, %0, %c0_i32, %c0_i32_0, %c0_i32_1 : i32, i32, i32, i32, i32
  }
  func.func @transform_2(%arg0: i32, %arg1: i32) -> (i32, i32, i32, i32, i32) {
    %c2_i32 = arith.constant 2 : i32
    %0 = arith.addi %arg1, %c2_i32 : i32
    %c0_i32 = arith.constant 0 : i32
    %c0_i32_0 = arith.constant 0 : i32
    %c0_i32_1 = arith.constant 0 : i32
    %c0_i32_2 = arith.constant 0 : i32
    return %arg0, %0, %c0_i32, %c0_i32_0, %c0_i32_1 : i32, i32, i32, i32, i32
  }
  func.func @transform_3(%arg0: i32, %arg1: i32) -> (i32, i32) {
    %c0_i32 = arith.constant 0 : i32
    %c0_i32_0 = arith.constant 0 : i32
    %c0_i32_1 = arith.constant 0 : i32
    return %c0_i32, %c0_i32_0 : i32, i32
  }
  func.func @transform_4(%arg0: i32, %arg1: i32) -> (i32, i32) {
    %c0_i32 = arith.constant 0 : i32
    %c0_i32_0 = arith.constant 0 : i32
    %c0_i32_1 = arith.constant 0 : i32
    return %c0_i32, %c0_i32_0 : i32, i32
  }
  func.func @transform_5(%arg0: i32, %arg1: i32) -> (i32, i32, i32, i32) {
    %c0_i32 = arith.constant 0 : i32
    %c0_i32_0 = arith.constant 0 : i32
    %c0_i32_1 = arith.constant 0 : i32
    return %arg0, %arg1, %c0_i32, %c0_i32_0 : i32, i32, i32, i32
  }
}

</mosaic_0001>

<llo_original>
// kernel: tile.8
$region0: #{tile.8}
  #allocation2 [shape = 's32[1]{0}', space=sflag, size = 0x4, scoped, tag = 'scoped memory for tile.8']
  %s0 = inlined_call_operand.hbm [shape: f32[8], index: 0, kind: input, shape index: {}]
  %s1 = inlined_call_operand.vmem [shape: f32[8,8], index: 1, kind: output, shape index: {}]
  $region1: #{tile.8} parent=0
    #allocation0 [shape = 'u8[512]{0}', space=vmem, size = 0x400, scoped, tag = 'operand span for operand 0']
    #allocation1 [shape = 's32[1]{0}', space=sflag, size = 0x4, scoped, tag = 'scoped memory for tile.8']
    %2 = vsyncpa [#allocation1], 0
    // Predicated region
    $region2: #{tile.8} parent=1 // pred_check
      _
    $region3: #{tile.8} parent=1 // pred_check_branch
      %4 = sbr.rel (0) target = $region5
    $region4: #{tile.8} parent=1 // pred_region
      %s6 = ssub.s32 16, 16
      %7 = vsyncadd [#allocation1], %s6
      %s9 = sshll.u32 [#allocation0], 4
      %s10 = int_to_ptr.vmem [resolvable:$true] %s9
      %12 = dma.hbm_to_vmem [thread:$0]  %s0, 16, %s10, [#allocation1]
    $region5: #{tile.8} parent=1 // pred_fallthru
      _
    // Predicated region
    $region6: #{tile.8} parent=1 // pred_check
      _
    $region7: #{tile.8} parent=1 // pred_check_branch
      %14 = sbr.rel (0) target = $region9
    $region8: #{tile.8} parent=1 // pred_region
      %15 = dma.done [#allocation1], 16
    $region9: #{tile.8} parent=1 // pred_fallthru
      _
    %v16 = vld [vmem:[#allocation0] ss:$0 sm:$0xff]
    %17 = vst [vmem:[%s1] sm:$0xff] %v16
    %18 = vsyncpa [#allocation1], 1

// kernel: tile.9
$region0: #{tile.9}
  %s0 = inlined_call_operand.vmem [shape: f32[8,8], index: 0, kind: input, shape index: {}]
  %s1 = inlined_call_operand.vmem [shape: f32[1,64], index: 1, kind: output, shape index: {}]
  $region1: #{tile.9} parent=0
    #allocation0 [shape = 'u8[4096]{0}', space=vmem, size = 0x1000, scoped, tag = 'scoped mem for output reshape']
    %v2 = vld [vmem:[%s0] sm:$0x1]
    %vm3 = vcmask 64512
    %4 = vst.msk [vmem:[#allocation0] sm:$0x1] %vm3, %v2
    %s5 = scalar_lea.vmem %s0, 7
    %v6 = vld [vmem:[%s5] sm:$0x1]
    %7 = vrot.lane.b32.xlu0 %v6, 56
    %v8 = vpop.permute.xlu0 %7
    %vm9 = vcmask 523712
    %10 = vst.msk [vmem:[#allocation0] sm:$0x1] %vm9, %v8
    %s11 = scalar_lea.vmem %s0, 6
    %v12 = vld [vmem:[%s11] sm:$0x1]
    %13 = vrot.lane.b32.xlu0 %v12, 48
    %v14 = vpop.permute.xlu0 %13
    %vm15 = vcmask 458112
    %16 = vst.msk [vmem:[#allocation0] sm:$0x1] %vm15, %v14
    %s17 = scalar_lea.vmem %s0, 5
    %v18 = vld [vmem:[%s17] sm:$0x1]
    %19 = vrot.lane.b32.xlu0 %v18, 40
    %v20 = vpop.permute.xlu0 %19
    %vm21 = vcmask 392512
    %22 = vst.msk [vmem:[#allocation0] sm:$0x1] %vm21, %v20
    %s23 = scalar_lea.vmem %s0, 4
    %v24 = vld [vmem:[%s23] sm:$0x1]
    %25 = vrot.lane.b32.xlu0 %v24, 32
    %v26 = vpop.permute.xlu0 %25
    %vm27 = vcmask 326912
    %28 = vst.msk [vmem:[#allocation0] sm:$0x1] %vm27, %v26
    %s29 = scalar_lea.vmem %s0, 3
    %v30 = vld [vmem:[%s29] sm:$0x1]
    %31 = vrot.lane.b32.xlu0 %v30, 24
    %v32 = vpop.permute.xlu0 %31
    %vm33 = vcmask 261312
    %34 = vst.msk [vmem:[#allocation0] sm:$0x1] %vm33, %v32
    %s35 = scalar_lea.vmem %s0, 2
    %v36 = vld [vmem:[%s35] sm:$0x1]
    %37 = vrot.lane.b32.xlu0 %v36, 16
    %v38 = vpop.permute.xlu0 %37
    %vm39 = vcmask 195712
    %40 = vst.msk [vmem:[#allocation0] sm:$0x1] %vm39, %v38
    %s41 = scalar_lea.vmem %s0, 1
    %v42 = vld [vmem:[%s41] sm:$0x1]
    %43 = vrot.lane.b32.xlu0 %v42, 8
    %v44 = vpop.permute.xlu0 %43
    %vm45 = vcmask 130112
    %46 = vst.msk [vmem:[#allocation0] sm:$0x1] %vm45, %v44
    %s48 = sshllo.u32 0, 1
    %v50 = vld [vmem:[#allocation0] sm:%s48]
    %s51 = sshllo.u32 0, 1
    %52 = vst [vmem:[%s1] sm:%s51] %v50

// kernel: upsample_forward.1
$region0: #{upsample_forward.1}
  #allocation0 [shape = 'u32[]', space=smem, size = 0x4, offset = 0x4, fixed_abs, tag = 'smem constant byte address 0x4 - core index']
  #allocation1 [shape = 'u32[144,128]{1,0:T(1,128)}', space=vmem, size = 0x12000, scoped, tag = 'internal scratch']
  #allocation2 [shape = 'f32[256,108]{1,0:T(8,128)}', space=vmem, size = 0x20000, scoped, tag = 'scratch operand']
  %s0 = inlined_call_operand.vmem [shape: f32[2,16,10,10,4], index: 0, kind: input, shape index: {}, may-alias: {0,1,2}]
  %s1 = inlined_call_operand.vmem [shape: f32[2,16,10,10,4], index: 1, kind: input, shape index: {}, may-alias: {0,1,2}]
  %s2 = inlined_call_operand.vmem [shape: f32[2,16,10,10,4], index: 2, kind: input, shape index: {}, may-alias: {0,1,2}]
  %s3 = inlined_call_operand.vmem [shape: f32[108,64], index: 3, kind: input, shape index: {}]
  %s4 = inlined_call_operand.vmem [shape: f32[1,64], index: 4, kind: input, shape index: {}]
  %s5 = inlined_call_operand.vmem [shape: f32[2,8,64,64], index: 5, kind: output, shape index: {}]
  %s6 = sld [smem:[#allocation0]]
  $region53: #{upsample_forward.1} parent=0
    _
  %s8 = ssub.s32 1, %s6
  %s9 = scalar_select 0, %s8, %s6
  loop: start=0, step=1, limit=6
  $region2: #{upsample_forward.1} parent=0 // loop_pre_header
    _
  $region3: #{upsample_forward.1} parent=0 // loop_header
    %s11 = sphi 0, %s15
    %p12 = scmp.ge.s32.totalorder %s11, 6
    %s18 = sphi 0, %s30
    %s19 = sphi 0, %s26
    %s20 = sphi 0, %s18
    %s21 = sphi 0, %s19
    %s22 = sphi 0, %s20
    %s23 = sphi 0, %s21
    %s35 = sphi 0, %s37
    %s38 = sphi 0, %s35
    %s39 = sphi 0, %s38
    %s55 = sphi 0, %s39
    %s65 = sphi 0, %s67
    %s68 = sphi 0, %s65
    %s69 = sphi 0, %s68
    %s85 = sphi 0, %s69
    %s95 = sphi 0, %s97
    %s98 = sphi 0, %s95
    %s99 = sphi 0, %s98
    %s115 = sphi 0, %s99
    %s119 = sphi 0, %s119
    %s121 = sphi 0, %s119
    %s122 = sphi 0, %s121
    %s136 = sphi 0, %s122
    %s140 = sphi 0, %s140
    %s142 = sphi 0, %s140
    %s143 = sphi 0, %s142
    %s157 = sphi 0, %s143
    %s165 = sphi 0, %s167
    %s168 = sphi 0, %s165
    %s169 = sphi 0, %s168
    %s185 = sphi 0, %s169
  $region4: #{upsample_forward.1} parent=0 // loop_header_branch
    %14 = sbr.rel (%p12) target = $region8
  $region5: #{upsample_forward.1} parent=0 // loop_body
    %s16 = ssub.s32 %s11, 1
    %s17 = ssub.s32 %s11, 2
    %s24 = sadd.s32 1, %s19
    %p25 = scmp.ge.s32.totalorder %s24, 2
    %s26 = scalar_select %p25, 0, %s24
    %s27 = sadd.s32 1, %s18
    %s28 = scalar_select %p25, %s27, %s18
    %p29 = scmp.ge.s32.totalorder %s28, 2
    %s30 = scalar_select %p29, 0, %s28
    %s31 = ssub.s32 %s18, %s30
    %s32 = ssub.s32 %s19, %s26
    %s33 = sor.u32 %s31, %s32
    %p34 = scmp.eq.s32.totalorder %s33, 0
    %s36 = sadd.s32 %s35, 1
    %s37 = scalar_select %p34, %s35, %s36
    %p40 = pneg %p34
    %p41 = scmp.eq.s32.totalorder %s11, 3
    %p42 = por %p40, %p41
    %p43 = scmp.ne.s32.totalorder %s35, %s38
    %p44 = scmp.eq.s32.totalorder %s11, 0
    %p45 = por %p43, %p44
    %p46 = scmp.ne.s32.totalorder %s35, %s38
    %p47 = scmp.eq.s32.totalorder %s16, 3
    %p48 = por %p46, %p47
    %p49 = scmp.ne.s32.totalorder %s38, %s39
    %p50 = scmp.eq.s32.totalorder %s16, 0
    %p51 = por %p49, %p50
    %p52 = scmp.ne.s32.totalorder %s38, %s39
    %p53 = scmp.eq.s32.totalorder %s17, 3
    %p54 = por %p52, %p53
    %p56 = scmp.ne.s32.totalorder %s39, %s55
    %p57 = scmp.eq.s32.totalorder %s17, 0
    %p58 = por %p56, %p57
    %s59 = sadd.s32 %s19, 1
    %s60 = sadd.s32 %s26, 1
    %s61 = ssub.s32 %s18, %s30
    %s62 = ssub.s32 %s59, %s60
    %s63 = sor.u32 %s61, %s62
    %p64 = scmp.eq.s32.totalorder %s63, 0
    %s66 = sadd.s32 %s65, 1
    %s67 = scalar_select %p64, %s65, %s66
    %p70 = pneg %p64
    %p71 = scmp.eq.s32.totalorder %s11, 3
    %p72 = por %p70, %p71
    %p73 = scmp.ne.s32.totalorder %s65, %s68
    %p74 = scmp.eq.s32.totalorder %s11, 0
    %p75 = por %p73, %p74
    %p76 = scmp.ne.s32.totalorder %s65, %s68
    %p77 = scmp.eq.s32.totalorder %s16, 3
    %p78 = por %p76, %p77
    %p79 = scmp.ne.s32.totalorder %s68, %s69
    %p80 = scmp.eq.s32.totalorder %s16, 0
    %p81 = por %p79, %p80
    %p82 = scmp.ne.s32.totalorder %s68, %s69
    %p83 = scmp.eq.s32.totalorder %s17, 3
    %p84 = por %p82, %p83
    %p86 = scmp.ne.s32.totalorder %s69, %s85
    %p87 = scmp.eq.s32.totalorder %s17, 0
    %p88 = por %p86, %p87
    %s89 = sadd.s32 %s19, 2
    %s90 = sadd.s32 %s26, 2
    %s91 = ssub.s32 %s18, %s30
    %s92 = ssub.s32 %s89, %s90
    %s93 = sor.u32 %s91, %s92
    %p94 = scmp.eq.s32.totalorder %s93, 0
    %s96 = sadd.s32 %s95, 1
    %s97 = scalar_select %p94, %s95, %s96
    %p100 = pneg %p94
    %p101 = scmp.eq.s32.totalorder %s11, 3
    %p102 = por %p100, %p101
    %p103 = scmp.ne.s32.totalorder %s95, %s98
    %p104 = scmp.eq.s32.totalorder %s11, 0
    %p105 = por %p103, %p104
    %p106 = scmp.ne.s32.totalorder %s95, %s98
    %p107 = scmp.eq.s32.totalorder %s16, 3
    %p108 = por %p106, %p107
    %p109 = scmp.ne.s32.totalorder %s98, %s99
    %p110 = scmp.eq.s32.totalorder %s16, 0
    %p111 = por %p109, %p110
    %p112 = scmp.ne.s32.totalorder %s98, %s99
    %p113 = scmp.eq.s32.totalorder %s17, 3
    %p114 = por %p112, %p113
    %p116 = scmp.ne.s32.totalorder %s99, %s115
    %p117 = scmp.eq.s32.totalorder %s17, 0
    %p118 = por %p116, %p117
    %s120 = sadd.s32 %s119, 1
    %p123 = scmp.eq.s32.totalorder %s11, 3
    %p124 = scmp.ne.s32.totalorder %s119, %s121
    %p125 = scmp.eq.s32.totalorder %s11, 0
    %p126 = por %p124, %p125
    %p127 = scmp.ne.s32.totalorder %s119, %s121
    %p128 = scmp.eq.s32.totalorder %s16, 3
    %p129 = por %p127, %p128
    %p130 = scmp.ne.s32.totalorder %s121, %s122
    %p131 = scmp.eq.s32.totalorder %s16, 0
    %p132 = por %p130, %p131
    %p133 = scmp.ne.s32.totalorder %s121, %s122
    %p134 = scmp.eq.s32.totalorder %s17, 3
    %p135 = por %p133, %p134
    %p137 = scmp.ne.s32.totalorder %s122, %s136
    %p138 = scmp.eq.s32.totalorder %s17, 0
    %p139 = por %p137, %p138
    %s141 = sadd.s32 %s140, 1
    %p144 = scmp.eq.s32.totalorder %s11, 3
    %p145 = scmp.ne.s32.totalorder %s140, %s142
    %p146 = scmp.eq.s32.totalorder %s11, 0
    %p147 = por %p145, %p146
    %p148 = scmp.ne.s32.totalorder %s140, %s142
    %p149 = scmp.eq.s32.totalorder %s16, 3
    %p150 = por %p148, %p149
    %p151 = scmp.ne.s32.totalorder %s142, %s143
    %p152 = scmp.eq.s32.totalorder %s16, 0
    %p153 = por %p151, %p152
    %p154 = scmp.ne.s32.totalorder %s142, %s143
    %p155 = scmp.eq.s32.totalorder %s17, 3
    %p156 = por %p154, %p155
    %p158 = scmp.ne.s32.totalorder %s143, %s157
    %p159 = scmp.eq.s32.totalorder %s17, 0
    %p160 = por %p158, %p159
    %s161 = ssub.s32 %s18, %s30
    %s162 = ssub.s32 %s19, %s26
    %s163 = sor.u32 %s161, %s162
    %p164 = scmp.eq.s32.totalorder %s163, 0
    %s166 = sadd.s32 %s165, 1
    %s167 = scalar_select %p164, %s165, %s166
    %p170 = pneg %p164
    %p171 = scmp.eq.s32.totalorder %s11, 3
    %p172 = por %p170, %p171
    %p173 = scmp.ne.s32.totalorder %s165, %s168
    %p174 = scmp.eq.s32.totalorder %s11, 0
    %p175 = por %p173, %p174
    %p176 = scmp.ne.s32.totalorder %s165, %s168
    %p177 = scmp.eq.s32.totalorder %s16, 3
    %p178 = por %p176, %p177
    %p179 = scmp.ne.s32.totalorder %s168, %s169
    %p180 = scmp.eq.s32.totalorder %s16, 0
    %p181 = por %p179, %p180
    %p182 = scmp.ne.s32.totalorder %s168, %s169
    %p183 = scmp.eq.s32.totalorder %s17, 3
    %p184 = por %p182, %p183
    %p186 = scmp.ne.s32.totalorder %s169, %s185
    %p187 = scmp.eq.s32.totalorder %s17, 0
    %p188 = por %p186, %p187
    %p189 = scmp.le.s32.totalorder 1, %s11
    %p190 = scmp.lt.s32.totalorder %s11, 5
    %p191 = pnand %p189, %p190
    %p192 = pneg %p191
    // Predicated region
    $region9: #{upsample_forward.1} parent=5 // pred_check
      _
    $region10: #{upsample_forward.1} parent=5 // pred_check_branch
      %194 = sbr.rel (%p191) target = $region12
    $region11: #{upsample_forward.1} parent=5 // pred_region
      %s195 = ssub.s32 %s11, 1
      // Predicated region
      $region13: #{upsample_forward.1} parent=11 // pred_check
        %p196 = pneg %p132
      $region14: #{upsample_forward.1} parent=11 // pred_check_branch
        %198 = sbr.rel (%p196) target = $region16
      $region15: #{upsample_forward.1} parent=11 // pred_region
        _
      $region16: #{upsample_forward.1} parent=11 // pred_fallthru
        _
      // Predicated region
      $region17: #{upsample_forward.1} parent=11 // pred_check
        %p199 = pneg %p153
      $region18: #{upsample_forward.1} parent=11 // pred_check_branch
        %201 = sbr.rel (%p199) target = $region20
      $region19: #{upsample_forward.1} parent=11 // pred_region
        _
      $region20: #{upsample_forward.1} parent=11 // pred_fallthru
        _
    $region12: #{upsample_forward.1} parent=5 // pred_fallthru
      _
    %p202 = scmp.lt.s32.totalorder %s11, 4
    // Predicated region
    $region21: #{upsample_forward.1} parent=5 // pred_check
      %p203 = pneg %p202
    $region22: #{upsample_forward.1} parent=5 // pred_check_branch
      %205 = sbr.rel (%p203) target = $region24
    $region23: #{upsample_forward.1} parent=5 // pred_region
      // Predicated region
      $region25: #{upsample_forward.1} parent=23 // pred_check
        %p206 = pneg %p45
      $region26: #{upsample_forward.1} parent=23 // pred_check_branch
        %208 = sbr.rel (%p206) target = $region28
      $region27: #{upsample_forward.1} parent=23 // pred_region
        %s209 = smul.u32 4, %s19
        %p210 = scmp.lt.s32.totalorder %s18, 1
        %s211 = scalar_select %p210, %s18, 1
        %p212 = scmp.lt.s32.totalorder %s209, 15
        %s213 = scalar_select %p212, %s209, 15
        %s214 = smul.addr %s213, 20
        %s215 = smul.addr %s211, 320
        %s216 = sadd.s32 %s214, %s215
        %s217 = smul.addr %s216, 8
        %s218 = scalar_lea.vmem %s0, %s217
        %s219 = smul.u32 4, %s19
      $region28: #{upsample_forward.1} parent=23 // pred_fallthru
        _
      // Predicated region
      $region29: #{upsample_forward.1} parent=23 // pred_check
        %p220 = pneg %p75
      $region30: #{upsample_forward.1} parent=23 // pred_check_branch
        %222 = sbr.rel (%p220) target = $region32
      $region31: #{upsample_forward.1} parent=23 // pred_region
        %s223 = sadd.s32 %s19, 1
        %s224 = smul.u32 4, %s223
        %p225 = scmp.lt.s32.totalorder %s18, 1
        %s226 = scalar_select %p225, %s18, 1
        %p227 = scmp.lt.s32.totalorder %s224, 15
        %s228 = scalar_select %p227, %s224, 15
        %s229 = smul.addr %s228, 20
        %s230 = smul.addr %s226, 320
        %s231 = sadd.s32 %s229, %s230
        %s232 = smul.addr %s231, 8
        %s233 = scalar_lea.vmem %s1, %s232
        %s234 = sadd.s32 %s19, 1
        %s235 = smul.u32 4, %s234
      $region32: #{upsample_forward.1} parent=23 // pred_fallthru
        _
      // Predicated region
      $region33: #{upsample_forward.1} parent=23 // pred_check
        %p236 = pneg %p105
      $region34: #{upsample_forward.1} parent=23 // pred_check_branch
        %238 = sbr.rel (%p236) target = $region36
      $region35: #{upsample_forward.1} parent=23 // pred_region
        %s239 = sadd.s32 %s19, 2
        %s240 = smul.u32 4, %s239
        %p241 = scmp.lt.s32.totalorder %s18, 1
        %s242 = scalar_select %p241, %s18, 1
        %p243 = scmp.lt.s32.totalorder %s240, 15
        %s244 = scalar_select %p243, %s240, 15
        %s245 = smul.addr %s244, 20
        %s246 = smul.addr %s242, 320
        %s247 = sadd.s32 %s245, %s246
        %s248 = smul.addr %s247, 8
        %s249 = scalar_lea.vmem %s2, %s248
        %s250 = sadd.s32 %s19, 2
        %s251 = smul.u32 4, %s250
      $region36: #{upsample_forward.1} parent=23 // pred_fallthru
        _
    $region24: #{upsample_forward.1} parent=5 // pred_fallthru
      _
    %p252 = scmp.le.s32.totalorder 1, %s11
    %p253 = scmp.lt.s32.totalorder %s11, 5
    %p254 = pnand %p252, %p253
    %p255 = pneg %p254
    // Predicated region
    $region37: #{upsample_forward.1} parent=5 // pred_check
      _
    $region38: #{upsample_forward.1} parent=5 // pred_check_branch
      %257 = sbr.rel (%p254) target = $region40
    $region39: #{upsample_forward.1} parent=5 // pred_region
      %s258 = ssub.s32 %s11, 1
      %s259 = smul.u32 4, %s21
      %p260 = scmp.lt.s32.totalorder %s20, 1
      %s261 = scalar_select %p260, %s20, 1
      %p262 = scmp.lt.s32.totalorder %s259, 15
      %s263 = scalar_select %p262, %s259, 15
      %s264 = smul.addr %s263, 20
      %s265 = smul.addr %s261, 320
      %s266 = sadd.s32 %s264, %s265
      %s267 = smul.addr %s266, 8
      %s268 = scalar_lea.vmem %s0, %s267
      %p269 = pneg %p51
      %p270 = pneg %p48
      %s271 = sadd.s32 %s21, 1
      %s272 = smul.u32 4, %s271
      %p273 = scmp.lt.s32.totalorder %s20, 1
      %s274 = scalar_select %p273, %s20, 1
      %p275 = scmp.lt.s32.totalorder %s272, 15
      %s276 = scalar_select %p275, %s272, 15
      %s277 = smul.addr %s276, 20
      %s278 = smul.addr %s274, 320
      %s279 = sadd.s32 %s277, %s278
      %s280 = smul.addr %s279, 8
      %s281 = scalar_lea.vmem %s1, %s280
      %p282 = pneg %p81
      %p283 = pneg %p78
      %s284 = sadd.s32 %s21, 2
      %s285 = smul.u32 4, %s284
      %p286 = scmp.lt.s32.totalorder %s20, 1
      %s287 = scalar_select %p286, %s20, 1
      %p288 = scmp.lt.s32.totalorder %s285, 15
      %s289 = scalar_select %p288, %s285, 15
      %s290 = smul.addr %s289, 20
      %s291 = smul.addr %s287, 320
      %s292 = sadd.s32 %s290, %s291
      %s293 = smul.addr %s292, 8
      %s294 = scalar_lea.vmem %s2, %s293
      %p295 = pneg %p111
      %p296 = pneg %p108
      %p297 = pneg %p132
      %p298 = pneg %p129
      %p299 = pneg %p153
      %p300 = pneg %p150
      %p301 = pneg %p181
      %p302 = pneg %p178
      %s303 = smul.u32 4, %s21
      %p304 = scmp.lt.s32.totalorder %s20, 1
      %s305 = scalar_select %p304, %s20, 1
      %p306 = scmp.lt.s32.totalorder %s303, 7
      %s307 = scalar_select %p306, %s303, 7
      %s308 = smul.addr %s307, 8
      %s309 = smul.addr %s305, 64
      %s310 = sadd.s32 %s308, %s309
      %s311 = smul.addr %s310, 8
      %s312 = scalar_lea.vmem %s5, %s311
      %s313 = smul.u32 4, %s21
      %p314 = scmp.lt.s32.totalorder %s20, 1
      %s315 = scalar_select %p314, %s20, 1
      %p316 = scmp.lt.s32.totalorder %s313, 15
      %s317 = scalar_select %p316, %s313, 15
      %s318 = smul.addr %s317, 20
      %s319 = smul.addr %s315, 320
      %s320 = sadd.s32 %s318, %s319
      %s321 = smul.addr %s320, 8
      %s322 = scalar_lea.vmem %s0, %s321
      %s323 = smul.u32 4, %s21
      %s324 = sadd.s32 %s21, 1
      %s325 = smul.u32 4, %s324
      %p326 = scmp.lt.s32.totalorder %s20, 1
      %s327 = scalar_select %p326, %s20, 1
      %p328 = scmp.lt.s32.totalorder %s325, 15
      %s329 = scalar_select %p328, %s325, 15
      %s330 = smul.addr %s329, 20
      %s331 = smul.addr %s327, 320
      %s332 = sadd.s32 %s330, %s331
      %s333 = smul.addr %s332, 8
      %s334 = scalar_lea.vmem %s1, %s333
      %s335 = sadd.s32 %s21, 1
      %s336 = smul.u32 4, %s335
      %s337 = sadd.s32 %s21, 2
      %s338 = smul.u32 4, %s337
      %p339 = scmp.lt.s32.totalorder %s20, 1
      %s340 = scalar_select %p339, %s20, 1
      %p341 = scmp.lt.s32.totalorder %s338, 15
      %s342 = scalar_select %p341, %s338, 15
      %s343 = smul.addr %s342, 20
      %s344 = smul.addr %s340, 320
      %s345 = sadd.s32 %s343, %s344
      %s346 = smul.addr %s345, 8
      %s347 = scalar_lea.vmem %s2, %s346
      %s348 = sadd.s32 %s21, 2
      %s349 = smul.u32 4, %s348
      %s350 = smul.u32 4, %s21
      %p351 = scmp.lt.s32.totalorder %s20, 1
      %s352 = scalar_select %p351, %s20, 1
      %p353 = scmp.lt.s32.totalorder %s350, 7
      %s354 = scalar_select %p353, %s350, 7
      %s355 = smul.addr %s354, 8
      %s356 = smul.addr %s352, 64
      %s357 = sadd.s32 %s355, %s356
      %s358 = smul.addr %s357, 8
      %s359 = scalar_lea.vmem %s5, %s358
      %s360 = smul.u32 4, %s21
      %v361 = vld [vmem:[%s322] sm:$0xff]
      %v362 = vld [vmem:[%s322 + $0x8] sm:$0x3]
      %v363 = vld [vmem:[%s322 + $0x10] sm:$0xff]
      %v364 = vld [vmem:[%s322 + $0x18] sm:$0x3]
      %v365 = vld [vmem:[%s322 + $0x20] sm:$0xff]
      %v366 = vld [vmem:[%s322 + $0x28] sm:$0x3]
      %v367 = vld [vmem:[%s322 + $0x30] sm:$0xff]
      %v368 = vld [vmem:[%s322 + $0x38] sm:$0x3]
      %v369 = vld [vmem:[%s322 + $0x40] sm:$0xff]
      %v370 = vld [vmem:[%s322 + $0x48] sm:$0x3]
      %v371 = vld [vmem:[%s322 + $0x50] sm:$0xff]
      %v372 = vld [vmem:[%s322 + $0x58] sm:$0x3]
      %v373 = vld [vmem:[%s322 + $0x60] sm:$0xff]
      %v374 = vld [vmem:[%s322 + $0x68] sm:$0x3]
      %v375 = vld [vmem:[%s322 + $0x70] sm:$0xff]
      %v376 = vld [vmem:[%s322 + $0x78] sm:$0x3]
      %v377 = vld [vmem:[%s322 + $0x80] sm:$0xff]
      %v378 = vld [vmem:[%s322 + $0x88] sm:$0x3]
      %v379 = vld [vmem:[%s322 + $0x90] sm:$0xff]
      %v380 = vld [vmem:[%s322 + $0x98] sm:$0x3]
      %s381 = scalar_lea.vmem %s322, 160
      %v382 = vld [vmem:[%s381] sm:$0xff]
      %v383 = vld [vmem:[%s381 + $0x8] sm:$0x3]
      %v384 = vld [vmem:[%s381 + $0x10] sm:$0xff]
      %v385 = vld [vmem:[%s381 + $0x18] sm:$0x3]
      %v386 = vld [vmem:[%s381 + $0x20] sm:$0xff]
      %v387 = vld [vmem:[%s381 + $0x28] sm:$0x3]
      %v388 = vld [vmem:[%s381 + $0x30] sm:$0xff]
      %v389 = vld [vmem:[%s381 + $0x38] sm:$0x3]
      %v390 = vld [vmem:[%s381 + $0x40] sm:$0xff]
      %v391 = vld [vmem:[%s381 + $0x48] sm:$0x3]
      %v392 = vld [vmem:[%s381 + $0x50] sm:$0xff]
      %v393 = vld [vmem:[%s381 + $0x58] sm:$0x3]
      %v394 = vld [vmem:[%s381 + $0x60] sm:$0xff]
      %v395 = vld [vmem:[%s381 + $0x68] sm:$0x3]
      %v396 = vld [vmem:[%s381 + $0x70] sm:$0xff]
      %v397 = vld [vmem:[%s381 + $0x78] sm:$0x3]
      %v398 = vld [vmem:[%s381 + $0x80] sm:$0xff]
      %v399 = vld [vmem:[%s381 + $0x88] sm:$0x3]
      %v400 = vld [vmem:[%s381 + $0x90] sm:$0xff]
      %v401 = vld [vmem:[%s381 + $0x98] sm:$0x3]
      %s402 = scalar_lea.vmem %s322, 320
      %v403 = vld [vmem:[%s402] sm:$0xff]
      %v404 = vld [vmem:[%s402 + $0x8] sm:$0x3]
      %v405 = vld [vmem:[%s402 + $0x10] sm:$0xff]
      %v406 = vld [vmem:[%s402 + $0x18] sm:$0x3]
      %v407 = vld [vmem:[%s402 + $0x20] sm:$0xff]
      %v408 = vld [vmem:[%s402 + $0x28] sm:$0x3]
      %v409 = vld [vmem:[%s402 + $0x30] sm:$0xff]
      %v410 = vld [vmem:[%s402 + $0x38] sm:$0x3]
      %v411 = vld [vmem:[%s402 + $0x40] sm:$0xff]
      %v412 = vld [vmem:[%s402 + $0x48] sm:$0x3]
      %v413 = vld [vmem:[%s402 + $0x50] sm:$0xff]
      %v414 = vld [vmem:[%s402 + $0x58] sm:$0x3]
      %v415 = vld [vmem:[%s402 + $0x60] sm:$0xff]
      %v416 = vld [vmem:[%s402 + $0x68] sm:$0x3]
      %v417 = vld [vmem:[%s402 + $0x70] sm:$0xff]
      %v418 = vld [vmem:[%s402 + $0x78] sm:$0x3]
      %v419 = vld [vmem:[%s402 + $0x80] sm:$0xff]
      %v420 = vld [vmem:[%s402 + $0x88] sm:$0x3]
      %v421 = vld [vmem:[%s402 + $0x90] sm:$0xff]
      %v422 = vld [vmem:[%s402 + $0x98] sm:$0x3]
      %s423 = scalar_lea.vmem %s322, 480
      %v424 = vld [vmem:[%s423] sm:$0xff]
      %v425 = vld [vmem:[%s423 + $0x8] sm:$0x3]
      %v426 = vld [vmem:[%s423 + $0x10] sm:$0xff]
      %v427 = vld [vmem:[%s423 + $0x18] sm:$0x3]
      %v428 = vld [vmem:[%s423 + $0x20] sm:$0xff]
      %v429 = vld [vmem:[%s423 + $0x28] sm:$0x3]
      %v430 = vld [vmem:[%s423 + $0x30] sm:$0xff]
      %v431 = vld [vmem:[%s423 + $0x38] sm:$0x3]
      %v432 = vld [vmem:[%s423 + $0x40] sm:$0xff]
      %v433 = vld [vmem:[%s423 + $0x48] sm:$0x3]
      %v434 = vld [vmem:[%s423 + $0x50] sm:$0xff]
      %v435 = vld [vmem:[%s423 + $0x58] sm:$0x3]
      %v436 = vld [vmem:[%s423 + $0x60] sm:$0xff]
      %v437 = vld [vmem:[%s423 + $0x68] sm:$0x3]
      %v438 = vld [vmem:[%s423 + $0x70] sm:$0xff]
      %v439 = vld [vmem:[%s423 + $0x78] sm:$0x3]
      %v440 = vld [vmem:[%s423 + $0x80] sm:$0xff]
      %v441 = vld [vmem:[%s423 + $0x88] sm:$0x3]
      %v442 = vld [vmem:[%s423 + $0x90] sm:$0xff]
      %v443 = vld [vmem:[%s423 + $0x98] sm:$0x3]
      %v444 = vld [vmem:[%s334] sm:$0xff]
      %v445 = vld [vmem:[%s334 + $0x8] sm:$0x3]
      %v446 = vld [vmem:[%s334 + $0x10] sm:$0xff]
      %v447 = vld [vmem:[%s334 + $0x18] sm:$0x3]
      %v448 = vld [vmem:[%s334 + $0x20] sm:$0xff]
      %v449 = vld [vmem:[%s334 + $0x28] sm:$0x3]
      %v450 = vld [vmem:[%s334 + $0x30] sm:$0xff]
      %v451 = vld [vmem:[%s334 + $0x38] sm:$0x3]
      %v452 = vld [vmem:[%s334 + $0x40] sm:$0xff]
      %v453 = vld [vmem:[%s334 + $0x48] sm:$0x3]
      %v454 = vld [vmem:[%s334 + $0x50] sm:$0xff]
      %v455 = vld [vmem:[%s334 + $0x58] sm:$0x3]
      %v456 = vld [vmem:[%s334 + $0x60] sm:$0xff]
      %v457 = vld [vmem:[%s334 + $0x68] sm:$0x3]
      %v458 = vld [vmem:[%s334 + $0x70] sm:$0xff]
      %v459 = vld [vmem:[%s334 + $0x78] sm:$0x3]
      %v460 = vld [vmem:[%s334 + $0x80] sm:$0xff]
      %v461 = vld [vmem:[%s334 + $0x88] sm:$0x3]
      %v462 = vld [vmem:[%s334 + $0x90] sm:$0xff]
      %v463 = vld [vmem:[%s334 + $0x98] sm:$0x3]
      %s464 = scalar_lea.vmem %s334, 160
      %v465 = vld [vmem:[%s464] sm:$0xff]
      %v466 = vld [vmem:[%s464 + $0x8] sm:$0x3]
      %v467 = vld [vmem:[%s464 + $0x10] sm:$0xff]
      %v468 = vld [vmem:[%s464 + $0x18] sm:$0x3]
      %v469 = vld [vmem:[%s464 + $0x20] sm:$0xff]
      %v470 = vld [vmem:[%s464 + $0x28] sm:$0x3]
      %v471 = vld [vmem:[%s464 + $0x30] sm:$0xff]
      %v472 = vld [vmem:[%s464 + $0x38] sm:$0x3]
      %v473 = vld [vmem:[%s464 + $0x40] sm:$0xff]
      %v474 = vld [vmem:[%s464 + $0x48] sm:$0x3]
      %v475 = vld [vmem:[%s464 + $0x50] sm:$0xff]
      %v476 = vld [vmem:[%s464 + $0x58] sm:$0x3]
      %v477 = vld [vmem:[%s464 + $0x60] sm:$0xff]
      %v478 = vld [vmem:[%s464 + $0x68] sm:$0x3]
      %v479 = vld [vmem:[%s464 + $0x70] sm:$0xff]
      %v480 = vld [vmem:[%s464 + $0x78] sm:$0x3]
      %v481 = vld [vmem:[%s464 + $0x80] sm:$0xff]
      %v482 = vld [vmem:[%s464 + $0x88] sm:$0x3]
      %v483 = vld [vmem:[%s464 + $0x90] sm:$0xff]
      %v484 = vld [vmem:[%s464 + $0x98] sm:$0x3]
      %vm485 = vcmask 31744
      %486 = vst.msk [vmem:[#allocation2] sm:$0xff] %vm485, %v361
      %487 = vst.msk [vmem:[#allocation2 + $0x8] sm:$0xff] %vm485, %v363
      %488 = vst.msk [vmem:[#allocation2 + $0x10] sm:$0xff] %vm485, %v365
      %489 = vst.msk [vmem:[#allocation2 + $0x18] sm:$0xff] %vm485, %v367
      %490 = vst.msk [vmem:[#allocation2 + $0x20] sm:$0xff] %vm485, %v369
      %491 = vst.msk [vmem:[#allocation2 + $0x28] sm:$0xff] %vm485, %v371
      %492 = vst.msk [vmem:[#allocation2 + $0x30] sm:$0xff] %vm485, %v373
      %493 = vst.msk [vmem:[#allocation2 + $0x38] sm:$0xff] %vm485, %v375
      %vm510 = vcmask 1046528
      %v511 = vrot.slane %v361, 1
      %v512 = vrot.slane %v362, 1
      %v513 = vsel %vm510, %v511, %v512
      %v514 = vrot.slane %v363, 1
      %v515 = vrot.slane %v364, 1
      %v516 = vsel %vm510, %v514, %v515
      %v517 = vrot.slane %v365, 1
      %v518 = vrot.slane %v366, 1
      %v519 = vsel %vm510, %v517, %v518
      %v520 = vrot.slane %v367, 1
      %v521 = vrot.slane %v368, 1
      %v522 = vsel %vm510, %v520, %v521
      %v523 = vrot.slane %v369, 1
      %v524 = vrot.slane %v370, 1
      %v525 = vsel %vm510, %v523, %v524
      %v526 = vrot.slane %v371, 1
      %v527 = vrot.slane %v372, 1
      %v528 = vsel %vm510, %v526, %v527
      %v529 = vrot.slane %v373, 1
      %v530 = vrot.slane %v374, 1
      %v531 = vsel %vm510, %v529, %v530
      %v532 = vrot.slane %v375, 1
      %v533 = vrot.slane %v376, 1
      %v534 = vsel %vm510, %v532, %v533
      %535 = vrot.lane.b32.xlu0 %v513, 4
      %v536 = vpop.permute.xlu0 %535
      %537 = vrot.lane.b32.xlu0 %v516, 4
      %v538 = vpop.permute.xlu0 %537
      %539 = vrot.lane.b32.xlu0 %v519, 4
      %v540 = vpop.permute.xlu0 %539
      %541 = vrot.lane.b32.xlu0 %v522, 4
      %v542 = vpop.permute.xlu0 %541
      %543 = vrot.lane.b32.xlu0 %v525, 4
      %v544 = vpop.permute.xlu0 %543
      %545 = vrot.lane.b32.xlu0 %v528, 4
      %v546 = vpop.permute.xlu0 %545
      %547 = vrot.lane.b32.xlu0 %v531, 4
      %v548 = vpop.permute.xlu0 %547
      %549 = vrot.lane.b32.xlu0 %v534, 4
      %v550 = vpop.permute.xlu0 %549
      %vm559 = vcmask 64544
      %560 = vst.msk [vmem:[#allocation2] sm:$0xff] %vm559, %v536
      %561 = vst.msk [vmem:[#allocation2 + $0x8] sm:$0xff] %vm559, %v538
      %562 = vst.msk [vmem:[#allocation2 + $0x10] sm:$0xff] %vm559, %v540
      %563 = vst.msk [vmem:[#allocation2 + $0x18] sm:$0xff] %vm559, %v542
      %564 = vst.msk [vmem:[#allocation2 + $0x20] sm:$0xff] %vm559, %v544
      %565 = vst.msk [vmem:[#allocation2 + $0x28] sm:$0xff] %vm559, %v546
      %566 = vst.msk [vmem:[#allocation2 + $0x30] sm:$0xff] %vm559, %v548
      %567 = vst.msk [vmem:[#allocation2 + $0x38] sm:$0xff] %vm559, %v550
      %vm568 = vcmask 1045504
      %v569 = vrot.slane %v361, 2
      %v570 = vrot.slane %v362, 2
      %v571 = vsel %vm568, %v569, %v570
      %v572 = vrot.slane %v363, 2
      %v573 = vrot.slane %v364, 2
      %v574 = vsel %vm568, %v572, %v573
      %v575 = vrot.slane %v365, 2
      %v576 = vrot.slane %v366, 2
      %v577 = vsel %vm568, %v575, %v576
      %v578 = vrot.slane %v367, 2
      %v579 = vrot.slane %v368, 2
      %v580 = vsel %vm568, %v578, %v579
      %v581 = vrot.slane %v369, 2
      %v582 = vrot.slane %v370, 2
      %v583 = vsel %vm568, %v581, %v582
      %v584 = vrot.slane %v371, 2
      %v585 = vrot.slane %v372, 2
      %v586 = vsel %vm568, %v584, %v585
      %v587 = vrot.slane %v373, 2
      %v588 = vrot.slane %v374, 2
      %v589 = vsel %vm568, %v587, %v588
      %v590 = vrot.slane %v375, 2
      %v591 = vrot.slane %v376, 2
      %v592 = vsel %vm568, %v590, %v591
      %593 = vrot.lane.b32.xlu0 %v571, 8
      %v594 = vpop.permute.xlu0 %593
      %595 = vrot.lane.b32.xlu0 %v574, 8
      %v596 = vpop.permute.xlu0 %595
      %597 = vrot.lane.b32.xlu0 %v577, 8
      %v598 = vpop.permute.xlu0 %597
      %599 = vrot.lane.b32.xlu0 %v580, 8
      %v600 = vpop.permute.xlu0 %599
      %601 = vrot.lane.b32.xlu0 %v583, 8
      %v602 = vpop.permute.xlu0 %601
      %603 = vrot.lane.b32.xlu0 %v586, 8
      %v604 = vpop.permute.xlu0 %603
      %605 = vrot.lane.b32.xlu0 %v589, 8
      %v606 = vpop.permute.xlu0 %605
      %607 = vrot.lane.b32.xlu0 %v592, 8
      %v608 = vpop.permute.xlu0 %607
      %vm617 = vcmask 97344
      %618 = vst.msk [vmem:[#allocation2] sm:$0xff] %vm617, %v594
      %619 = vst.msk [vmem:[#allocation2 + $0x8] sm:$0xff] %vm617, %v596
      %620 = vst.msk [vmem:[#allocation2 + $0x10] sm:$0xff] %vm617, %v598
      %621 = vst.msk [vmem:[#allocation2 + $0x18] sm:$0xff] %vm617, %v600
      %622 = vst.msk [vmem:[#allocation2 + $0x20] sm:$0xff] %vm617, %v602
      %623 = vst.msk [vmem:[#allocation2 + $0x28] sm:$0xff] %vm617, %v604
      %624 = vst.msk [vmem:[#allocation2 + $0x30] sm:$0xff] %vm617, %v606
      %625 = vst.msk [vmem:[#allocation2 + $0x38] sm:$0xff] %vm617, %v608
      %627 = vrot.lane.b32.xlu0 %v363, 12
      %v628 = vpop.permute.xlu0 %627
      %629 = vrot.lane.b32.xlu0 %v365, 12
      %v630 = vpop.permute.xlu0 %629
      %631 = vrot.lane.b32.xlu0 %v367, 12
      %v632 = vpop.permute.xlu0 %631
      %633 = vrot.lane.b32.xlu0 %v369, 12
      %v634 = vpop.permute.xlu0 %633
      %635 = vrot.lane.b32.xlu0 %v371, 12
      %v636 = vpop.permute.xlu0 %635
      %637 = vrot.lane.b32.xlu0 %v373, 12
      %v638 = vpop.permute.xlu0 %637
      %639 = vrot.lane.b32.xlu0 %v375, 12
      %v640 = vpop.permute.xlu0 %639
      %641 = vrot.lane.b32.xlu0 %v377, 12
      %v642 = vpop.permute.xlu0 %641
      %vm651 = vcmask 130144
      %652 = vst.msk [vmem:[#allocation2] sm:$0xff] %vm651, %v628
      %653 = vst.msk [vmem:[#allocation2 + $0x8] sm:$0xff] %vm651, %v630
      %654 = vst.msk [vmem:[#allocation2 + $0x10] sm:$0xff] %vm651, %v632
      %655 = vst.msk [vmem:[#allocation2 + $0x18] sm:$0xff] %vm651, %v634
      %656 = vst.msk [vmem:[#allocation2 + $0x20] sm:$0xff] %vm651, %v636
      %657 = vst.msk [vmem:[#allocation2 + $0x28] sm:$0xff] %vm651, %v638
      %658 = vst.msk [vmem:[#allocation2 + $0x30] sm:$0xff] %vm651, %v640
      %659 = vst.msk [vmem:[#allocation2 + $0x38] sm:$0xff] %vm651, %v642
      %v661 = vrot.slane %v377, 1
      %v662 = vrot.slane %v378, 1
      %v663 = vsel %vm510, %v661, %v662
      %664 = vrot.lane.b32.xlu0 %v516, 16
      %v665 = vpop.permute.xlu0 %664
      %666 = vrot.lane.b32.xlu0 %v519, 16
      %v667 = vpop.permute.xlu0 %666
      %668 = vrot.lane.b32.xlu0 %v522, 16
      %v669 = vpop.permute.xlu0 %668
      %670 = vrot.lane.b32.xlu0 %v525, 16
      %v671 = vpop.permute.xlu0 %670
      %672 = vrot.lane.b32.xlu0 %v528, 16
      %v673 = vpop.permute.xlu0 %672
      %674 = vrot.lane.b32.xlu0 %v531, 16
      %v675 = vpop.permute.xlu0 %674
      %676 = vrot.lane.b32.xlu0 %v534, 16
      %v677 = vpop.permute.xlu0 %676
      %678 = vrot.lane.b32.xlu0 %v663, 16
      %v679 = vpop.permute.xlu0 %678
      %vm688 = vcmask 162944
      %689 = vst.msk [vmem:[#allocation2] sm:$0xff] %vm688, %v665
      %690 = vst.msk [vmem:[#allocation2 + $0x8] sm:$0xff] %vm688, %v667
      %691 = vst.msk [vmem:[#allocation2 + $0x10] sm:$0xff] %vm688, %v669
      %692 = vst.msk [vmem:[#allocation2 + $0x18] sm:$0xff] %vm688, %v671
      %693 = vst.msk [vmem:[#allocation2 + $0x20] sm:$0xff] %vm688, %v673
      %694 = vst.msk [vmem:[#allocation2 + $0x28] sm:$0xff] %vm688, %v675
      %695 = vst.msk [vmem:[#allocation2 + $0x30] sm:$0xff] %vm688, %v677
      %696 = vst.msk [vmem:[#allocation2 + $0x38] sm:$0xff] %vm688, %v679
      %v697 = vrot.slane %v377, 2
      %v698 = vrot.slane %v378, 2
      %v699 = vsel %vm568, %v697, %v698
      %700 = vrot.lane.b32.xlu0 %v574, 20
      %v701 = vpop.permute.xlu0 %700
      %702 = vrot.lane.b32.xlu0 %v577, 20
      %v703 = vpop.permute.xlu0 %702
      %704 = vrot.lane.b32.xlu0 %v580, 20
      %v705 = vpop.permute.xlu0 %704
      %706 = vrot.lane.b32.xlu0 %v583, 20
      %v707 = vpop.permute.xlu0 %706
      %708 = vrot.lane.b32.xlu0 %v586, 20
      %v709 = vpop.permute.xlu0 %708
      %710 = vrot.lane.b32.xlu0 %v589, 20
      %v711 = vpop.permute.xlu0 %710
      %712 = vrot.lane.b32.xlu0 %v592, 20
      %v713 = vpop.permute.xlu0 %712
      %714 = vrot.lane.b32.xlu0 %v699, 20
      %v715 = vpop.permute.xlu0 %714
      %vm724 = vcmask 195744
      %725 = vst.msk [vmem:[#allocation2] sm:$0xff] %vm724, %v701
      %726 = vst.msk [vmem:[#allocation2 + $0x8] sm:$0xff] %vm724, %v703
      %727 = vst.msk [vmem:[#allocation2 + $0x10] sm:$0xff] %vm724, %v705
      %728 = vst.msk [vmem:[#allocation2 + $0x18] sm:$0xff] %vm724, %v707
      %729 = vst.msk [vmem:[#allocation2 + $0x20] sm:$0xff] %vm724, %v709
      %730 = vst.msk [vmem:[#allocation2 + $0x28] sm:$0xff] %vm724, %v711
      %731 = vst.msk [vmem:[#allocation2 + $0x30] sm:$0xff] %vm724, %v713
      %732 = vst.msk [vmem:[#allocation2 + $0x38] sm:$0xff] %vm724, %v715
      %734 = vrot.lane.b32.xlu0 %v365, 24
      %v735 = vpop.permute.xlu0 %734
      %736 = vrot.lane.b32.xlu0 %v367, 24
      %v737 = vpop.permute.xlu0 %736
      %738 = vrot.lane.b32.xlu0 %v369, 24
      %v739 = vpop.permute.xlu0 %738
      %740 = vrot.lane.b32.xlu0 %v371, 24
      %v741 = vpop.permute.xlu0 %740
      %742 = vrot.lane.b32.xlu0 %v373, 24
      %v743 = vpop.permute.xlu0 %742
      %744 = vrot.lane.b32.xlu0 %v375, 24
      %v745 = vpop.permute.xlu0 %744
      %746 = vrot.lane.b32.xlu0 %v377, 24
      %v747 = vpop.permute.xlu0 %746
      %748 = vrot.lane.b32.xlu0 %v379, 24
      %v749 = vpop.permute.xlu0 %748
      %vm758 = vcmask 228544
      %759 = vst.msk [vmem:[#allocation2] sm:$0xff] %vm758, %v735
      %760 = vst.msk [vmem:[#allocation2 + $0x8] sm:$0xff] %vm758, %v737
      %761 = vst.msk [vmem:[#allocation2 + $0x10] sm:$0xff] %vm758, %v739
      %762 = vst.msk [vmem:[#allocation2 + $0x18] sm:$0xff] %vm758, %v741
      %763 = vst.msk [vmem:[#allocation2 + $0x20] sm:$0xff] %vm758, %v743
      %764 = vst.msk [vmem:[#allocation2 + $0x28] sm:$0xff] %vm758, %v745
      %765 = vst.msk [vmem:[#allocation2 + $0x30] sm:$0xff] %vm758, %v747
      %766 = vst.msk [vmem:[#allocation2 + $0x38] sm:$0xff] %vm758, %v749
      %v768 = vrot.slane %v379, 1
      %v769 = vrot.slane %v380, 1
      %v770 = vsel %vm510, %v768, %v769
      %771 = vrot.lane.b32.xlu0 %v519, 28
      %v772 = vpop.permute.xlu0 %771
      %773 = vrot.lane.b32.xlu0 %v522, 28
      %v774 = vpop.permute.xlu0 %773
      %775 = vrot.lane.b32.xlu0 %v525, 28
      %v776 = vpop.permute.xlu0 %775
      %777 = vrot.lane.b32.xlu0 %v528, 28
      %v778 = vpop.permute.xlu0 %777
      %779 = vrot.lane.b32.xlu0 %v531, 28
      %v780 = vpop.permute.xlu0 %779
      %781 = vrot.lane.b32.xlu0 %v534, 28
      %v782 = vpop.permute.xlu0 %781
      %783 = vrot.lane.b32.xlu0 %v663, 28
      %v784 = vpop.permute.xlu0 %783
      %785 = vrot.lane.b32.xlu0 %v770, 28
      %v786 = vpop.permute.xlu0 %785
      %vm795 = vcmask 261344
      %796 = vst.msk [vmem:[#allocation2] sm:$0xff] %vm795, %v772
      %797 = vst.msk [vmem:[#allocation2 + $0x8] sm:$0xff] %vm795, %v774
      %798 = vst.msk [vmem:[#allocation2 + $0x10] sm:$0xff] %vm795, %v776
      %799 = vst.msk [vmem:[#allocation2 + $0x18] sm:$0xff] %vm795, %v778
      %800 = vst.msk [vmem:[#allocation2 + $0x20] sm:$0xff] %vm795, %v780
      %801 = vst.msk [vmem:[#allocation2 + $0x28] sm:$0xff] %vm795, %v782
      %802 = vst.msk [vmem:[#allocation2 + $0x30] sm:$0xff] %vm795, %v784
      %803 = vst.msk [vmem:[#allocation2 + $0x38] sm:$0xff] %vm795, %v786
      %v804 = vrot.slane %v379, 2
      %v805 = vrot.slane %v380, 2
      %v806 = vsel %vm568, %v804, %v805
      %807 = vrot.lane.b32.xlu0 %v577, 32
      %v808 = vpop.permute.xlu0 %807
      %809 = vrot.lane.b32.xlu0 %v580, 32
      %v810 = vpop.permute.xlu0 %809
      %811 = vrot.lane.b32.xlu0 %v583, 32
      %v812 = vpop.permute.xlu0 %811
      %813 = vrot.lane.b32.xlu0 %v586, 32
      %v814 = vpop.permute.xlu0 %813
      %815 = vrot.lane.b32.xlu0 %v589, 32
      %v816 = vpop.permute.xlu0 %815
      %817 = vrot.lane.b32.xlu0 %v592, 32
      %v818 = vpop.permute.xlu0 %817
      %819 = vrot.lane.b32.xlu0 %v699, 32
      %v820 = vpop.permute.xlu0 %819
      %821 = vrot.lane.b32.xlu0 %v806, 32
      %v822 = vpop.permute.xlu0 %821
      %vm831 = vcmask 294144
      %832 = vst.msk [vmem:[#allocation2] sm:$0xff] %vm831, %v808
      %833 = vst.msk [vmem:[#allocation2 + $0x8] sm:$0xff] %vm831, %v810
      %834 = vst.msk [vmem:[#allocation2 + $0x10] sm:$0xff] %vm831, %v812
      %835 = vst.msk [vmem:[#allocation2 + $0x18] sm:$0xff] %vm831, %v814
      %836 = vst.msk [vmem:[#allocation2 + $0x20] sm:$0xff] %vm831, %v816
      %837 = vst.msk [vmem:[#allocation2 + $0x28] sm:$0xff] %vm831, %v818
      %838 = vst.msk [vmem:[#allocation2 + $0x30] sm:$0xff] %vm831, %v820
      %839 = vst.msk [vmem:[#allocation2 + $0x38] sm:$0xff] %vm831, %v822
      %848 = vrot.lane.b32.xlu0 %v382, 36
      %v849 = vpop.permute.xlu0 %848
      %850 = vrot.lane.b32.xlu0 %v384, 36
      %v851 = vpop.permute.xlu0 %850
      %852 = vrot.lane.b32.xlu0 %v386, 36
      %v853 = vpop.permute.xlu0 %852
      %854 = vrot.lane.b32.xlu0 %v388, 36
      %v855 = vpop.permute.xlu0 %854
      %856 = vrot.lane.b32.xlu0 %v390, 36
      %v857 = vpop.permute.xlu0 %856
      %858 = vrot.lane.b32.xlu0 %v392, 36
      %v859 = vpop.permute.xlu0 %858
      %860 = vrot.lane.b32.xlu0 %v394, 36
      %v861 = vpop.permute.xlu0 %860
      %862 = vrot.lane.b32.xlu0 %v396, 36
      %v863 = vpop.permute.xlu0 %862
      %vm872 = vcmask 326944
      %873 = vst.msk [vmem:[#allocation2] sm:$0xff] %vm872, %v849
      %874 = vst.msk [vmem:[#allocation2 + $0x8] sm:$0xff] %vm872, %v851
      %875 = vst.msk [vmem:[#allocation2 + $0x10] sm:$0xff] %vm872, %v853
      %876 = vst.msk [vmem:[#allocation2 + $0x18] sm:$0xff] %vm872, %v855
      %877 = vst.msk [vmem:[#allocation2 + $0x20] sm:$0xff] %vm872, %v857
      %878 = vst.msk [vmem:[#allocation2 + $0x28] sm:$0xff] %vm872, %v859
      %879 = vst.msk [vmem:[#allocation2 + $0x30] sm:$0xff] %vm872, %v861
      %880 = vst.msk [vmem:[#allocation2 + $0x38] sm:$0xff] %vm872, %v863
      %v889 = vrot.slane %v382, 1
      %v890 = vrot.slane %v383, 1
      %v891 = vsel %vm510, %v889, %v890
      %v892 = vrot.slane %v384, 1
      %v893 = vrot.slane %v385, 1
      %v894 = vsel %vm510, %v892, %v893
      %v895 = vrot.slane %v386, 1
      %v896 = vrot.slane %v387, 1
      %v897 = vsel %vm510, %v895, %v896
      %v898 = vrot.slane %v388, 1
      %v899 = vrot.slane %v389, 1
      %v900 = vsel %vm510, %v898, %v899
      %v901 = vrot.slane %v390, 1
      %v902 = vrot.slane %v391, 1
      %v903 = vsel %vm510, %v901, %v902
      %v904 = vrot.slane %v392, 1
      %v905 = vrot.slane %v393, 1
      %v906 = vsel %vm510, %v904, %v905
      %v907 = vrot.slane %v394, 1
      %v908 = vrot.slane %v395, 1
      %v909 = vsel %vm510, %v907, %v908
      %v910 = vrot.slane %v396, 1
      %v911 = vrot.slane %v397, 1
      %v912 = vsel %vm510, %v910, %v911
      %913 = vrot.lane.b32.xlu0 %v891, 40
      %v914 = vpop.permute.xlu0 %913
      %915 = vrot.lane.b32.xlu0 %v894, 40
      %v916 = vpop.permute.xlu0 %915
      %917 = vrot.lane.b32.xlu0 %v897, 40
      %v918 = vpop.permute.xlu0 %917
      %919 = vrot.lane.b32.xlu0 %v900, 40
      %v920 = vpop.permute.xlu0 %919
      %921 = vrot.lane.b32.xlu0 %v903, 40
      %v922 = vpop.permute.xlu0 %921
      %923 = vrot.lane.b32.xlu0 %v906, 40
      %v924 = vpop.permute.xlu0 %923
      %925 = vrot.lane.b32.xlu0 %v909, 40
      %v926 = vpop.permute.xlu0 %925
      %927 = vrot.lane.b32.xlu0 %v912, 40
      %v928 = vpop.permute.xlu0 %927
      %vm937 = vcmask 359744
      %938 = vst.msk [vmem:[#allocation2] sm:$0xff] %vm937, %v914
      %939 = vst.msk [vmem:[#allocation2 + $0x8] sm:$0xff] %vm937, %v916
      %940 = vst.msk [vmem:[#allocation2 + $0x10] sm:$0xff] %vm937, %v918
      %941 = vst.msk [vmem:[#allocation2 + $0x18] sm:$0xff] %vm937, %v920
      %942 = vst.msk [vmem:[#allocation2 + $0x20] sm:$0xff] %vm937, %v922
      %943 = vst.msk [vmem:[#allocation2 + $0x28] sm:$0xff] %vm937, %v924
      %944 = vst.msk [vmem:[#allocation2 + $0x30] sm:$0xff] %vm937, %v926
      %945 = vst.msk [vmem:[#allocation2 + $0x38] sm:$0xff] %vm937, %v928
      %v946 = vrot.slane %v382, 2
      %v947 = vrot.slane %v383, 2
      %v948 = vsel %vm568, %v946, %v947
      %v949 = vrot.slane %v384, 2
      %v950 = vrot.slane %v385, 2
      %v951 = vsel %vm568, %v949, %v950
      %v952 = vrot.slane %v386, 2
      %v953 = vrot.slane %v387, 2
      %v954 = vsel %vm568, %v952, %v953
      %v955 = vrot.slane %v388, 2
      %v956 = vrot.slane %v389, 2
      %v957 = vsel %vm568, %v955, %v956
      %v958 = vrot.slane %v390, 2
      %v959 = vrot.slane %v391, 2
      %v960 = vsel %vm568, %v958, %v959
      %v961 = vrot.slane %v392, 2
      %v962 = vrot.slane %v393, 2
      %v963 = vsel %vm568, %v961, %v962
      %v964 = vrot.slane %v394, 2
      %v965 = vrot.slane %v395, 2
      %v966 = vsel %vm568, %v964, %v965
      %v967 = vrot.slane %v396, 2
      %v968 = vrot.slane %v397, 2
      %v969 = vsel %vm568, %v967, %v968
      %970 = vrot.lane.b32.xlu0 %v948, 44
      %v971 = vpop.permute.xlu0 %970
      %972 = vrot.lane.b32.xlu0 %v951, 44
      %v973 = vpop.permute.xlu0 %972
      %974 = vrot.lane.b32.xlu0 %v954, 44
      %v975 = vpop.permute.xlu0 %974
      %976 = vrot.lane.b32.xlu0 %v957, 44
      %v977 = vpop.permute.xlu0 %976
      %978 = vrot.lane.b32.xlu0 %v960, 44
      %v979 = vpop.permute.xlu0 %978
      %980 = vrot.lane.b32.xlu0 %v963, 44
      %v981 = vpop.permute.xlu0 %980
      %982 = vrot.lane.b32.xlu0 %v966, 44
      %v983 = vpop.permute.xlu0 %982
      %984 = vrot.lane.b32.xlu0 %v969, 44
      %v985 = vpop.permute.xlu0 %984
      %vm994 = vcmask 392544
      %995 = vst.msk [vmem:[#allocation2] sm:$0xff] %vm994, %v971
      %996 = vst.msk [vmem:[#allocation2 + $0x8] sm:$0xff] %vm994, %v973
      %997 = vst.msk [vmem:[#allocation2 + $0x10] sm:$0xff] %vm994, %v975
      %998 = vst.msk [vmem:[#allocation2 + $0x18] sm:$0xff] %vm994, %v977
      %999 = vst.msk [vmem:[#allocation2 + $0x20] sm:$0xff] %vm994, %v979
      %1000 = vst.msk [vmem:[#allocation2 + $0x28] sm:$0xff] %vm994, %v981
      %1001 = vst.msk [vmem:[#allocation2 + $0x30] sm:$0xff] %vm994, %v983
      %1002 = vst.msk [vmem:[#allocation2 + $0x38] sm:$0xff] %vm994, %v985
      %1004 = vrot.lane.b32.xlu0 %v384, 48
      %v1005 = vpop.permute.xlu0 %1004
      %1006 = vrot.lane.b32.xlu0 %v386, 48
      %v1007 = vpop.permute.xlu0 %1006
      %1008 = vrot.lane.b32.xlu0 %v388, 48
      %v1009 = vpop.permute.xlu0 %1008
      %1010 = vrot.lane.b32.xlu0 %v390, 48
      %v1011 = vpop.permute.xlu0 %1010
      %1012 = vrot.lane.b32.xlu0 %v392, 48
      %v1013 = vpop.permute.xlu0 %1012
      %1014 = vrot.lane.b32.xlu0 %v394, 48
      %v1015 = vpop.permute.xlu0 %1014
      %1016 = vrot.lane.b32.xlu0 %v396, 48
      %v1017 = vpop.permute.xlu0 %1016
      %1018 = vrot.lane.b32.xlu0 %v398, 48
      %v1019 = vpop.permute.xlu0 %1018
      %vm1028 = vcmask 425344
      %1029 = vst.msk [vmem:[#allocation2] sm:$0xff] %vm1028, %v1005
      %1030 = vst.msk [vmem:[#allocation2 + $0x8] sm:$0xff] %vm1028, %v1007
      %1031 = vst.msk [vmem:[#allocation2 + $0x10] sm:$0xff] %vm1028, %v1009
      %1032 = vst.msk [vmem:[#allocation2 + $0x18] sm:$0xff] %vm1028, %v1011
      %1033 = vst.msk [vmem:[#allocation2 + $0x20] sm:$0xff] %vm1028, %v1013
      %1034 = vst.msk [vmem:[#allocation2 + $0x28] sm:$0xff] %vm1028, %v1015
      %1035 = vst.msk [vmem:[#allocation2 + $0x30] sm:$0xff] %vm1028, %v1017
      %1036 = vst.msk [vmem:[#allocation2 + $0x38] sm:$0xff] %vm1028, %v1019
      %v1038 = vrot.slane %v398, 1
      %v1039 = vrot.slane %v399, 1
      %v1040 = vsel %vm510, %v1038, %v1039
      %1041 = vrot.lane.b32.xlu0 %v894, 52
      %v1042 = vpop.permute.xlu0 %1041
      %1043 = vrot.lane.b32.xlu0 %v897, 52
      %v1044 = vpop.permute.xlu0 %1043
      %1045 = vrot.lane.b32.xlu0 %v900, 52
      %v1046 = vpop.permute.xlu0 %1045
      %1047 = vrot.lane.b32.xlu0 %v903, 52
      %v1048 = vpop.permute.xlu0 %1047
      %1049 = vrot.lane.b32.xlu0 %v906, 52
      %v1050 = vpop.permute.xlu0 %1049
      %1051 = vrot.lane.b32.xlu0 %v909, 52
      %v1052 = vpop.permute.xlu0 %1051
      %1053 = vrot.lane.b32.xlu0 %v912, 52
      %v1054 = vpop.permute.xlu0 %1053
      %1055 = vrot.lane.b32.xlu0 %v1040, 52
      %v1056 = vpop.permute.xlu0 %1055
      %vm1065 = vcmask 458144
      %1066 = vst.msk [vmem:[#allocation2] sm:$0xff] %vm1065, %v1042
      %1067 = vst.msk [vmem:[#allocation2 + $0x8] sm:$0xff] %vm1065, %v1044
      %1068 = vst.msk [vmem:[#allocation2 + $0x10] sm:$0xff] %vm1065, %v1046
      %1069 = vst.msk [vmem:[#allocation2 + $0x18] sm:$0xff] %vm1065, %v1048
      %1070 = vst.msk [vmem:[#allocation2 + $0x20] sm:$0xff] %vm1065, %v1050
      %1071 = vst.msk [vmem:[#allocation2 + $0x28] sm:$0xff] %vm1065, %v1052
      %1072 = vst.msk [vmem:[#allocation2 + $0x30] sm:$0xff] %vm1065, %v1054
      %1073 = vst.msk [vmem:[#allocation2 + $0x38] sm:$0xff] %vm1065, %v1056
      %v1074 = vrot.slane %v398, 2
      %v1075 = vrot.slane %v399, 2
      %v1076 = vsel %vm568, %v1074, %v1075
      %1077 = vrot.lane.b32.xlu0 %v951, 56
      %v1078 = vpop.permute.xlu0 %1077
      %1079 = vrot.lane.b32.xlu0 %v954, 56
      %v1080 = vpop.permute.xlu0 %1079
      %1081 = vrot.lane.b32.xlu0 %v957, 56
      %v1082 = vpop.permute.xlu0 %1081
      %1083 = vrot.lane.b32.xlu0 %v960, 56
      %v1084 = vpop.permute.xlu0 %1083
      %1085 = vrot.lane.b32.xlu0 %v963, 56
      %v1086 = vpop.permute.xlu0 %1085
      %1087 = vrot.lane.b32.xlu0 %v966, 56
      %v1088 = vpop.permute.xlu0 %1087
      %1089 = vrot.lane.b32.xlu0 %v969, 56
      %v1090 = vpop.permute.xlu0 %1089
      %1091 = vrot.lane.b32.xlu0 %v1076, 56
      %v1092 = vpop.permute.xlu0 %1091
      %vm1101 = vcmask 490944
      %1102 = vst.msk [vmem:[#allocation2] sm:$0xff] %vm1101, %v1078
      %1103 = vst.msk [vmem:[#allocation2 + $0x8] sm:$0xff] %vm1101, %v1080
      %1104 = vst.msk [vmem:[#allocation2 + $0x10] sm:$0xff] %vm1101, %v1082
      %1105 = vst.msk [vmem:[#allocation2 + $0x18] sm:$0xff] %vm1101, %v1084
      %1106 = vst.msk [vmem:[#allocation2 + $0x20] sm:$0xff] %vm1101, %v1086
      %1107 = vst.msk [vmem:[#allocation2 + $0x28] sm:$0xff] %vm1101, %v1088
      %1108 = vst.msk [vmem:[#allocation2 + $0x30] sm:$0xff] %vm1101, %v1090
      %1109 = vst.msk [vmem:[#allocation2 + $0x38] sm:$0xff] %vm1101, %v1092
      %1111 = vrot.lane.b32.xlu0 %v386, 60
      %v1112 = vpop.permute.xlu0 %1111
      %1113 = vrot.lane.b32.xlu0 %v388, 60
      %v1114 = vpop.permute.xlu0 %1113
      %1115 = vrot.lane.b32.xlu0 %v390, 60
      %v1116 = vpop.permute.xlu0 %1115
      %1117 = vrot.lane.b32.xlu0 %v392, 60
      %v1118 = vpop.permute.xlu0 %1117
      %1119 = vrot.lane.b32.xlu0 %v394, 60
      %v1120 = vpop.permute.xlu0 %1119
      %1121 = vrot.lane.b32.xlu0 %v396, 60
      %v1122 = vpop.permute.xlu0 %1121
      %1123 = vrot.lane.b32.xlu0 %v398, 60
      %v1124 = vpop.permute.xlu0 %1123
      %1125 = vrot.lane.b32.xlu0 %v400, 60
      %v1126 = vpop.permute.xlu0 %1125
      %vm1135 = vcmask 523744
      %1136 = vst.msk [vmem:[#allocation2] sm:$0xff] %vm1135, %v1112
      %1137 = vst.msk [vmem:[#allocation2 + $0x8] sm:$0xff] %vm1135, %v1114
      %1138 = vst.msk [vmem:[#allocation2 + $0x10] sm:$0xff] %vm1135, %v1116
      %1139 = vst.msk [vmem:[#allocation2 + $0x18] sm:$0xff] %vm1135, %v1118
      %1140 = vst.msk [vmem:[#allocation2 + $0x20] sm:$0xff] %vm1135, %v1120
      %1141 = vst.msk [vmem:[#allocation2 + $0x28] sm:$0xff] %vm1135, %v1122
      %1142 = vst.msk [vmem:[#allocation2 + $0x30] sm:$0xff] %vm1135, %v1124
      %1143 = vst.msk [vmem:[#allocation2 + $0x38] sm:$0xff] %vm1135, %v1126
      %v1145 = vrot.slane %v400, 1
      %v1146 = vrot.slane %v401, 1
      %v1147 = vsel %vm510, %v1145, %v1146
      %1148 = vrot.lane.b32.xlu0 %v897, 64
      %v1149 = vpop.permute.xlu0 %1148
      %1150 = vrot.lane.b32.xlu0 %v900, 64
      %v1151 = vpop.permute.xlu0 %1150
      %1152 = vrot.lane.b32.xlu0 %v903, 64
      %v1153 = vpop.permute.xlu0 %1152
      %1154 = vrot.lane.b32.xlu0 %v906, 64
      %v1155 = vpop.permute.xlu0 %1154
      %1156 = vrot.lane.b32.xlu0 %v909, 64
      %v1157 = vpop.permute.xlu0 %1156
      %1158 = vrot.lane.b32.xlu0 %v912, 64
      %v1159 = vpop.permute.xlu0 %1158
      %1160 = vrot.lane.b32.xlu0 %v1040, 64
      %v1161 = vpop.permute.xlu0 %1160
      %1162 = vrot.lane.b32.xlu0 %v1147, 64
      %v1163 = vpop.permute.xlu0 %1162
      %vm1172 = vcmask 556544
      %1173 = vst.msk [vmem:[#allocation2] sm:$0xff] %vm1172, %v1149
      %1174 = vst.msk [vmem:[#allocation2 + $0x8] sm:$0xff] %vm1172, %v1151
      %1175 = vst.msk [vmem:[#allocation2 + $0x10] sm:$0xff] %vm1172, %v1153
      %1176 = vst.msk [vmem:[#allocation2 + $0x18] sm:$0xff] %vm1172, %v1155
      %1177 = vst.msk [vmem:[#allocation2 + $0x20] sm:$0xff] %vm1172, %v1157
      %1178 = vst.msk [vmem:[#allocation2 + $0x28] sm:$0xff] %vm1172, %v1159
      %1179 = vst.msk [vmem:[#allocation2 + $0x30] sm:$0xff] %vm1172, %v1161
      %1180 = vst.msk [vmem:[#allocation2 + $0x38] sm:$0xff] %vm1172, %v1163
      %v1181 = vrot.slane %v400, 2
      %v1182 = vrot.slane %v401, 2
      %v1183 = vsel %vm568, %v1181, %v1182
      %1184 = vrot.lane.b32.xlu0 %v954, 68
      %v1185 = vpop.permute.xlu0 %1184
      %1186 = vrot.lane.b32.xlu0 %v957, 68
      %v1187 = vpop.permute.xlu0 %1186
      %1188 = vrot.lane.b32.xlu0 %v960, 68
      %v1189 = vpop.permute.xlu0 %1188
      %1190 = vrot.lane.b32.xlu0 %v963, 68
      %v1191 = vpop.permute.xlu0 %1190
      %1192 = vrot.lane.b32.xlu0 %v966, 68
      %v1193 = vpop.permute.xlu0 %1192
      %1194 = vrot.lane.b32.xlu0 %v969, 68
      %v1195 = vpop.permute.xlu0 %1194
      %1196 = vrot.lane.b32.xlu0 %v1076, 68
      %v1197 = vpop.permute.xlu0 %1196
      %1198 = vrot.lane.b32.xlu0 %v1183, 68
      %v1199 = vpop.permute.xlu0 %1198
      %vm1208 = vcmask 589344
      %1209 = vst.msk [vmem:[#allocation2] sm:$0xff] %vm1208, %v1185
      %1210 = vst.msk [vmem:[#allocation2 + $0x8] sm:$0xff] %vm1208, %v1187
      %1211 = vst.msk [vmem:[#allocation2 + $0x10] sm:$0xff] %vm1208, %v1189
      %1212 = vst.msk [vmem:[#allocation2 + $0x18] sm:$0xff] %vm1208, %v1191
      %1213 = vst.msk [vmem:[#allocation2 + $0x20] sm:$0xff] %vm1208, %v1193
      %1214 = vst.msk [vmem:[#allocation2 + $0x28] sm:$0xff] %vm1208, %v1195
      %1215 = vst.msk [vmem:[#allocation2 + $0x30] sm:$0xff] %vm1208, %v1197
      %1216 = vst.msk [vmem:[#allocation2 + $0x38] sm:$0xff] %vm1208, %v1199
      %1225 = vrot.lane.b32.xlu0 %v403, 72
      %v1226 = vpop.permute.xlu0 %1225
      %1227 = vrot.lane.b32.xlu0 %v405, 72
      %v1228 = vpop.permute.xlu0 %1227
      %1229 = vrot.lane.b32.xlu0 %v407, 72
      %v1230 = vpop.permute.xlu0 %1229
      %1231 = vrot.lane.b32.xlu0 %v409, 72
      %v1232 = vpop.permute.xlu0 %1231
      %1233 = vrot.lane.b32.xlu0 %v411, 72
      %v1234 = vpop.permute.xlu0 %1233
      %1235 = vrot.lane.b32.xlu0 %v413, 72
      %v1236 = vpop.permute.xlu0 %1235
      %1237 = vrot.lane.b32.xlu0 %v415, 72
      %v1238 = vpop.permute.xlu0 %1237
      %1239 = vrot.lane.b32.xlu0 %v417, 72
      %v1240 = vpop.permute.xlu0 %1239
      %vm1249 = vcmask 622144
      %1250 = vst.msk [vmem:[#allocation2] sm:$0xff] %vm1249, %v1226
      %1251 = vst.msk [vmem:[#allocation2 + $0x8] sm:$0xff] %vm1249, %v1228
      %1252 = vst.msk [vmem:[#allocation2 + $0x10] sm:$0xff] %vm1249, %v1230
      %1253 = vst.msk [vmem:[#allocation2 + $0x18] sm:$0xff] %vm1249, %v1232
      %1254 = vst.msk [vmem:[#allocation2 + $0x20] sm:$0xff] %vm1249, %v1234
      %1255 = vst.msk [vmem:[#allocation2 + $0x28] sm:$0xff] %vm1249, %v1236
      %1256 = vst.msk [vmem:[#allocation2 + $0x30] sm:$0xff] %vm1249, %v1238
      %1257 = vst.msk [vmem:[#allocation2 + $0x38] sm:$0xff] %vm1249, %v1240
      %v1266 = vrot.slane %v403, 1
      %v1267 = vrot.slane %v404, 1
      %v1268 = vsel %vm510, %v1266, %v1267
      %v1269 = vrot.slane %v405, 1
      %v1270 = vrot.slane %v406, 1
      %v1271 = vsel %vm510, %v1269, %v1270
      %v1272 = vrot.slane %v407, 1
      %v1273 = vrot.slane %v408, 1
      %v1274 = vsel %vm510, %v1272, %v1273
      %v1275 = vrot.slane %v409, 1
      %v1276 = vrot.slane %v410, 1
      %v1277 = vsel %vm510, %v1275, %v1276
      %v1278 = vrot.slane %v411, 1
      %v1279 = vrot.slane %v412, 1
      %v1280 = vsel %vm510, %v1278, %v1279
      %v1281 = vrot.slane %v413, 1
      %v1282 = vrot.slane %v414, 1
      %v1283 = vsel %vm510, %v1281, %v1282
      %v1284 = vrot.slane %v415, 1
      %v1285 = vrot.slane %v416, 1
      %v1286 = vsel %vm510, %v1284, %v1285
      %v1287 = vrot.slane %v417, 1
      %v1288 = vrot.slane %v418, 1
      %v1289 = vsel %vm510, %v1287, %v1288
      %1290 = vrot.lane.b32.xlu0 %v1268, 76
      %v1291 = vpop.permute.xlu0 %1290
      %1292 = vrot.lane.b32.xlu0 %v1271, 76
      %v1293 = vpop.permute.xlu0 %1292
      %1294 = vrot.lane.b32.xlu0 %v1274, 76
      %v1295 = vpop.permute.xlu0 %1294
      %1296 = vrot.lane.b32.xlu0 %v1277, 76
      %v1297 = vpop.permute.xlu0 %1296
      %1298 = vrot.lane.b32.xlu0 %v1280, 76
      %v1299 = vpop.permute.xlu0 %1298
      %1300 = vrot.lane.b32.xlu0 %v1283, 76
      %v1301 = vpop.permute.xlu0 %1300
      %1302 = vrot.lane.b32.xlu0 %v1286, 76
      %v1303 = vpop.permute.xlu0 %1302
      %1304 = vrot.lane.b32.xlu0 %v1289, 76
      %v1305 = vpop.permute.xlu0 %1304
      %vm1314 = vcmask 654944
      %1315 = vst.msk [vmem:[#allocation2] sm:$0xff] %vm1314, %v1291
      %1316 = vst.msk [vmem:[#allocation2 + $0x8] sm:$0xff] %vm1314, %v1293
      %1317 = vst.msk [vmem:[#allocation2 + $0x10] sm:$0xff] %vm1314, %v1295
      %1318 = vst.msk [vmem:[#allocation2 + $0x18] sm:$0xff] %vm1314, %v1297
      %1319 = vst.msk [vmem:[#allocation2 + $0x20] sm:$0xff] %vm1314, %v1299
      %1320 = vst.msk [vmem:[#allocation2 + $0x28] sm:$0xff] %vm1314, %v1301
      %1321 = vst.msk [vmem:[#allocation2 + $0x30] sm:$0xff] %vm1314, %v1303
      %1322 = vst.msk [vmem:[#allocation2 + $0x38] sm:$0xff] %vm1314, %v1305
      %v1323 = vrot.slane %v403, 2
      %v1324 = vrot.slane %v404, 2
      %v1325 = vsel %vm568, %v1323, %v1324
      %v1326 = vrot.slane %v405, 2
      %v1327 = vrot.slane %v406, 2
      %v1328 = vsel %vm568, %v1326, %v1327
      %v1329 = vrot.slane %v407, 2
      %v1330 = vrot.slane %v408, 2
      %v1331 = vsel %vm568, %v1329, %v1330
      %v1332 = vrot.slane %v409, 2
      %v1333 = vrot.slane %v410, 2
      %v1334 = vsel %vm568, %v1332, %v1333
      %v1335 = vrot.slane %v411, 2
      %v1336 = vrot.slane %v412, 2
      %v1337 = vsel %vm568, %v1335, %v1336
      %v1338 = vrot.slane %v413, 2
      %v1339 = vrot.slane %v414, 2
      %v1340 = vsel %vm568, %v1338, %v1339
      %v1341 = vrot.slane %v415, 2
      %v1342 = vrot.slane %v416, 2
      %v1343 = vsel %vm568, %v1341, %v1342
      %v1344 = vrot.slane %v417, 2
      %v1345 = vrot.slane %v418, 2
      %v1346 = vsel %vm568, %v1344, %v1345
      %1347 = vrot.lane.b32.xlu0 %v1325, 80
      %v1348 = vpop.permute.xlu0 %1347
      %1349 = vrot.lane.b32.xlu0 %v1328, 80
      %v1350 = vpop.permute.xlu0 %1349
      %1351 = vrot.lane.b32.xlu0 %v1331, 80
      %v1352 = vpop.permute.xlu0 %1351
      %1353 = vrot.lane.b32.xlu0 %v1334, 80
      %v1354 = vpop.permute.xlu0 %1353
      %1355 = vrot.lane.b32.xlu0 %v1337, 80
      %v1356 = vpop.permute.xlu0 %1355
      %1357 = vrot.lane.b32.xlu0 %v1340, 80
      %v1358 = vpop.permute.xlu0 %1357
      %1359 = vrot.lane.b32.xlu0 %v1343, 80
      %v1360 = vpop.permute.xlu0 %1359
      %1361 = vrot.lane.b32.xlu0 %v1346, 80
      %v1362 = vpop.permute.xlu0 %1361
      %vm1371 = vcmask 687744
      %1372 = vst.msk [vmem:[#allocation2] sm:$0xff] %vm1371, %v1348
      %1373 = vst.msk [vmem:[#allocation2 + $0x8] sm:$0xff] %vm1371, %v1350
      %1374 = vst.msk [vmem:[#allocation2 + $0x10] sm:$0xff] %vm1371, %v1352
      %1375 = vst.msk [vmem:[#allocation2 + $0x18] sm:$0xff] %vm1371, %v1354
      %1376 = vst.msk [vmem:[#allocation2 + $0x20] sm:$0xff] %vm1371, %v1356
      %1377 = vst.msk [vmem:[#allocation2 + $0x28] sm:$0xff] %vm1371, %v1358
      %1378 = vst.msk [vmem:[#allocation2 + $0x30] sm:$0xff] %vm1371, %v1360
      %1379 = vst.msk [vmem:[#allocation2 + $0x38] sm:$0xff] %vm1371, %v1362
      %1381 = vrot.lane.b32.xlu0 %v405, 84
      %v1382 = vpop.permute.xlu0 %1381
      %1383 = vrot.lane.b32.xlu0 %v407, 84
      %v1384 = vpop.permute.xlu0 %1383
      %1385 = vrot.lane.b32.xlu0 %v409, 84
      %v1386 = vpop.permute.xlu0 %1385
      %1387 = vrot.lane.b32.xlu0 %v411, 84
      %v1388 = vpop.permute.xlu0 %1387
      %1389 = vrot.lane.b32.xlu0 %v413, 84
      %v1390 = vpop.permute.xlu0 %1389
      %1391 = vrot.lane.b32.xlu0 %v415, 84
      %v1392 = vpop.permute.xlu0 %1391
      %1393 = vrot.lane.b32.xlu0 %v417, 84
      %v1394 = vpop.permute.xlu0 %1393
      %1395 = vrot.lane.b32.xlu0 %v419, 84
      %v1396 = vpop.permute.xlu0 %1395
      %vm1405 = vcmask 720544
      %1406 = vst.msk [vmem:[#allocation2] sm:$0xff] %vm1405, %v1382
      %1407 = vst.msk [vmem:[#allocation2 + $0x8] sm:$0xff] %vm1405, %v1384
      %1408 = vst.msk [vmem:[#allocation2 + $0x10] sm:$0xff] %vm1405, %v1386
      %1409 = vst.msk [vmem:[#allocation2 + $0x18] sm:$0xff] %vm1405, %v1388
      %1410 = vst.msk [vmem:[#allocation2 + $0x20] sm:$0xff] %vm1405, %v1390
      %1411 = vst.msk [vmem:[#allocation2 + $0x28] sm:$0xff] %vm1405, %v1392
      %1412 = vst.msk [vmem:[#allocation2 + $0x30] sm:$0xff] %vm1405, %v1394
      %1413 = vst.msk [vmem:[#allocation2 + $0x38] sm:$0xff] %vm1405, %v1396
      %v1415 = vrot.slane %v419, 1
      %v1416 = vrot.slane %v420, 1
      %v1417 = vsel %vm510, %v1415, %v1416
      %1418 = vrot.lane.b32.xlu0 %v1271, 88
      %v1419 = vpop.permute.xlu0 %1418
      %1420 = vrot.lane.b32.xlu0 %v1274, 88
      %v1421 = vpop.permute.xlu0 %1420
      %1422 = vrot.lane.b32.xlu0 %v1277, 88
      %v1423 = vpop.permute.xlu0 %1422
      %1424 = vrot.lane.b32.xlu0 %v1280, 88
      %v1425 = vpop.permute.xlu0 %1424
      %1426 = vrot.lane.b32.xlu0 %v1283, 88
      %v1427 = vpop.permute.xlu0 %1426
      %1428 = vrot.lane.b32.xlu0 %v1286, 88
      %v1429 = vpop.permute.xlu0 %1428
      %1430 = vrot.lane.b32.xlu0 %v1289, 88
      %v1431 = vpop.permute.xlu0 %1430
      %1432 = vrot.lane.b32.xlu0 %v1417, 88
      %v1433 = vpop.permute.xlu0 %1432
      %vm1442 = vcmask 753344
      %1443 = vst.msk [vmem:[#allocation2] sm:$0xff] %vm1442, %v1419
      %1444 = vst.msk [vmem:[#allocation2 + $0x8] sm:$0xff] %vm1442, %v1421
      %1445 = vst.msk [vmem:[#allocation2 + $0x10] sm:$0xff] %vm1442, %v1423
      %1446 = vst.msk [vmem:[#allocation2 + $0x18] sm:$0xff] %vm1442, %v1425
      %1447 = vst.msk [vmem:[#allocation2 + $0x20] sm:$0xff] %vm1442, %v1427
      %1448 = vst.msk [vmem:[#allocation2 + $0x28] sm:$0xff] %vm1442, %v1429
      %1449 = vst.msk [vmem:[#allocation2 + $0x30] sm:$0xff] %vm1442, %v1431
      %1450 = vst.msk [vmem:[#allocation2 + $0x38] sm:$0xff] %vm1442, %v1433
      %v1451 = vrot.slane %v419, 2
      %v1452 = vrot.slane %v420, 2
      %v1453 = vsel %vm568, %v1451, %v1452
      %1454 = vrot.lane.b32.xlu0 %v1328, 92
      %v1455 = vpop.permute.xlu0 %1454
      %1456 = vrot.lane.b32.xlu0 %v1331, 92
      %v1457 = vpop.permute.xlu0 %1456
      %1458 = vrot.lane.b32.xlu0 %v1334, 92
      %v1459 = vpop.permute.xlu0 %1458
      %1460 = vrot.lane.b32.xlu0 %v1337, 92
      %v1461 = vpop.permute.xlu0 %1460
      %1462 = vrot.lane.b32.xlu0 %v1340, 92
      %v1463 = vpop.permute.xlu0 %1462
      %1464 = vrot.lane.b32.xlu0 %v1343, 92
      %v1465 = vpop.permute.xlu0 %1464
      %1466 = vrot.lane.b32.xlu0 %v1346, 92
      %v1467 = vpop.permute.xlu0 %1466
      %1468 = vrot.lane.b32.xlu0 %v1453, 92
      %v1469 = vpop.permute.xlu0 %1468
      %vm1478 = vcmask 786144
      %1479 = vst.msk [vmem:[#allocation2] sm:$0xff] %vm1478, %v1455
      %1480 = vst.msk [vmem:[#allocation2 + $0x8] sm:$0xff] %vm1478, %v1457
      %1481 = vst.msk [vmem:[#allocation2 + $0x10] sm:$0xff] %vm1478, %v1459
      %1482 = vst.msk [vmem:[#allocation2 + $0x18] sm:$0xff] %vm1478, %v1461
      %1483 = vst.msk [vmem:[#allocation2 + $0x20] sm:$0xff] %vm1478, %v1463
      %1484 = vst.msk [vmem:[#allocation2 + $0x28] sm:$0xff] %vm1478, %v1465
      %1485 = vst.msk [vmem:[#allocation2 + $0x30] sm:$0xff] %vm1478, %v1467
      %1486 = vst.msk [vmem:[#allocation2 + $0x38] sm:$0xff] %vm1478, %v1469
      %1488 = vrot.lane.b32.xlu0 %v407, 96
      %v1489 = vpop.permute.xlu0 %1488
      %1490 = vrot.lane.b32.xlu0 %v409, 96
      %v1491 = vpop.permute.xlu0 %1490
      %1492 = vrot.lane.b32.xlu0 %v411, 96
      %v1493 = vpop.permute.xlu0 %1492
      %1494 = vrot.lane.b32.xlu0 %v413, 96
      %v1495 = vpop.permute.xlu0 %1494
      %1496 = vrot.lane.b32.xlu0 %v415, 96
      %v1497 = vpop.permute.xlu0 %1496
      %1498 = vrot.lane.b32.xlu0 %v417, 96
      %v1499 = vpop.permute.xlu0 %1498
      %1500 = vrot.lane.b32.xlu0 %v419, 96
      %v1501 = vpop.permute.xlu0 %1500
      %1502 = vrot.lane.b32.xlu0 %v421, 96
      %v1503 = vpop.permute.xlu0 %1502
      %vm1512 = vcmask 818944
      %1513 = vst.msk [vmem:[#allocation2] sm:$0xff] %vm1512, %v1489
      %1514 = vst.msk [vmem:[#allocation2 + $0x8] sm:$0xff] %vm1512, %v1491
      %1515 = vst.msk [vmem:[#allocation2 + $0x10] sm:$0xff] %vm1512, %v1493
      %1516 = vst.msk [vmem:[#allocation2 + $0x18] sm:$0xff] %vm1512, %v1495
      %1517 = vst.msk [vmem:[#allocation2 + $0x20] sm:$0xff] %vm1512, %v1497
      %1518 = vst.msk [vmem:[#allocation2 + $0x28] sm:$0xff] %vm1512, %v1499
      %1519 = vst.msk [vmem:[#allocation2 + $0x30] sm:$0xff] %vm1512, %v1501
      %1520 = vst.msk [vmem:[#allocation2 + $0x38] sm:$0xff] %vm1512, %v1503
      %v1522 = vrot.slane %v421, 1
      %v1523 = vrot.slane %v422, 1
      %v1524 = vsel %vm510, %v1522, %v1523
      %1525 = vrot.lane.b32.xlu0 %v1274, 100
      %v1526 = vpop.permute.xlu0 %1525
      %1527 = vrot.lane.b32.xlu0 %v1277, 100
      %v1528 = vpop.permute.xlu0 %1527
      %1529 = vrot.lane.b32.xlu0 %v1280, 100
      %v1530 = vpop.permute.xlu0 %1529
      %1531 = vrot.lane.b32.xlu0 %v1283, 100
      %v1532 = vpop.permute.xlu0 %1531
      %1533 = vrot.lane.b32.xlu0 %v1286, 100
      %v1534 = vpop.permute.xlu0 %1533
      %1535 = vrot.lane.b32.xlu0 %v1289, 100
      %v1536 = vpop.permute.xlu0 %1535
      %1537 = vrot.lane.b32.xlu0 %v1417, 100
      %v1538 = vpop.permute.xlu0 %1537
      %1539 = vrot.lane.b32.xlu0 %v1524, 100
      %v1540 = vpop.permute.xlu0 %1539
      %vm1549 = vcmask 851744
      %1550 = vst.msk [vmem:[#allocation2] sm:$0xff] %vm1549, %v1526
      %1551 = vst.msk [vmem:[#allocation2 + $0x8] sm:$0xff] %vm1549, %v1528
      %1552 = vst.msk [vmem:[#allocation2 + $0x10] sm:$0xff] %vm1549, %v1530
      %1553 = vst.msk [vmem:[#allocation2 + $0x18] sm:$0xff] %vm1549, %v1532
      %1554 = vst.msk [vmem:[#allocation2 + $0x20] sm:$0xff] %vm1549, %v1534
      %1555 = vst.msk [vmem:[#allocation2 + $0x28] sm:$0xff] %vm1549, %v1536
      %1556 = vst.msk [vmem:[#allocation2 + $0x30] sm:$0xff] %vm1549, %v1538
      %1557 = vst.msk [vmem:[#allocation2 + $0x38] sm:$0xff] %vm1549, %v1540
      %v1558 = vrot.slane %v421, 2
      %v1559 = vrot.slane %v422, 2
      %v1560 = vsel %vm568, %v1558, %v1559
      %1561 = vrot.lane.b32.xlu0 %v1331, 104
      %v1562 = vpop.permute.xlu0 %1561
      %1563 = vrot.lane.b32.xlu0 %v1334, 104
      %v1564 = vpop.permute.xlu0 %1563
      %1565 = vrot.lane.b32.xlu0 %v1337, 104
      %v1566 = vpop.permute.xlu0 %1565
      %1567 = vrot.lane.b32.xlu0 %v1340, 104
      %v1568 = vpop.permute.xlu0 %1567
      %1569 = vrot.lane.b32.xlu0 %v1343, 104
      %v1570 = vpop.permute.xlu0 %1569
      %1571 = vrot.lane.b32.xlu0 %v1346, 104
      %v1572 = vpop.permute.xlu0 %1571
      %1573 = vrot.lane.b32.xlu0 %v1453, 104
      %v1574 = vpop.permute.xlu0 %1573
      %1575 = vrot.lane.b32.xlu0 %v1560, 104
      %v1576 = vpop.permute.xlu0 %1575
      %vm1585 = vcmask 884544
      %1586 = vst.msk [vmem:[#allocation2] sm:$0xff] %vm1585, %v1562
      %1587 = vst.msk [vmem:[#allocation2 + $0x8] sm:$0xff] %vm1585, %v1564
      %1588 = vst.msk [vmem:[#allocation2 + $0x10] sm:$0xff] %vm1585, %v1566
      %1589 = vst.msk [vmem:[#allocation2 + $0x18] sm:$0xff] %vm1585, %v1568
      %1590 = vst.msk [vmem:[#allocation2 + $0x20] sm:$0xff] %vm1585, %v1570
      %1591 = vst.msk [vmem:[#allocation2 + $0x28] sm:$0xff] %vm1585, %v1572
      %1592 = vst.msk [vmem:[#allocation2 + $0x30] sm:$0xff] %vm1585, %v1574
      %1593 = vst.msk [vmem:[#allocation2 + $0x38] sm:$0xff] %vm1585, %v1576
      %1594 = vst.msk [vmem:[#allocation2 + $0x40] sm:$0xff] %vm485, %v382
      %1595 = vst.msk [vmem:[#allocation2 + $0x48] sm:$0xff] %vm485, %v384
      %1596 = vst.msk [vmem:[#allocation2 + $0x50] sm:$0xff] %vm485, %v386
      %1597 = vst.msk [vmem:[#allocation2 + $0x58] sm:$0xff] %vm485, %v388
      %1598 = vst.msk [vmem:[#allocation2 + $0x60] sm:$0xff] %vm485, %v390
      %1599 = vst.msk [vmem:[#allocation2 + $0x68] sm:$0xff] %vm485, %v392
      %1600 = vst.msk [vmem:[#allocation2 + $0x70] sm:$0xff] %vm485, %v394
      %1601 = vst.msk [vmem:[#allocation2 + $0x78] sm:$0xff] %vm485, %v396
      %1602 = vrot.lane.b32.xlu0 %v891, 4
      %v1603 = vpop.permute.xlu0 %1602
      %1604 = vrot.lane.b32.xlu0 %v894, 4
      %v1605 = vpop.permute.xlu0 %1604
      %1606 = vrot.lane.b32.xlu0 %v897, 4
      %v1607 = vpop.permute.xlu0 %1606
      %1608 = vrot.lane.b32.xlu0 %v900, 4
      %v1609 = vpop.permute.xlu0 %1608
      %1610 = vrot.lane.b32.xlu0 %v903, 4
      %v1611 = vpop.permute.xlu0 %1610
      %1612 = vrot.lane.b32.xlu0 %v906, 4
      %v1613 = vpop.permute.xlu0 %1612
      %1614 = vrot.lane.b32.xlu0 %v909, 4
      %v1615 = vpop.permute.xlu0 %1614
      %1616 = vrot.lane.b32.xlu0 %v912, 4
      %v1617 = vpop.permute.xlu0 %1616
      %1626 = vst.msk [vmem:[#allocation2 + $0x40] sm:$0xff] %vm559, %v1603
      %1627 = vst.msk [vmem:[#allocation2 + $0x48] sm:$0xff] %vm559, %v1605
      %1628 = vst.msk [vmem:[#allocation2 + $0x50] sm:$0xff] %vm559, %v1607
      %1629 = vst.msk [vmem:[#allocation2 + $0x58] sm:$0xff] %vm559, %v1609
      %1630 = vst.msk [vmem:[#allocation2 + $0x60] sm:$0xff] %vm559, %v1611
      %1631 = vst.msk [vmem:[#allocation2 + $0x68] sm:$0xff] %vm559, %v1613
      %1632 = vst.msk [vmem:[#allocation2 + $0x70] sm:$0xff] %vm559, %v1615
      %1633 = vst.msk [vmem:[#allocation2 + $0x78] sm:$0xff] %vm559, %v1617
      %1634 = vrot.lane.b32.xlu0 %v948, 8
      %v1635 = vpop.permute.xlu0 %1634
      %1636 = vrot.lane.b32.xlu0 %v951, 8
      %v1637 = vpop.permute.xlu0 %1636
      %1638 = vrot.lane.b32.xlu0 %v954, 8
      %v1639 = vpop.permute.xlu0 %1638
      %1640 = vrot.lane.b32.xlu0 %v957, 8
      %v1641 = vpop.permute.xlu0 %1640
      %1642 = vrot.lane.b32.xlu0 %v960, 8
      %v1643 = vpop.permute.xlu0 %1642
      %1644 = vrot.lane.b32.xlu0 %v963, 8
      %v1645 = vpop.permute.xlu0 %1644
      %1646 = vrot.lane.b32.xlu0 %v966, 8
      %v1647 = vpop.permute.xlu0 %1646
      %1648 = vrot.lane.b32.xlu0 %v969, 8
      %v1649 = vpop.permute.xlu0 %1648
      %1658 = vst.msk [vmem:[#allocation2 + $0x40] sm:$0xff] %vm617, %v1635
      %1659 = vst.msk [vmem:[#allocation2 + $0x48] sm:$0xff] %vm617, %v1637
      %1660 = vst.msk [vmem:[#allocation2 + $0x50] sm:$0xff] %vm617, %v1639
      %1661 = vst.msk [vmem:[#allocation2 + $0x58] sm:$0xff] %vm617, %v1641
      %1662 = vst.msk [vmem:[#allocation2 + $0x60] sm:$0xff] %vm617, %v1643
      %1663 = vst.msk [vmem:[#allocation2 + $0x68] sm:$0xff] %vm617, %v1645
      %1664 = vst.msk [vmem:[#allocation2 + $0x70] sm:$0xff] %vm617, %v1647
      %1665 = vst.msk [vmem:[#allocation2 + $0x78] sm:$0xff] %vm617, %v1649
      %1666 = vrot.lane.b32.xlu0 %v384, 12
      %v1667 = vpop.permute.xlu0 %1666
      %1668 = vrot.lane.b32.xlu0 %v386, 12
      %v1669 = vpop.permute.xlu0 %1668
      %1670 = vrot.lane.b32.xlu0 %v388, 12
      %v1671 = vpop.permute.xlu0 %1670
      %1672 = vrot.lane.b32.xlu0 %v390, 12
      %v1673 = vpop.permute.xlu0 %1672
      %1674 = vrot.lane.b32.xlu0 %v392, 12
      %v1675 = vpop.permute.xlu0 %1674
      %1676 = vrot.lane.b32.xlu0 %v394, 12
      %v1677 = vpop.permute.xlu0 %1676
      %1678 = vrot.lane.b32.xlu0 %v396, 12
      %v1679 = vpop.permute.xlu0 %1678
      %1680 = vrot.lane.b32.xlu0 %v398, 12
      %v1681 = vpop.permute.xlu0 %1680
      %1690 = vst.msk [vmem:[#allocation2 + $0x40] sm:$0xff] %vm651, %v1667
      %1691 = vst.msk [vmem:[#allocation2 + $0x48] sm:$0xff] %vm651, %v1669
      %1692 = vst.msk [vmem:[#allocation2 + $0x50] sm:$0xff] %vm651, %v1671
      %1693 = vst.msk [vmem:[#allocation2 + $0x58] sm:$0xff] %vm651, %v1673
      %1694 = vst.msk [vmem:[#allocation2 + $0x60] sm:$0xff] %vm651, %v1675
      %1695 = vst.msk [vmem:[#allocation2 + $0x68] sm:$0xff] %vm651, %v1677
      %1696 = vst.msk [vmem:[#allocation2 + $0x70] sm:$0xff] %vm651, %v1679
      %1697 = vst.msk [vmem:[#allocation2 + $0x78] sm:$0xff] %vm651, %v1681
      %1698 = vrot.lane.b32.xlu0 %v894, 16
      %v1699 = vpop.permute.xlu0 %1698
      %1700 = vrot.lane.b32.xlu0 %v897, 16
      %v1701 = vpop.permute.xlu0 %1700
      %1702 = vrot.lane.b32.xlu0 %v900, 16
      %v1703 = vpop.permute.xlu0 %1702
      %1704 = vrot.lane.b32.xlu0 %v903, 16
      %v1705 = vpop.permute.xlu0 %1704
      %1706 = vrot.lane.b32.xlu0 %v906, 16
      %v1707 = vpop.permute.xlu0 %1706
      %1708 = vrot.lane.b32.xlu0 %v909, 16
      %v1709 = vpop.permute.xlu0 %1708
      %1710 = vrot.lane.b32.xlu0 %v912, 16
      %v1711 = vpop.permute.xlu0 %1710
      %1712 = vrot.lane.b32.xlu0 %v1040, 16
      %v1713 = vpop.permute.xlu0 %1712
      %1722 = vst.msk [vmem:[#allocation2 + $0x40] sm:$0xff] %vm688, %v1699
      %1723 = vst.msk [vmem:[#allocation2 + $0x48] sm:$0xff] %vm688, %v1701
      %1724 = vst.msk [vmem:[#allocation2 + $0x50] sm:$0xff] %vm688, %v1703
      %1725 = vst.msk [vmem:[#allocation2 + $0x58] sm:$0xff] %vm688, %v1705
      %1726 = vst.msk [vmem:[#allocation2 + $0x60] sm:$0xff] %vm688, %v1707
      %1727 = vst.msk [vmem:[#allocation2 + $0x68] sm:$0xff] %vm688, %v1709
      %1728 = vst.msk [vmem:[#allocation2 + $0x70] sm:$0xff] %vm688, %v1711
      %1729 = vst.msk [vmem:[#allocation2 + $0x78] sm:$0xff] %vm688, %v1713
      %1730 = vrot.lane.b32.xlu0 %v951, 20
      %v1731 = vpop.permute.xlu0 %1730
      %1732 = vrot.lane.b32.xlu0 %v954, 20
      %v1733 = vpop.permute.xlu0 %1732
      %1734 = vrot.lane.b32.xlu0 %v957, 20
      %v1735 = vpop.permute.xlu0 %1734
      %1736 = vrot.lane.b32.xlu0 %v960, 20
      %v1737 = vpop.permute.xlu0 %1736
      %1738 = vrot.lane.b32.xlu0 %v963, 20
      %v1739 = vpop.permute.xlu0 %1738
      %1740 = vrot.lane.b32.xlu0 %v966, 20
      %v1741 = vpop.permute.xlu0 %1740
      %1742 = vrot.lane.b32.xlu0 %v969, 20
      %v1743 = vpop.permute.xlu0 %1742
      %1744 = vrot.lane.b32.xlu0 %v1076, 20
      %v1745 = vpop.permute.xlu0 %1744
      %1754 = vst.msk [vmem:[#allocation2 + $0x40] sm:$0xff] %vm724, %v1731
      %1755 = vst.msk [vmem:[#allocation2 + $0x48] sm:$0xff] %vm724, %v1733
      %1756 = vst.msk [vmem:[#allocation2 + $0x50] sm:$0xff] %vm724, %v1735
      %1757 = vst.msk [vmem:[#allocation2 + $0x58] sm:$0xff] %vm724, %v1737
      %1758 = vst.msk [vmem:[#allocation2 + $0x60] sm:$0xff] %vm724, %v1739
      %1759 = vst.msk [vmem:[#allocation2 + $0x68] sm:$0xff] %vm724, %v1741
      %1760 = vst.msk [vmem:[#allocation2 + $0x70] sm:$0xff] %vm724, %v1743
      %1761 = vst.msk [vmem:[#allocation2 + $0x78] sm:$0xff] %vm724, %v1745
      %1762 = vrot.lane.b32.xlu0 %v386, 24
      %v1763 = vpop.permute.xlu0 %1762
      %1764 = vrot.lane.b32.xlu0 %v388, 24
      %v1765 = vpop.permute.xlu0 %1764
      %1766 = vrot.lane.b32.xlu0 %v390, 24
      %v1767 = vpop.permute.xlu0 %1766
      %1768 = vrot.lane.b32.xlu0 %v392, 24
      %v1769 = vpop.permute.xlu0 %1768
      %1770 = vrot.lane.b32.xlu0 %v394, 24
      %v1771 = vpop.permute.xlu0 %1770
      %1772 = vrot.lane.b32.xlu0 %v396, 24
      %v1773 = vpop.permute.xlu0 %1772
      %1774 = vrot.lane.b32.xlu0 %v398, 24
      %v1775 = vpop.permute.xlu0 %1774
      %1776 = vrot.lane.b32.xlu0 %v400, 24
      %v1777 = vpop.permute.xlu0 %1776
      %1786 = vst.msk [vmem:[#allocation2 + $0x40] sm:$0xff] %vm758, %v1763
      %1787 = vst.msk [vmem:[#allocation2 + $0x48] sm:$0xff] %vm758, %v1765
      %1788 = vst.msk [vmem:[#allocation2 + $0x50] sm:$0xff] %vm758, %v1767
      %1789 = vst.msk [vmem:[#allocation2 + $0x58] sm:$0xff] %vm758, %v1769
      %1790 = vst.msk [vmem:[#allocation2 + $0x60] sm:$0xff] %vm758, %v1771
      %1791 = vst.msk [vmem:[#allocation2 + $0x68] sm:$0xff] %vm758, %v1773
      %1792 = vst.msk [vmem:[#allocation2 + $0x70] sm:$0xff] %vm758, %v1775
      %1793 = vst.msk [vmem:[#allocation2 + $0x78] sm:$0xff] %vm758, %v1777
      %1794 = vrot.lane.b32.xlu0 %v897, 28
      %v1795 = vpop.permute.xlu0 %1794
      %1796 = vrot.lane.b32.xlu0 %v900, 28
      %v1797 = vpop.permute.xlu0 %1796
      %1798 = vrot.lane.b32.xlu0 %v903, 28
      %v1799 = vpop.permute.xlu0 %1798
      %1800 = vrot.lane.b32.xlu0 %v906, 28
      %v1801 = vpop.permute.xlu0 %1800
      %1802 = vrot.lane.b32.xlu0 %v909, 28
      %v1803 = vpop.permute.xlu0 %1802
      %1804 = vrot.lane.b32.xlu0 %v912, 28
      %v1805 = vpop.permute.xlu0 %1804
      %1806 = vrot.lane.b32.xlu0 %v1040, 28
      %v1807 = vpop.permute.xlu0 %1806
      %1808 = vrot.lane.b32.xlu0 %v1147, 28
      %v1809 = vpop.permute.xlu0 %1808
      %1818 = vst.msk [vmem:[#allocation2 + $0x40] sm:$0xff] %vm795, %v1795
      %1819 = vst.msk [vmem:[#allocation2 + $0x48] sm:$0xff] %vm795, %v1797
      %1820 = vst.msk [vmem:[#allocation2 + $0x50] sm:$0xff] %vm795, %v1799
      %1821 = vst.msk [vmem:[#allocation2 + $0x58] sm:$0xff] %vm795, %v1801
      %1822 = vst.msk [vmem:[#allocation2 + $0x60] sm:$0xff] %vm795, %v1803
      %1823 = vst.msk [vmem:[#allocation2 + $0x68] sm:$0xff] %vm795, %v1805
      %1824 = vst.msk [vmem:[#allocation2 + $0x70] sm:$0xff] %vm795, %v1807
      %1825 = vst.msk [vmem:[#allocation2 + $0x78] sm:$0xff] %vm795, %v1809
      %1826 = vrot.lane.b32.xlu0 %v954, 32
      %v1827 = vpop.permute.xlu0 %1826
      %1828 = vrot.lane.b32.xlu0 %v957, 32
      %v1829 = vpop.permute.xlu0 %1828
      %1830 = vrot.lane.b32.xlu0 %v960, 32
      %v1831 = vpop.permute.xlu0 %1830
      %1832 = vrot.lane.b32.xlu0 %v963, 32
      %v1833 = vpop.permute.xlu0 %1832
      %1834 = vrot.lane.b32.xlu0 %v966, 32
      %v1835 = vpop.permute.xlu0 %1834
      %1836 = vrot.lane.b32.xlu0 %v969, 32
      %v1837 = vpop.permute.xlu0 %1836
      %1838 = vrot.lane.b32.xlu0 %v1076, 32
      %v1839 = vpop.permute.xlu0 %1838
      %1840 = vrot.lane.b32.xlu0 %v1183, 32
      %v1841 = vpop.permute.xlu0 %1840
      %1850 = vst.msk [vmem:[#allocation2 + $0x40] sm:$0xff] %vm831, %v1827
      %1851 = vst.msk [vmem:[#allocation2 + $0x48] sm:$0xff] %vm831, %v1829
      %1852 = vst.msk [vmem:[#allocation2 + $0x50] sm:$0xff] %vm831, %v1831
      %1853 = vst.msk [vmem:[#allocation2 + $0x58] sm:$0xff] %vm831, %v1833
      %1854 = vst.msk [vmem:[#allocation2 + $0x60] sm:$0xff] %vm831, %v1835
      %1855 = vst.msk [vmem:[#allocation2 + $0x68] sm:$0xff] %vm831, %v1837
      %1856 = vst.msk [vmem:[#allocation2 + $0x70] sm:$0xff] %vm831, %v1839
      %1857 = vst.msk [vmem:[#allocation2 + $0x78] sm:$0xff] %vm831, %v1841
      %1858 = vrot.lane.b32.xlu0 %v403, 36
      %v1859 = vpop.permute.xlu0 %1858
      %1860 = vrot.lane.b32.xlu0 %v405, 36
      %v1861 = vpop.permute.xlu0 %1860
      %1862 = vrot.lane.b32.xlu0 %v407, 36
      %v1863 = vpop.permute.xlu0 %1862
      %1864 = vrot.lane.b32.xlu0 %v409, 36
      %v1865 = vpop.permute.xlu0 %1864
      %1866 = vrot.lane.b32.xlu0 %v411, 36
      %v1867 = vpop.permute.xlu0 %1866
      %1868 = vrot.lane.b32.xlu0 %v413, 36
      %v1869 = vpop.permute.xlu0 %1868
      %1870 = vrot.lane.b32.xlu0 %v415, 36
      %v1871 = vpop.permute.xlu0 %1870
      %1872 = vrot.lane.b32.xlu0 %v417, 36
      %v1873 = vpop.permute.xlu0 %1872
      %1882 = vst.msk [vmem:[#allocation2 + $0x40] sm:$0xff] %vm872, %v1859
      %1883 = vst.msk [vmem:[#allocation2 + $0x48] sm:$0xff] %vm872, %v1861
      %1884 = vst.msk [vmem:[#allocation2 + $0x50] sm:$0xff] %vm872, %v1863
      %1885 = vst.msk [vmem:[#allocation2 + $0x58] sm:$0xff] %vm872, %v1865
      %1886 = vst.msk [vmem:[#allocation2 + $0x60] sm:$0xff] %vm872, %v1867
      %1887 = vst.msk [vmem:[#allocation2 + $0x68] sm:$0xff] %vm872, %v1869
      %1888 = vst.msk [vmem:[#allocation2 + $0x70] sm:$0xff] %vm872, %v1871
      %1889 = vst.msk [vmem:[#allocation2 + $0x78] sm:$0xff] %vm872, %v1873
      %1890 = vrot.lane.b32.xlu0 %v1268, 40
      %v1891 = vpop.permute.xlu0 %1890
      %1892 = vrot.lane.b32.xlu0 %v1271, 40
      %v1893 = vpop.permute.xlu0 %1892
      %1894 = vrot.lane.b32.xlu0 %v1274, 40
      %v1895 = vpop.permute.xlu0 %1894
      %1896 = vrot.lane.b32.xlu0 %v1277, 40
      %v1897 = vpop.permute.xlu0 %1896
      %1898 = vrot.lane.b32.xlu0 %v1280, 40
      %v1899 = vpop.permute.xlu0 %1898
      %1900 = vrot.lane.b32.xlu0 %v1283, 40
      %v1901 = vpop.permute.xlu0 %1900
      %1902 = vrot.lane.b32.xlu0 %v1286, 40
      %v1903 = vpop.permute.xlu0 %1902
      %1904 = vrot.lane.b32.xlu0 %v1289, 40
      %v1905 = vpop.permute.xlu0 %1904
      %1914 = vst.msk [vmem:[#allocation2 + $0x40] sm:$0xff] %vm937, %v1891
      %1915 = vst.msk [vmem:[#allocation2 + $0x48] sm:$0xff] %vm937, %v1893
      %1916 = vst.msk [vmem:[#allocation2 + $0x50] sm:$0xff] %vm937, %v1895
      %1917 = vst.msk [vmem:[#allocation2 + $0x58] sm:$0xff] %vm937, %v1897
      %1918 = vst.msk [vmem:[#allocation2 + $0x60] sm:$0xff] %vm937, %v1899
      %1919 = vst.msk [vmem:[#allocation2 + $0x68] sm:$0xff] %vm937, %v1901
      %1920 = vst.msk [vmem:[#allocation2 + $0x70] sm:$0xff] %vm937, %v1903
      %1921 = vst.msk [vmem:[#allocation2 + $0x78] sm:$0xff] %vm937, %v1905
      %1922 = vrot.lane.b32.xlu0 %v1325, 44
      %v1923 = vpop.permute.xlu0 %1922
      %1924 = vrot.lane.b32.xlu0 %v1328, 44
      %v1925 = vpop.permute.xlu0 %1924
      %1926 = vrot.lane.b32.xlu0 %v1331, 44
      %v1927 = vpop.permute.xlu0 %1926
      %1928 = vrot.lane.b32.xlu0 %v1334, 44
      %v1929 = vpop.permute.xlu0 %1928
      %1930 = vrot.lane.b32.xlu0 %v1337, 44
      %v1931 = vpop.permute.xlu0 %1930
      %1932 = vrot.lane.b32.xlu0 %v1340, 44
      %v1933 = vpop.permute.xlu0 %1932
      %1934 = vrot.lane.b32.xlu0 %v1343, 44
      %v1935 = vpop.permute.xlu0 %1934
      %1936 = vrot.lane.b32.xlu0 %v1346, 44
      %v1937 = vpop.permute.xlu0 %1936
      %1946 = vst.msk [vmem:[#allocation2 + $0x40] sm:$0xff] %vm994, %v1923
      %1947 = vst.msk [vmem:[#allocation2 + $0x48] sm:$0xff] %vm994, %v1925
      %1948 = vst.msk [vmem:[#allocation2 + $0x50] sm:$0xff] %vm994, %v1927
      %1949 = vst.msk [vmem:[#allocation2 + $0x58] sm:$0xff] %vm994, %v1929
      %1950 = vst.msk [vmem:[#allocation2 + $0x60] sm:$0xff] %vm994, %v1931
      %1951 = vst.msk [vmem:[#allocation2 + $0x68] sm:$0xff] %vm994, %v1933
      %1952 = vst.msk [vmem:[#allocation2 + $0x70] sm:$0xff] %vm994, %v1935
      %1953 = vst.msk [vmem:[#allocation2 + $0x78] sm:$0xff] %vm994, %v1937
      %1954 = vrot.lane.b32.xlu0 %v405, 48
      %v1955 = vpop.permute.xlu0 %1954
      %1956 = vrot.lane.b32.xlu0 %v407, 48
      %v1957 = vpop.permute.xlu0 %1956
      %1958 = vrot.lane.b32.xlu0 %v409, 48
      %v1959 = vpop.permute.xlu0 %1958
      %1960 = vrot.lane.b32.xlu0 %v411, 48
      %v1961 = vpop.permute.xlu0 %1960
      %1962 = vrot.lane.b32.xlu0 %v413, 48
      %v1963 = vpop.permute.xlu0 %1962
      %1964 = vrot.lane.b32.xlu0 %v415, 48
      %v1965 = vpop.permute.xlu0 %1964
      %1966 = vrot.lane.b32.xlu0 %v417, 48
      %v1967 = vpop.permute.xlu0 %1966
      %1968 = vrot.lane.b32.xlu0 %v419, 48
      %v1969 = vpop.permute.xlu0 %1968
      %1978 = vst.msk [vmem:[#allocation2 + $0x40] sm:$0xff] %vm1028, %v1955
      %1979 = vst.msk [vmem:[#allocation2 + $0x48] sm:$0xff] %vm1028, %v1957
      %1980 = vst.msk [vmem:[#allocation2 + $0x50] sm:$0xff] %vm1028, %v1959
      %1981 = vst.msk [vmem:[#allocation2 + $0x58] sm:$0xff] %vm1028, %v1961
      %1982 = vst.msk [vmem:[#allocation2 + $0x60] sm:$0xff] %vm1028, %v1963
      %1983 = vst.msk [vmem:[#allocation2 + $0x68] sm:$0xff] %vm1028, %v1965
      %1984 = vst.msk [vmem:[#allocation2 + $0x70] sm:$0xff] %vm1028, %v1967
      %1985 = vst.msk [vmem:[#allocation2 + $0x78] sm:$0xff] %vm1028, %v1969
      %1986 = vrot.lane.b32.xlu0 %v1271, 52
      %v1987 = vpop.permute.xlu0 %1986
      %1988 = vrot.lane.b32.xlu0 %v1274, 52
      %v1989 = vpop.permute.xlu0 %1988
      %1990 = vrot.lane.b32.xlu0 %v1277, 52
      %v1991 = vpop.permute.xlu0 %1990
      %1992 = vrot.lane.b32.xlu0 %v1280, 52
      %v1993 = vpop.permute.xlu0 %1992
      %1994 = vrot.lane.b32.xlu0 %v1283, 52
      %v1995 = vpop.permute.xlu0 %1994
      %1996 = vrot.lane.b32.xlu0 %v1286, 52
      %v1997 = vpop.permute.xlu0 %1996
      %1998 = vrot.lane.b32.xlu0 %v1289, 52
      %v1999 = vpop.permute.xlu0 %1998
      %2000 = vrot.lane.b32.xlu0 %v1417, 52
      %v2001 = vpop.permute.xlu0 %2000
      %2010 = vst.msk [vmem:[#allocation2 + $0x40] sm:$0xff] %vm1065, %v1987
      %2011 = vst.msk [vmem:[#allocation2 + $0x48] sm:$0xff] %vm1065, %v1989
      %2012 = vst.msk [vmem:[#allocation2 + $0x50] sm:$0xff] %vm1065, %v1991
      %2013 = vst.msk [vmem:[#allocation2 + $0x58] sm:$0xff] %vm1065, %v1993
      %2014 = vst.msk [vmem:[#allocation2 + $0x60] sm:$0xff] %vm1065, %v1995
      %2015 = vst.msk [vmem:[#allocation2 + $0x68] sm:$0xff] %vm1065, %v1997
      %2016 = vst.msk [vmem:[#allocation2 + $0x70] sm:$0xff] %vm1065, %v1999
      %2017 = vst.msk [vmem:[#allocation2 + $0x78] sm:$0xff] %vm1065, %v2001
      %2018 = vrot.lane.b32.xlu0 %v1328, 56
      %v2019 = vpop.permute.xlu0 %2018
      %2020 = vrot.lane.b32.xlu0 %v1331, 56
      %v2021 = vpop.permute.xlu0 %2020
      %2022 = vrot.lane.b32.xlu0 %v1334, 56
      %v2023 = vpop.permute.xlu0 %2022
      %2024 = vrot.lane.b32.xlu0 %v1337, 56
      %v2025 = vpop.permute.xlu0 %2024
      %2026 = vrot.lane.b32.xlu0 %v1340, 56
      %v2027 = vpop.permute.xlu0 %2026
      %2028 = vrot.lane.b32.xlu0 %v1343, 56
      %v2029 = vpop.permute.xlu0 %2028
      %2030 = vrot.lane.b32.xlu0 %v1346, 56
      %v2031 = vpop.permute.xlu0 %2030
      %2032 = vrot.lane.b32.xlu0 %v1453, 56
      %v2033 = vpop.permute.xlu0 %2032
      %2042 = vst.msk [vmem:[#allocation2 + $0x40] sm:$0xff] %vm1101, %v2019
      %2043 = vst.msk [vmem:[#allocation2 + $0x48] sm:$0xff] %vm1101, %v2021
      %2044 = vst.msk [vmem:[#allocation2 + $0x50] sm:$0xff] %vm1101, %v2023
      %2045 = vst.msk [vmem:[#allocation2 + $0x58] sm:$0xff] %vm1101, %v2025
      %2046 = vst.msk [vmem:[#allocation2 + $0x60] sm:$0xff] %vm1101, %v2027
      %2047 = vst.msk [vmem:[#allocation2 + $0x68] sm:$0xff] %vm1101, %v2029
      %2048 = vst.msk [vmem:[#allocation2 + $0x70] sm:$0xff] %vm1101, %v2031
      %2049 = vst.msk [vmem:[#allocation2 + $0x78] sm:$0xff] %vm1101, %v2033
      %2050 = vrot.lane.b32.xlu0 %v407, 60
      %v2051 = vpop.permute.xlu0 %2050
      %2052 = vrot.lane.b32.xlu0 %v409, 60
      %v2053 = vpop.permute.xlu0 %2052
      %2054 = vrot.lane.b32.xlu0 %v411, 60
      %v2055 = vpop.permute.xlu0 %2054
      %2056 = vrot.lane.b32.xlu0 %v413, 60
      %v2057 = vpop.permute.xlu0 %2056
      %2058 = vrot.lane.b32.xlu0 %v415, 60
      %v2059 = vpop.permute.xlu0 %2058
      %2060 = vrot.lane.b32.xlu0 %v417, 60
      %v2061 = vpop.permute.xlu0 %2060
      %2062 = vrot.lane.b32.xlu0 %v419, 60
      %v2063 = vpop.permute.xlu0 %2062
      %2064 = vrot.lane.b32.xlu0 %v421, 60
      %v2065 = vpop.permute.xlu0 %2064
      %2074 = vst.msk [vmem:[#allocation2 + $0x40] sm:$0xff] %vm1135, %v2051
      %2075 = vst.msk [vmem:[#allocation2 + $0x48] sm:$0xff] %vm1135, %v2053
      %2076 = vst.msk [vmem:[#allocation2 + $0x50] sm:$0xff] %vm1135, %v2055
      %2077 = vst.msk [vmem:[#allocation2 + $0x58] sm:$0xff] %vm1135, %v2057
      %2078 = vst.msk [vmem:[#allocation2 + $0x60] sm:$0xff] %vm1135, %v2059
      %2079 = vst.msk [vmem:[#allocation2 + $0x68] sm:$0xff] %vm1135, %v2061
      %2080 = vst.msk [vmem:[#allocation2 + $0x70] sm:$0xff] %vm1135, %v2063
      %2081 = vst.msk [vmem:[#allocation2 + $0x78] sm:$0xff] %vm1135, %v2065
      %2082 = vrot.lane.b32.xlu0 %v1274, 64
      %v2083 = vpop.permute.xlu0 %2082
      %2084 = vrot.lane.b32.xlu0 %v1277, 64
      %v2085 = vpop.permute.xlu0 %2084
      %2086 = vrot.lane.b32.xlu0 %v1280, 64
      %v2087 = vpop.permute.xlu0 %2086
      %2088 = vrot.lane.b32.xlu0 %v1283, 64
      %v2089 = vpop.permute.xlu0 %2088
      %2090 = vrot.lane.b32.xlu0 %v1286, 64
      %v2091 = vpop.permute.xlu0 %2090
      %2092 = vrot.lane.b32.xlu0 %v1289, 64
      %v2093 = vpop.permute.xlu0 %2092
      %2094 = vrot.lane.b32.xlu0 %v1417, 64
      %v2095 = vpop.permute.xlu0 %2094
      %2096 = vrot.lane.b32.xlu0 %v1524, 64
      %v2097 = vpop.permute.xlu0 %2096
      %2106 = vst.msk [vmem:[#allocation2 + $0x40] sm:$0xff] %vm1172, %v2083
      %2107 = vst.msk [vmem:[#allocation2 + $0x48] sm:$0xff] %vm1172, %v2085
      %2108 = vst.msk [vmem:[#allocation2 + $0x50] sm:$0xff] %vm1172, %v2087
      %2109 = vst.msk [vmem:[#allocation2 + $0x58] sm:$0xff] %vm1172, %v2089
      %2110 = vst.msk [vmem:[#allocation2 + $0x60] sm:$0xff] %vm1172, %v2091
      %2111 = vst.msk [vmem:[#allocation2 + $0x68] sm:$0xff] %vm1172, %v2093
      %2112 = vst.msk [vmem:[#allocation2 + $0x70] sm:$0xff] %vm1172, %v2095
      %2113 = vst.msk [vmem:[#allocation2 + $0x78] sm:$0xff] %vm1172, %v2097
      %2114 = vrot.lane.b32.xlu0 %v1331, 68
      %v2115 = vpop.permute.xlu0 %2114
      %2116 = vrot.lane.b32.xlu0 %v1334, 68
      %v2117 = vpop.permute.xlu0 %2116
      %2118 = vrot.lane.b32.xlu0 %v1337, 68
      %v2119 = vpop.permute.xlu0 %2118
      %2120 = vrot.lane.b32.xlu0 %v1340, 68
      %v2121 = vpop.permute.xlu0 %2120
      %2122 = vrot.lane.b32.xlu0 %v1343, 68
      %v2123 = vpop.permute.xlu0 %2122
      %2124 = vrot.lane.b32.xlu0 %v1346, 68
      %v2125 = vpop.permute.xlu0 %2124
      %2126 = vrot.lane.b32.xlu0 %v1453, 68
      %v2127 = vpop.permute.xlu0 %2126
      %2128 = vrot.lane.b32.xlu0 %v1560, 68
      %v2129 = vpop.permute.xlu0 %2128
      %2138 = vst.msk [vmem:[#allocation2 + $0x40] sm:$0xff] %vm1208, %v2115
      %2139 = vst.msk [vmem:[#allocation2 + $0x48] sm:$0xff] %vm1208, %v2117
      %2140 = vst.msk [vmem:[#allocation2 + $0x50] sm:$0xff] %vm1208, %v2119
      %2141 = vst.msk [vmem:[#allocation2 + $0x58] sm:$0xff] %vm1208, %v2121
      %2142 = vst.msk [vmem:[#allocation2 + $0x60] sm:$0xff] %vm1208, %v2123
      %2143 = vst.msk [vmem:[#allocation2 + $0x68] sm:$0xff] %vm1208, %v2125
      %2144 = vst.msk [vmem:[#allocation2 + $0x70] sm:$0xff] %vm1208, %v2127
      %2145 = vst.msk [vmem:[#allocation2 + $0x78] sm:$0xff] %vm1208, %v2129
      %2154 = vrot.lane.b32.xlu0 %v424, 72
      %v2155 = vpop.permute.xlu0 %2154
      %2156 = vrot.lane.b32.xlu0 %v426, 72
      %v2157 = vpop.permute.xlu0 %2156
      %2158 = vrot.lane.b32.xlu0 %v428, 72
      %v2159 = vpop.permute.xlu0 %2158
      %2160 = vrot.lane.b32.xlu0 %v430, 72
      %v2161 = vpop.permute.xlu0 %2160
      %2162 = vrot.lane.b32.xlu0 %v432, 72
      %v2163 = vpop.permute.xlu0 %2162
      %2164 = vrot.lane.b32.xlu0 %v434, 72
      %v2165 = vpop.permute.xlu0 %2164
      %2166 = vrot.lane.b32.xlu0 %v436, 72
      %v2167 = vpop.permute.xlu0 %2166
      %2168 = vrot.lane.b32.xlu0 %v438, 72
      %v2169 = vpop.permute.xlu0 %2168
      %2178 = vst.msk [vmem:[#allocation2 + $0x40] sm:$0xff] %vm1249, %v2155
      %2179 = vst.msk [vmem:[#allocation2 + $0x48] sm:$0xff] %vm1249, %v2157
      %2180 = vst.msk [vmem:[#allocation2 + $0x50] sm:$0xff] %vm1249, %v2159
      %2181 = vst.msk [vmem:[#allocation2 + $0x58] sm:$0xff] %vm1249, %v2161
      %2182 = vst.msk [vmem:[#allocation2 + $0x60] sm:$0xff] %vm1249, %v2163
      %2183 = vst.msk [vmem:[#allocation2 + $0x68] sm:$0xff] %vm1249, %v2165
      %2184 = vst.msk [vmem:[#allocation2 + $0x70] sm:$0xff] %vm1249, %v2167
      %2185 = vst.msk [vmem:[#allocation2 + $0x78] sm:$0xff] %vm1249, %v2169
      %v2194 = vrot.slane %v424, 1
      %v2195 = vrot.slane %v425, 1
      %v2196 = vsel %vm510, %v2194, %v2195
      %v2197 = vrot.slane %v426, 1
      %v2198 = vrot.slane %v427, 1
      %v2199 = vsel %vm510, %v2197, %v2198
      %v2200 = vrot.slane %v428, 1
      %v2201 = vrot.slane %v429, 1
      %v2202 = vsel %vm510, %v2200, %v2201
      %v2203 = vrot.slane %v430, 1
      %v2204 = vrot.slane %v431, 1
      %v2205 = vsel %vm510, %v2203, %v2204
      %v2206 = vrot.slane %v432, 1
      %v2207 = vrot.slane %v433, 1
      %v2208 = vsel %vm510, %v2206, %v2207
      %v2209 = vrot.slane %v434, 1
      %v2210 = vrot.slane %v435, 1
      %v2211 = vsel %vm510, %v2209, %v2210
      %v2212 = vrot.slane %v436, 1
      %v2213 = vrot.slane %v437, 1
      %v2214 = vsel %vm510, %v2212, %v2213
      %v2215 = vrot.slane %v438, 1
      %v2216 = vrot.slane %v439, 1
      %v2217 = vsel %vm510, %v2215, %v2216
      %2218 = vrot.lane.b32.xlu0 %v2196, 76
      %v2219 = vpop.permute.xlu0 %2218
      %2220 = vrot.lane.b32.xlu0 %v2199, 76
      %v2221 = vpop.permute.xlu0 %2220
      %2222 = vrot.lane.b32.xlu0 %v2202, 76
      %v2223 = vpop.permute.xlu0 %2222
      %2224 = vrot.lane.b32.xlu0 %v2205, 76
      %v2225 = vpop.permute.xlu0 %2224
      %2226 = vrot.lane.b32.xlu0 %v2208, 76
      %v2227 = vpop.permute.xlu0 %2226
      %2228 = vrot.lane.b32.xlu0 %v2211, 76
      %v2229 = vpop.permute.xlu0 %2228
      %2230 = vrot.lane.b32.xlu0 %v2214, 76
      %v2231 = vpop.permute.xlu0 %2230
      %2232 = vrot.lane.b32.xlu0 %v2217, 76
      %v2233 = vpop.permute.xlu0 %2232
      %2242 = vst.msk [vmem:[#allocation2 + $0x40] sm:$0xff] %vm1314, %v2219
      %2243 = vst.msk [vmem:[#allocation2 + $0x48] sm:$0xff] %vm1314, %v2221
      %2244 = vst.msk [vmem:[#allocation2 + $0x50] sm:$0xff] %vm1314, %v2223
      %2245 = vst.msk [vmem:[#allocation2 + $0x58] sm:$0xff] %vm1314, %v2225
      %2246 = vst.msk [vmem:[#allocation2 + $0x60] sm:$0xff] %vm1314, %v2227
      %2247 = vst.msk [vmem:[#allocation2 + $0x68] sm:$0xff] %vm1314, %v2229
      %2248 = vst.msk [vmem:[#allocation2 + $0x70] sm:$0xff] %vm1314, %v2231
      %2249 = vst.msk [vmem:[#allocation2 + $0x78] sm:$0xff] %vm1314, %v2233
      %v2250 = vrot.slane %v424, 2
      %v2251 = vrot.slane %v425, 2
      %v2252 = vsel %vm568, %v2250, %v2251
      %v2253 = vrot.slane %v426, 2
      %v2254 = vrot.slane %v427, 2
      %v2255 = vsel %vm568, %v2253, %v2254
      %v2256 = vrot.slane %v428, 2
      %v2257 = vrot.slane %v429, 2
      %v2258 = vsel %vm568, %v2256, %v2257
      %v2259 = vrot.slane %v430, 2
      %v2260 = vrot.slane %v431, 2
      %v2261 = vsel %vm568, %v2259, %v2260
      %v2262 = vrot.slane %v432, 2
      %v2263 = vrot.slane %v433, 2
      %v2264 = vsel %vm568, %v2262, %v2263
      %v2265 = vrot.slane %v434, 2
      %v2266 = vrot.slane %v435, 2
      %v2267 = vsel %vm568, %v2265, %v2266
      %v2268 = vrot.slane %v436, 2
      %v2269 = vrot.slane %v437, 2
      %v2270 = vsel %vm568, %v2268, %v2269
      %v2271 = vrot.slane %v438, 2
      %v2272 = vrot.slane %v439, 2
      %v2273 = vsel %vm568, %v2271, %v2272
      %2274 = vrot.lane.b32.xlu0 %v2252, 80
      %v2275 = vpop.permute.xlu0 %2274
      %2276 = vrot.lane.b32.xlu0 %v2255, 80
      %v2277 = vpop.permute.xlu0 %2276
      %2278 = vrot.lane.b32.xlu0 %v2258, 80
      %v2279 = vpop.permute.xlu0 %2278
      %2280 = vrot.lane.b32.xlu0 %v2261, 80
      %v2281 = vpop.permute.xlu0 %2280
      %2282 = vrot.lane.b32.xlu0 %v2264, 80
      %v2283 = vpop.permute.xlu0 %2282
      %2284 = vrot.lane.b32.xlu0 %v2267, 80
      %v2285 = vpop.permute.xlu0 %2284
      %2286 = vrot.lane.b32.xlu0 %v2270, 80
      %v2287 = vpop.permute.xlu0 %2286
      %2288 = vrot.lane.b32.xlu0 %v2273, 80
      %v2289 = vpop.permute.xlu0 %2288
      %2298 = vst.msk [vmem:[#allocation2 + $0x40] sm:$0xff] %vm1371, %v2275
      %2299 = vst.msk [vmem:[#allocation2 + $0x48] sm:$0xff] %vm1371, %v2277
      %2300 = vst.msk [vmem:[#allocation2 + $0x50] sm:$0xff] %vm1371, %v2279
      %2301 = vst.msk [vmem:[#allocation2 + $0x58] sm:$0xff] %vm1371, %v2281
      %2302 = vst.msk [vmem:[#allocation2 + $0x60] sm:$0xff] %vm1371, %v2283
      %2303 = vst.msk [vmem:[#allocation2 + $0x68] sm:$0xff] %vm1371, %v2285
      %2304 = vst.msk [vmem:[#allocation2 + $0x70] sm:$0xff] %vm1371, %v2287
      %2305 = vst.msk [vmem:[#allocation2 + $0x78] sm:$0xff] %vm1371, %v2289
      %2307 = vrot.lane.b32.xlu0 %v426, 84
      %v2308 = vpop.permute.xlu0 %2307
      %2309 = vrot.lane.b32.xlu0 %v428, 84
      %v2310 = vpop.permute.xlu0 %2309
      %2311 = vrot.lane.b32.xlu0 %v430, 84
      %v2312 = vpop.permute.xlu0 %2311
      %2313 = vrot.lane.b32.xlu0 %v432, 84
      %v2314 = vpop.permute.xlu0 %2313
      %2315 = vrot.lane.b32.xlu0 %v434, 84
      %v2316 = vpop.permute.xlu0 %2315
      %2317 = vrot.lane.b32.xlu0 %v436, 84
      %v2318 = vpop.permute.xlu0 %2317
      %2319 = vrot.lane.b32.xlu0 %v438, 84
      %v2320 = vpop.permute.xlu0 %2319
      %2321 = vrot.lane.b32.xlu0 %v440, 84
      %v2322 = vpop.permute.xlu0 %2321
      %2331 = vst.msk [vmem:[#allocation2 + $0x40] sm:$0xff] %vm1405, %v2308
      %2332 = vst.msk [vmem:[#allocation2 + $0x48] sm:$0xff] %vm1405, %v2310
      %2333 = vst.msk [vmem:[#allocation2 + $0x50] sm:$0xff] %vm1405, %v2312
      %2334 = vst.msk [vmem:[#allocation2 + $0x58] sm:$0xff] %vm1405, %v2314
      %2335 = vst.msk [vmem:[#allocation2 + $0x60] sm:$0xff] %vm1405, %v2316
      %2336 = vst.msk [vmem:[#allocation2 + $0x68] sm:$0xff] %vm1405, %v2318
      %2337 = vst.msk [vmem:[#allocation2 + $0x70] sm:$0xff] %vm1405, %v2320
      %2338 = vst.msk [vmem:[#allocation2 + $0x78] sm:$0xff] %vm1405, %v2322
      %v2340 = vrot.slane %v440, 1
      %v2341 = vrot.slane %v441, 1
      %v2342 = vsel %vm510, %v2340, %v2341
      %2343 = vrot.lane.b32.xlu0 %v2199, 88
      %v2344 = vpop.permute.xlu0 %2343
      %2345 = vrot.lane.b32.xlu0 %v2202, 88
      %v2346 = vpop.permute.xlu0 %2345
      %2347 = vrot.lane.b32.xlu0 %v2205, 88
      %v2348 = vpop.permute.xlu0 %2347
      %2349 = vrot.lane.b32.xlu0 %v2208, 88
      %v2350 = vpop.permute.xlu0 %2349
      %2351 = vrot.lane.b32.xlu0 %v2211, 88
      %v2352 = vpop.permute.xlu0 %2351
      %2353 = vrot.lane.b32.xlu0 %v2214, 88
      %v2354 = vpop.permute.xlu0 %2353
      %2355 = vrot.lane.b32.xlu0 %v2217, 88
      %v2356 = vpop.permute.xlu0 %2355
      %2357 = vrot.lane.b32.xlu0 %v2342, 88
      %v2358 = vpop.permute.xlu0 %2357
      %2367 = vst.msk [vmem:[#allocation2 + $0x40] sm:$0xff] %vm1442, %v2344
      %2368 = vst.msk [vmem:[#allocation2 + $0x48] sm:$0xff] %vm1442, %v2346
      %2369 = vst.msk [vmem:[#allocation2 + $0x50] sm:$0xff] %vm1442, %v2348
      %2370 = vst.msk [vmem:[#allocation2 + $0x58] sm:$0xff] %vm1442, %v2350
      %2371 = vst.msk [vmem:[#allocation2 + $0x60] sm:$0xff] %vm1442, %v2352
      %2372 = vst.msk [vmem:[#allocation2 + $0x68] sm:$0xff] %vm1442, %v2354
      %2373 = vst.msk [vmem:[#allocation2 + $0x70] sm:$0xff] %vm1442, %v2356
      %2374 = vst.msk [vmem:[#allocation2 + $0x78] sm:$0xff] %vm1442, %v2358
      %v2375 = vrot.slane %v440, 2
      %v2376 = vrot.slane %v441, 2
      %v2377 = vsel %vm568, %v2375, %v2376
      %2378 = vrot.lane.b32.xlu0 %v2255, 92
      %v2379 = vpop.permute.xlu0 %2378
      %2380 = vrot.lane.b32.xlu0 %v2258, 92
      %v2381 = vpop.permute.xlu0 %2380
      %2382 = vrot.lane.b32.xlu0 %v2261, 92
      %v2383 = vpop.permute.xlu0 %2382
      %2384 = vrot.lane.b32.xlu0 %v2264, 92
      %v2385 = vpop.permute.xlu0 %2384
      %2386 = vrot.lane.b32.xlu0 %v2267, 92
      %v2387 = vpop.permute.xlu0 %2386
      %2388 = vrot.lane.b32.xlu0 %v2270, 92
      %v2389 = vpop.permute.xlu0 %2388
      %2390 = vrot.lane.b32.xlu0 %v2273, 92
      %v2391 = vpop.permute.xlu0 %2390
      %2392 = vrot.lane.b32.xlu0 %v2377, 92
      %v2393 = vpop.permute.xlu0 %2392
      %2402 = vst.msk [vmem:[#allocation2 + $0x40] sm:$0xff] %vm1478, %v2379
      %2403 = vst.msk [vmem:[#allocation2 + $0x48] sm:$0xff] %vm1478, %v2381
      %2404 = vst.msk [vmem:[#allocation2 + $0x50] sm:$0xff] %vm1478, %v2383
      %2405 = vst.msk [vmem:[#allocation2 + $0x58] sm:$0xff] %vm1478, %v2385
      %2406 = vst.msk [vmem:[#allocation2 + $0x60] sm:$0xff] %vm1478, %v2387
      %2407 = vst.msk [vmem:[#allocation2 + $0x68] sm:$0xff] %vm1478, %v2389
      %2408 = vst.msk [vmem:[#allocation2 + $0x70] sm:$0xff] %vm1478, %v2391
      %2409 = vst.msk [vmem:[#allocation2 + $0x78] sm:$0xff] %vm1478, %v2393
      %2411 = vrot.lane.b32.xlu0 %v428, 96
      %v2412 = vpop.permute.xlu0 %2411
      %2413 = vrot.lane.b32.xlu0 %v430, 96
      %v2414 = vpop.permute.xlu0 %2413
      %2415 = vrot.lane.b32.xlu0 %v432, 96
      %v2416 = vpop.permute.xlu0 %2415
      %2417 = vrot.lane.b32.xlu0 %v434, 96
      %v2418 = vpop.permute.xlu0 %2417
      %2419 = vrot.lane.b32.xlu0 %v436, 96
      %v2420 = vpop.permute.xlu0 %2419
      %2421 = vrot.lane.b32.xlu0 %v438, 96
      %v2422 = vpop.permute.xlu0 %2421
      %2423 = vrot.lane.b32.xlu0 %v440, 96
      %v2424 = vpop.permute.xlu0 %2423
      %2425 = vrot.lane.b32.xlu0 %v442, 96
      %v2426 = vpop.permute.xlu0 %2425
      %2435 = vst.msk [vmem:[#allocation2 + $0x40] sm:$0xff] %vm1512, %v2412
      %2436 = vst.msk [vmem:[#allocation2 + $0x48] sm:$0xff] %vm1512, %v2414
      %2437 = vst.msk [vmem:[#allocation2 + $0x50] sm:$0xff] %vm1512, %v2416
      %2438 = vst.msk [vmem:[#allocation2 + $0x58] sm:$0xff] %vm1512, %v2418
      %2439 = vst.msk [vmem:[#allocation2 + $0x60] sm:$0xff] %vm1512, %v2420
      %2440 = vst.msk [vmem:[#allocation2 + $0x68] sm:$0xff] %vm1512, %v2422
      %2441 = vst.msk [vmem:[#allocation2 + $0x70] sm:$0xff] %vm1512, %v2424
      %2442 = vst.msk [vmem:[#allocation2 + $0x78] sm:$0xff] %vm1512, %v2426
      %v2444 = vrot.slane %v442, 1
      %v2445 = vrot.slane %v443, 1
      %v2446 = vsel %vm510, %v2444, %v2445
      %2447 = vrot.lane.b32.xlu0 %v2202, 100
      %v2448 = vpop.permute.xlu0 %2447
      %2449 = vrot.lane.b32.xlu0 %v2205, 100
      %v2450 = vpop.permute.xlu0 %2449
      %2451 = vrot.lane.b32.xlu0 %v2208, 100
      %v2452 = vpop.permute.xlu0 %2451
      %2453 = vrot.lane.b32.xlu0 %v2211, 100
      %v2454 = vpop.permute.xlu0 %2453
      %2455 = vrot.lane.b32.xlu0 %v2214, 100
      %v2456 = vpop.permute.xlu0 %2455
      %2457 = vrot.lane.b32.xlu0 %v2217, 100
      %v2458 = vpop.permute.xlu0 %2457
      %2459 = vrot.lane.b32.xlu0 %v2342, 100
      %v2460 = vpop.permute.xlu0 %2459
      %2461 = vrot.lane.b32.xlu0 %v2446, 100
      %v2462 = vpop.permute.xlu0 %2461
      %2471 = vst.msk [vmem:[#allocation2 + $0x40] sm:$0xff] %vm1549, %v2448
      %2472 = vst.msk [vmem:[#allocation2 + $0x48] sm:$0xff] %vm1549, %v2450
      %2473 = vst.msk [vmem:[#allocation2 + $0x50] sm:$0xff] %vm1549, %v2452
      %2474 = vst.msk [vmem:[#allocation2 + $0x58] sm:$0xff] %vm1549, %v2454
      %2475 = vst.msk [vmem:[#allocation2 + $0x60] sm:$0xff] %vm1549, %v2456
      %2476 = vst.msk [vmem:[#allocation2 + $0x68] sm:$0xff] %vm1549, %v2458
      %2477 = vst.msk [vmem:[#allocation2 + $0x70] sm:$0xff] %vm1549, %v2460
      %2478 = vst.msk [vmem:[#allocation2 + $0x78] sm:$0xff] %vm1549, %v2462
      %v2479 = vrot.slane %v442, 2
      %v2480 = vrot.slane %v443, 2
      %v2481 = vsel %vm568, %v2479, %v2480
      %2482 = vrot.lane.b32.xlu0 %v2258, 104
      %v2483 = vpop.permute.xlu0 %2482
      %2484 = vrot.lane.b32.xlu0 %v2261, 104
      %v2485 = vpop.permute.xlu0 %2484
      %2486 = vrot.lane.b32.xlu0 %v2264, 104
      %v2487 = vpop.permute.xlu0 %2486
      %2488 = vrot.lane.b32.xlu0 %v2267, 104
      %v2489 = vpop.permute.xlu0 %2488
      %2490 = vrot.lane.b32.xlu0 %v2270, 104
      %v2491 = vpop.permute.xlu0 %2490
      %2492 = vrot.lane.b32.xlu0 %v2273, 104
      %v2493 = vpop.permute.xlu0 %2492
      %2494 = vrot.lane.b32.xlu0 %v2377, 104
      %v2495 = vpop.permute.xlu0 %2494
      %2496 = vrot.lane.b32.xlu0 %v2481, 104
      %v2497 = vpop.permute.xlu0 %2496
      %2506 = vst.msk [vmem:[#allocation2 + $0x40] sm:$0xff] %vm1585, %v2483
      %2507 = vst.msk [vmem:[#allocation2 + $0x48] sm:$0xff] %vm1585, %v2485
      %2508 = vst.msk [vmem:[#allocation2 + $0x50] sm:$0xff] %vm1585, %v2487
      %2509 = vst.msk [vmem:[#allocation2 + $0x58] sm:$0xff] %vm1585, %v2489
      %2510 = vst.msk [vmem:[#allocation2 + $0x60] sm:$0xff] %vm1585, %v2491
      %2511 = vst.msk [vmem:[#allocation2 + $0x68] sm:$0xff] %vm1585, %v2493
      %2512 = vst.msk [vmem:[#allocation2 + $0x70] sm:$0xff] %vm1585, %v2495
      %2513 = vst.msk [vmem:[#allocation2 + $0x78] sm:$0xff] %vm1585, %v2497
      %2514 = vst.msk [vmem:[#allocation2 + $0x80] sm:$0xff] %vm485, %v403
      %2515 = vst.msk [vmem:[#allocation2 + $0x88] sm:$0xff] %vm485, %v405
      %2516 = vst.msk [vmem:[#allocation2 + $0x90] sm:$0xff] %vm485, %v407
      %2517 = vst.msk [vmem:[#allocation2 + $0x98] sm:$0xff] %vm485, %v409
      %2518 = vst.msk [vmem:[#allocation2 + $0xa0] sm:$0xff] %vm485, %v411
      %2519 = vst.msk [vmem:[#allocation2 + $0xa8] sm:$0xff] %vm485, %v413
      %2520 = vst.msk [vmem:[#allocation2 + $0xb0] sm:$0xff] %vm485, %v415
      %2521 = vst.msk [vmem:[#allocation2 + $0xb8] sm:$0xff] %vm485, %v417
      %2522 = vrot.lane.b32.xlu0 %v1268, 4
      %v2523 = vpop.permute.xlu0 %2522
      %2524 = vrot.lane.b32.xlu0 %v1271, 4
      %v2525 = vpop.permute.xlu0 %2524
      %2526 = vrot.lane.b32.xlu0 %v1274, 4
      %v2527 = vpop.permute.xlu0 %2526
      %2528 = vrot.lane.b32.xlu0 %v1277, 4
      %v2529 = vpop.permute.xlu0 %2528
      %2530 = vrot.lane.b32.xlu0 %v1280, 4
      %v2531 = vpop.permute.xlu0 %2530
      %2532 = vrot.lane.b32.xlu0 %v1283, 4
      %v2533 = vpop.permute.xlu0 %2532
      %2534 = vrot.lane.b32.xlu0 %v1286, 4
      %v2535 = vpop.permute.xlu0 %2534
      %2536 = vrot.lane.b32.xlu0 %v1289, 4
      %v2537 = vpop.permute.xlu0 %2536
      %2546 = vst.msk [vmem:[#allocation2 + $0x80] sm:$0xff] %vm559, %v2523
      %2547 = vst.msk [vmem:[#allocation2 + $0x88] sm:$0xff] %vm559, %v2525
      %2548 = vst.msk [vmem:[#allocation2 + $0x90] sm:$0xff] %vm559, %v2527
      %2549 = vst.msk [vmem:[#allocation2 + $0x98] sm:$0xff] %vm559, %v2529
      %2550 = vst.msk [vmem:[#allocation2 + $0xa0] sm:$0xff] %vm559, %v2531
      %2551 = vst.msk [vmem:[#allocation2 + $0xa8] sm:$0xff] %vm559, %v2533
      %2552 = vst.msk [vmem:[#allocation2 + $0xb0] sm:$0xff] %vm559, %v2535
      %2553 = vst.msk [vmem:[#allocation2 + $0xb8] sm:$0xff] %vm559, %v2537
      %2554 = vrot.lane.b32.xlu0 %v1325, 8
      %v2555 = vpop.permute.xlu0 %2554
      %2556 = vrot.lane.b32.xlu0 %v1328, 8
      %v2557 = vpop.permute.xlu0 %2556
      %2558 = vrot.lane.b32.xlu0 %v1331, 8
      %v2559 = vpop.permute.xlu0 %2558
      %2560 = vrot.lane.b32.xlu0 %v1334, 8
      %v2561 = vpop.permute.xlu0 %2560
      %2562 = vrot.lane.b32.xlu0 %v1337, 8
      %v2563 = vpop.permute.xlu0 %2562
      %2564 = vrot.lane.b32.xlu0 %v1340, 8
      %v2565 = vpop.permute.xlu0 %2564
      %2566 = vrot.lane.b32.xlu0 %v1343, 8
      %v2567 = vpop.permute.xlu0 %2566
      %2568 = vrot.lane.b32.xlu0 %v1346, 8
      %v2569 = vpop.permute.xlu0 %2568
      %2578 = vst.msk [vmem:[#allocation2 + $0x80] sm:$0xff] %vm617, %v2555
      %2579 = vst.msk [vmem:[#allocation2 + $0x88] sm:$0xff] %vm617, %v2557
      %2580 = vst.msk [vmem:[#allocation2 + $0x90] sm:$0xff] %vm617, %v2559
      %2581 = vst.msk [vmem:[#allocation2 + $0x98] sm:$0xff] %vm617, %v2561
      %2582 = vst.msk [vmem:[#allocation2 + $0xa0] sm:$0xff] %vm617, %v2563
      %2583 = vst.msk [vmem:[#allocation2 + $0xa8] sm:$0xff] %vm617, %v2565
      %2584 = vst.msk [vmem:[#allocation2 + $0xb0] sm:$0xff] %vm617, %v2567
      %2585 = vst.msk [vmem:[#allocation2 + $0xb8] sm:$0xff] %vm617, %v2569
      %2586 = vrot.lane.b32.xlu0 %v405, 12
      %v2587 = vpop.permute.xlu0 %2586
      %2588 = vrot.lane.b32.xlu0 %v407, 12
      %v2589 = vpop.permute.xlu0 %2588
      %2590 = vrot.lane.b32.xlu0 %v409, 12
      %v2591 = vpop.permute.xlu0 %2590
      %2592 = vrot.lane.b32.xlu0 %v411, 12
      %v2593 = vpop.permute.xlu0 %2592
      %2594 = vrot.lane.b32.xlu0 %v413, 12
      %v2595 = vpop.permute.xlu0 %2594
      %2596 = vrot.lane.b32.xlu0 %v415, 12
      %v2597 = vpop.permute.xlu0 %2596
      %2598 = vrot.lane.b32.xlu0 %v417, 12
      %v2599 = vpop.permute.xlu0 %2598
      %2600 = vrot.lane.b32.xlu0 %v419, 12
      %v2601 = vpop.permute.xlu0 %2600
      %2610 = vst.msk [vmem:[#allocation2 + $0x80] sm:$0xff] %vm651, %v2587
      %2611 = vst.msk [vmem:[#allocation2 + $0x88] sm:$0xff] %vm651, %v2589
      %2612 = vst.msk [vmem:[#allocation2 + $0x90] sm:$0xff] %vm651, %v2591
      %2613 = vst.msk [vmem:[#allocation2 + $0x98] sm:$0xff] %vm651, %v2593
      %2614 = vst.msk [vmem:[#allocation2 + $0xa0] sm:$0xff] %vm651, %v2595
      %2615 = vst.msk [vmem:[#allocation2 + $0xa8] sm:$0xff] %vm651, %v2597
      %2616 = vst.msk [vmem:[#allocation2 + $0xb0] sm:$0xff] %vm651, %v2599
      %2617 = vst.msk [vmem:[#allocation2 + $0xb8] sm:$0xff] %vm651, %v2601
      %2618 = vrot.lane.b32.xlu0 %v1271, 16
      %v2619 = vpop.permute.xlu0 %2618
      %2620 = vrot.lane.b32.xlu0 %v1274, 16
      %v2621 = vpop.permute.xlu0 %2620
      %2622 = vrot.lane.b32.xlu0 %v1277, 16
      %v2623 = vpop.permute.xlu0 %2622
      %2624 = vrot.lane.b32.xlu0 %v1280, 16
      %v2625 = vpop.permute.xlu0 %2624
      %2626 = vrot.lane.b32.xlu0 %v1283, 16
      %v2627 = vpop.permute.xlu0 %2626
      %2628 = vrot.lane.b32.xlu0 %v1286, 16
      %v2629 = vpop.permute.xlu0 %2628
      %2630 = vrot.lane.b32.xlu0 %v1289, 16
      %v2631 = vpop.permute.xlu0 %2630
      %2632 = vrot.lane.b32.xlu0 %v1417, 16
      %v2633 = vpop.permute.xlu0 %2632
      %2642 = vst.msk [vmem:[#allocation2 + $0x80] sm:$0xff] %vm688, %v2619
      %2643 = vst.msk [vmem:[#allocation2 + $0x88] sm:$0xff] %vm688, %v2621
      %2644 = vst.msk [vmem:[#allocation2 + $0x90] sm:$0xff] %vm688, %v2623
      %2645 = vst.msk [vmem:[#allocation2 + $0x98] sm:$0xff] %vm688, %v2625
      %2646 = vst.msk [vmem:[#allocation2 + $0xa0] sm:$0xff] %vm688, %v2627
      %2647 = vst.msk [vmem:[#allocation2 + $0xa8] sm:$0xff] %vm688, %v2629
      %2648 = vst.msk [vmem:[#allocation2 + $0xb0] sm:$0xff] %vm688, %v2631
      %2649 = vst.msk [vmem:[#allocation2 + $0xb8] sm:$0xff] %vm688, %v2633
      %2650 = vrot.lane.b32.xlu0 %v1328, 20
      %v2651 = vpop.permute.xlu0 %2650
      %2652 = vrot.lane.b32.xlu0 %v1331, 20
      %v2653 = vpop.permute.xlu0 %2652
      %2654 = vrot.lane.b32.xlu0 %v1334, 20
      %v2655 = vpop.permute.xlu0 %2654
      %2656 = vrot.lane.b32.xlu0 %v1337, 20
      %v2657 = vpop.permute.xlu0 %2656
      %2658 = vrot.lane.b32.xlu0 %v1340, 20
      %v2659 = vpop.permute.xlu0 %2658
      %2660 = vrot.lane.b32.xlu0 %v1343, 20
      %v2661 = vpop.permute.xlu0 %2660
      %2662 = vrot.lane.b32.xlu0 %v1346, 20
      %v2663 = vpop.permute.xlu0 %2662
      %2664 = vrot.lane.b32.xlu0 %v1453, 20
      %v2665 = vpop.permute.xlu0 %2664
      %2674 = vst.msk [vmem:[#allocation2 + $0x80] sm:$0xff] %vm724, %v2651
      %2675 = vst.msk [vmem:[#allocation2 + $0x88] sm:$0xff] %vm724, %v2653
      %2676 = vst.msk [vmem:[#allocation2 + $0x90] sm:$0xff] %vm724, %v2655
      %2677 = vst.msk [vmem:[#allocation2 + $0x98] sm:$0xff] %vm724, %v2657
      %2678 = vst.msk [vmem:[#allocation2 + $0xa0] sm:$0xff] %vm724, %v2659
      %2679 = vst.msk [vmem:[#allocation2 + $0xa8] sm:$0xff] %vm724, %v2661
      %2680 = vst.msk [vmem:[#allocation2 + $0xb0] sm:$0xff] %vm724, %v2663
      %2681 = vst.msk [vmem:[#allocation2 + $0xb8] sm:$0xff] %vm724, %v2665
      %2682 = vrot.lane.b32.xlu0 %v407, 24
      %v2683 = vpop.permute.xlu0 %2682
      %2684 = vrot.lane.b32.xlu0 %v409, 24
      %v2685 = vpop.permute.xlu0 %2684
      %2686 = vrot.lane.b32.xlu0 %v411, 24
      %v2687 = vpop.permute.xlu0 %2686
      %2688 = vrot.lane.b32.xlu0 %v413, 24
      %v2689 = vpop.permute.xlu0 %2688
      %2690 = vrot.lane.b32.xlu0 %v415, 24
      %v2691 = vpop.permute.xlu0 %2690
      %2692 = vrot.lane.b32.xlu0 %v417, 24
      %v2693 = vpop.permute.xlu0 %2692
      %2694 = vrot.lane.b32.xlu0 %v419, 24
      %v2695 = vpop.permute.xlu0 %2694
      %2696 = vrot.lane.b32.xlu0 %v421, 24
      %v2697 = vpop.permute.xlu0 %2696
      %2706 = vst.msk [vmem:[#allocation2 + $0x80] sm:$0xff] %vm758, %v2683
      %2707 = vst.msk [vmem:[#allocation2 + $0x88] sm:$0xff] %vm758, %v2685
      %2708 = vst.msk [vmem:[#allocation2 + $0x90] sm:$0xff] %vm758, %v2687
      %2709 = vst.msk [vmem:[#allocation2 + $0x98] sm:$0xff] %vm758, %v2689
      %2710 = vst.msk [vmem:[#allocation2 + $0xa0] sm:$0xff] %vm758, %v2691
      %2711 = vst.msk [vmem:[#allocation2 + $0xa8] sm:$0xff] %vm758, %v2693
      %2712 = vst.msk [vmem:[#allocation2 + $0xb0] sm:$0xff] %vm758, %v2695
      %2713 = vst.msk [vmem:[#allocation2 + $0xb8] sm:$0xff] %vm758, %v2697
      %2714 = vrot.lane.b32.xlu0 %v1274, 28
      %v2715 = vpop.permute.xlu0 %2714
      %2716 = vrot.lane.b32.xlu0 %v1277, 28
      %v2717 = vpop.permute.xlu0 %2716
      %2718 = vrot.lane.b32.xlu0 %v1280, 28
      %v2719 = vpop.permute.xlu0 %2718
      %2720 = vrot.lane.b32.xlu0 %v1283, 28
      %v2721 = vpop.permute.xlu0 %2720
      %2722 = vrot.lane.b32.xlu0 %v1286, 28
      %v2723 = vpop.permute.xlu0 %2722
      %2724 = vrot.lane.b32.xlu0 %v1289, 28
      %v2725 = vpop.permute.xlu0 %2724
      %2726 = vrot.lane.b32.xlu0 %v1417, 28
      %v2727 = vpop.permute.xlu0 %2726
      %2728 = vrot.lane.b32.xlu0 %v1524, 28
      %v2729 = vpop.permute.xlu0 %2728
      %2738 = vst.msk [vmem:[#allocation2 + $0x80] sm:$0xff] %vm795, %v2715
      %2739 = vst.msk [vmem:[#allocation2 + $0x88] sm:$0xff] %vm795, %v2717
      %2740 = vst.msk [vmem:[#allocation2 + $0x90] sm:$0xff] %vm795, %v2719
      %2741 = vst.msk [vmem:[#allocation2 + $0x98] sm:$0xff] %vm795, %v2721
      %2742 = vst.msk [vmem:[#allocation2 + $0xa0] sm:$0xff] %vm795, %v2723
      %2743 = vst.msk [vmem:[#allocation2 + $0xa8] sm:$0xff] %vm795, %v2725
      %2744 = vst.msk [vmem:[#allocation2 + $0xb0] sm:$0xff] %vm795, %v2727
      %2745 = vst.msk [vmem:[#allocation2 + $0xb8] sm:$0xff] %vm795, %v2729
      %2746 = vrot.lane.b32.xlu0 %v1331, 32
      %v2747 = vpop.permute.xlu0 %2746
      %2748 = vrot.lane.b32.xlu0 %v1334, 32
      %v2749 = vpop.permute.xlu0 %2748
      %2750 = vrot.lane.b32.xlu0 %v1337, 32
      %v2751 = vpop.permute.xlu0 %2750
      %2752 = vrot.lane.b32.xlu0 %v1340, 32
      %v2753 = vpop.permute.xlu0 %2752
      %2754 = vrot.lane.b32.xlu0 %v1343, 32
      %v2755 = vpop.permute.xlu0 %2754
      %2756 = vrot.lane.b32.xlu0 %v1346, 32
      %v2757 = vpop.permute.xlu0 %2756
      %2758 = vrot.lane.b32.xlu0 %v1453, 32
      %v2759 = vpop.permute.xlu0 %2758
      %2760 = vrot.lane.b32.xlu0 %v1560, 32
      %v2761 = vpop.permute.xlu0 %2760
      %2770 = vst.msk [vmem:[#allocation2 + $0x80] sm:$0xff] %vm831, %v2747
      %2771 = vst.msk [vmem:[#allocation2 + $0x88] sm:$0xff] %vm831, %v2749
      %2772 = vst.msk [vmem:[#allocation2 + $0x90] sm:$0xff] %vm831, %v2751
      %2773 = vst.msk [vmem:[#allocation2 + $0x98] sm:$0xff] %vm831, %v2753
      %2774 = vst.msk [vmem:[#allocation2 + $0xa0] sm:$0xff] %vm831, %v2755
      %2775 = vst.msk [vmem:[#allocation2 + $0xa8] sm:$0xff] %vm831, %v2757
      %2776 = vst.msk [vmem:[#allocation2 + $0xb0] sm:$0xff] %vm831, %v2759
      %2777 = vst.msk [vmem:[#allocation2 + $0xb8] sm:$0xff] %vm831, %v2761
      %2778 = vrot.lane.b32.xlu0 %v424, 36
      %v2779 = vpop.permute.xlu0 %2778
      %2780 = vrot.lane.b32.xlu0 %v426, 36
      %v2781 = vpop.permute.xlu0 %2780
      %2782 = vrot.lane.b32.xlu0 %v428, 36
      %v2783 = vpop.permute.xlu0 %2782
      %2784 = vrot.lane.b32.xlu0 %v430, 36
      %v2785 = vpop.permute.xlu0 %2784
      %2786 = vrot.lane.b32.xlu0 %v432, 36
      %v2787 = vpop.permute.xlu0 %2786
      %2788 = vrot.lane.b32.xlu0 %v434, 36
      %v2789 = vpop.permute.xlu0 %2788
      %2790 = vrot.lane.b32.xlu0 %v436, 36
      %v2791 = vpop.permute.xlu0 %2790
      %2792 = vrot.lane.b32.xlu0 %v438, 36
      %v2793 = vpop.permute.xlu0 %2792
      %2802 = vst.msk [vmem:[#allocation2 + $0x80] sm:$0xff] %vm872, %v2779
      %2803 = vst.msk [vmem:[#allocation2 + $0x88] sm:$0xff] %vm872, %v2781
      %2804 = vst.msk [vmem:[#allocation2 + $0x90] sm:$0xff] %vm872, %v2783
      %2805 = vst.msk [vmem:[#allocation2 + $0x98] sm:$0xff] %vm872, %v2785
      %2806 = vst.msk [vmem:[#allocation2 + $0xa0] sm:$0xff] %vm872, %v2787
      %2807 = vst.msk [vmem:[#allocation2 + $0xa8] sm:$0xff] %vm872, %v2789
      %2808 = vst.msk [vmem:[#allocation2 + $0xb0] sm:$0xff] %vm872, %v2791
      %2809 = vst.msk [vmem:[#allocation2 + $0xb8] sm:$0xff] %vm872, %v2793
      %2810 = vrot.lane.b32.xlu0 %v2196, 40
      %v2811 = vpop.permute.xlu0 %2810
      %2812 = vrot.lane.b32.xlu0 %v2199, 40
      %v2813 = vpop.permute.xlu0 %2812
      %2814 = vrot.lane.b32.xlu0 %v2202, 40
      %v2815 = vpop.permute.xlu0 %2814
      %2816 = vrot.lane.b32.xlu0 %v2205, 40
      %v2817 = vpop.permute.xlu0 %2816
      %2818 = vrot.lane.b32.xlu0 %v2208, 40
      %v2819 = vpop.permute.xlu0 %2818
      %2820 = vrot.lane.b32.xlu0 %v2211, 40
      %v2821 = vpop.permute.xlu0 %2820
      %2822 = vrot.lane.b32.xlu0 %v2214, 40
      %v2823 = vpop.permute.xlu0 %2822
      %2824 = vrot.lane.b32.xlu0 %v2217, 40
      %v2825 = vpop.permute.xlu0 %2824
      %2834 = vst.msk [vmem:[#allocation2 + $0x80] sm:$0xff] %vm937, %v2811
      %2835 = vst.msk [vmem:[#allocation2 + $0x88] sm:$0xff] %vm937, %v2813
      %2836 = vst.msk [vmem:[#allocation2 + $0x90] sm:$0xff] %vm937, %v2815
      %2837 = vst.msk [vmem:[#allocation2 + $0x98] sm:$0xff] %vm937, %v2817
      %2838 = vst.msk [vmem:[#allocation2 + $0xa0] sm:$0xff] %vm937, %v2819
      %2839 = vst.msk [vmem:[#allocation2 + $0xa8] sm:$0xff] %vm937, %v2821
      %2840 = vst.msk [vmem:[#allocation2 + $0xb0] sm:$0xff] %vm937, %v2823
      %2841 = vst.msk [vmem:[#allocation2 + $0xb8] sm:$0xff] %vm937, %v2825
      %2842 = vrot.lane.b32.xlu0 %v2252, 44
      %v2843 = vpop.permute.xlu0 %2842
      %2844 = vrot.lane.b32.xlu0 %v2255, 44
      %v2845 = vpop.permute.xlu0 %2844
      %2846 = vrot.lane.b32.xlu0 %v2258, 44
      %v2847 = vpop.permute.xlu0 %2846
      %2848 = vrot.lane.b32.xlu0 %v2261, 44
      %v2849 = vpop.permute.xlu0 %2848
      %2850 = vrot.lane.b32.xlu0 %v2264, 44
      %v2851 = vpop.permute.xlu0 %2850
      %2852 = vrot.lane.b32.xlu0 %v2267, 44
      %v2853 = vpop.permute.xlu0 %2852
      %2854 = vrot.lane.b32.xlu0 %v2270, 44
      %v2855 = vpop.permute.xlu0 %2854
      %2856 = vrot.lane.b32.xlu0 %v2273, 44
      %v2857 = vpop.permute.xlu0 %2856
      %2866 = vst.msk [vmem:[#allocation2 + $0x80] sm:$0xff] %vm994, %v2843
      %2867 = vst.msk [vmem:[#allocation2 + $0x88] sm:$0xff] %vm994, %v2845
      %2868 = vst.msk [vmem:[#allocation2 + $0x90] sm:$0xff] %vm994, %v2847
      %2869 = vst.msk [vmem:[#allocation2 + $0x98] sm:$0xff] %vm994, %v2849
      %2870 = vst.msk [vmem:[#allocation2 + $0xa0] sm:$0xff] %vm994, %v2851
      %2871 = vst.msk [vmem:[#allocation2 + $0xa8] sm:$0xff] %vm994, %v2853
      %2872 = vst.msk [vmem:[#allocation2 + $0xb0] sm:$0xff] %vm994, %v2855
      %2873 = vst.msk [vmem:[#allocation2 + $0xb8] sm:$0xff] %vm994, %v2857
      %2874 = vrot.lane.b32.xlu0 %v426, 48
      %v2875 = vpop.permute.xlu0 %2874
      %2876 = vrot.lane.b32.xlu0 %v428, 48
      %v2877 = vpop.permute.xlu0 %2876
      %2878 = vrot.lane.b32.xlu0 %v430, 48
      %v2879 = vpop.permute.xlu0 %2878
      %2880 = vrot.lane.b32.xlu0 %v432, 48
      %v2881 = vpop.permute.xlu0 %2880
      %2882 = vrot.lane.b32.xlu0 %v434, 48
      %v2883 = vpop.permute.xlu0 %2882
      %2884 = vrot.lane.b32.xlu0 %v436, 48
      %v2885 = vpop.permute.xlu0 %2884
      %2886 = vrot.lane.b32.xlu0 %v438, 48
      %v2887 = vpop.permute.xlu0 %2886
      %2888 = vrot.lane.b32.xlu0 %v440, 48
      %v2889 = vpop.permute.xlu0 %2888
      %2898 = vst.msk [vmem:[#allocation2 + $0x80] sm:$0xff] %vm1028, %v2875
      %2899 = vst.msk [vmem:[#allocation2 + $0x88] sm:$0xff] %vm1028, %v2877
      %2900 = vst.msk [vmem:[#allocation2 + $0x90] sm:$0xff] %vm1028, %v2879
      %2901 = vst.msk [vmem:[#allocation2 + $0x98] sm:$0xff] %vm1028, %v2881
      %2902 = vst.msk [vmem:[#allocation2 + $0xa0] sm:$0xff] %vm1028, %v2883
      %2903 = vst.msk [vmem:[#allocation2 + $0xa8] sm:$0xff] %vm1028, %v2885
      %2904 = vst.msk [vmem:[#allocation2 + $0xb0] sm:$0xff] %vm1028, %v2887
      %2905 = vst.msk [vmem:[#allocation2 + $0xb8] sm:$0xff] %vm1028, %v2889
      %2906 = vrot.lane.b32.xlu0 %v2199, 52
      %v2907 = vpop.permute.xlu0 %2906
      %2908 = vrot.lane.b32.xlu0 %v2202, 52
      %v2909 = vpop.permute.xlu0 %2908
      %2910 = vrot.lane.b32.xlu0 %v2205, 52
      %v2911 = vpop.permute.xlu0 %2910
      %2912 = vrot.lane.b32.xlu0 %v2208, 52
      %v2913 = vpop.permute.xlu0 %2912
      %2914 = vrot.lane.b32.xlu0 %v2211, 52
      %v2915 = vpop.permute.xlu0 %2914
      %2916 = vrot.lane.b32.xlu0 %v2214, 52
      %v2917 = vpop.permute.xlu0 %2916
      %2918 = vrot.lane.b32.xlu0 %v2217, 52
      %v2919 = vpop.permute.xlu0 %2918
      %2920 = vrot.lane.b32.xlu0 %v2342, 52
      %v2921 = vpop.permute.xlu0 %2920
      %2930 = vst.msk [vmem:[#allocation2 + $0x80] sm:$0xff] %vm1065, %v2907
      %2931 = vst.msk [vmem:[#allocation2 + $0x88] sm:$0xff] %vm1065, %v2909
      %2932 = vst.msk [vmem:[#allocation2 + $0x90] sm:$0xff] %vm1065, %v2911
      %2933 = vst.msk [vmem:[#allocation2 + $0x98] sm:$0xff] %vm1065, %v2913
      %2934 = vst.msk [vmem:[#allocation2 + $0xa0] sm:$0xff] %vm1065, %v2915
      %2935 = vst.msk [vmem:[#allocation2 + $0xa8] sm:$0xff] %vm1065, %v2917
      %2936 = vst.msk [vmem:[#allocation2 + $0xb0] sm:$0xff] %vm1065, %v2919
      %2937 = vst.msk [vmem:[#allocation2 + $0xb8] sm:$0xff] %vm1065, %v2921
      %2938 = vrot.lane.b32.xlu0 %v2255, 56
      %v2939 = vpop.permute.xlu0 %2938
      %2940 = vrot.lane.b32.xlu0 %v2258, 56
      %v2941 = vpop.permute.xlu0 %2940
      %2942 = vrot.lane.b32.xlu0 %v2261, 56
      %v2943 = vpop.permute.xlu0 %2942
      %2944 = vrot.lane.b32.xlu0 %v2264, 56
      %v2945 = vpop.permute.xlu0 %2944
      %2946 = vrot.lane.b32.xlu0 %v2267, 56
      %v2947 = vpop.permute.xlu0 %2946
      %2948 = vrot.lane.b32.xlu0 %v2270, 56
      %v2949 = vpop.permute.xlu0 %2948
      %2950 = vrot.lane.b32.xlu0 %v2273, 56
      %v2951 = vpop.permute.xlu0 %2950
      %2952 = vrot.lane.b32.xlu0 %v2377, 56
      %v2953 = vpop.permute.xlu0 %2952
      %2962 = vst.msk [vmem:[#allocation2 + $0x80] sm:$0xff] %vm1101, %v2939
      %2963 = vst.msk [vmem:[#allocation2 + $0x88] sm:$0xff] %vm1101, %v2941
      %2964 = vst.msk [vmem:[#allocation2 + $0x90] sm:$0xff] %vm1101, %v2943
      %2965 = vst.msk [vmem:[#allocation2 + $0x98] sm:$0xff] %vm1101, %v2945
      %2966 = vst.msk [vmem:[#allocation2 + $0xa0] sm:$0xff] %vm1101, %v2947
      %2967 = vst.msk [vmem:[#allocation2 + $0xa8] sm:$0xff] %vm1101, %v2949
      %2968 = vst.msk [vmem:[#allocation2 + $0xb0] sm:$0xff] %vm1101, %v2951
      %2969 = vst.msk [vmem:[#allocation2 + $0xb8] sm:$0xff] %vm1101, %v2953
      %2970 = vrot.lane.b32.xlu0 %v428, 60
      %v2971 = vpop.permute.xlu0 %2970
      %2972 = vrot.lane.b32.xlu0 %v430, 60
      %v2973 = vpop.permute.xlu0 %2972
      %2974 = vrot.lane.b32.xlu0 %v432, 60
      %v2975 = vpop.permute.xlu0 %2974
      %2976 = vrot.lane.b32.xlu0 %v434, 60
      %v2977 = vpop.permute.xlu0 %2976
      %2978 = vrot.lane.b32.xlu0 %v436, 60
      %v2979 = vpop.permute.xlu0 %2978
      %2980 = vrot.lane.b32.xlu0 %v438, 60
      %v2981 = vpop.permute.xlu0 %2980
      %2982 = vrot.lane.b32.xlu0 %v440, 60
      %v2983 = vpop.permute.xlu0 %2982
      %2984 = vrot.lane.b32.xlu0 %v442, 60
      %v2985 = vpop.permute.xlu0 %2984
      %2994 = vst.msk [vmem:[#allocation2 + $0x80] sm:$0xff] %vm1135, %v2971
      %2995 = vst.msk [vmem:[#allocation2 + $0x88] sm:$0xff] %vm1135, %v2973
      %2996 = vst.msk [vmem:[#allocation2 + $0x90] sm:$0xff] %vm1135, %v2975
      %2997 = vst.msk [vmem:[#allocation2 + $0x98] sm:$0xff] %vm1135, %v2977
      %2998 = vst.msk [vmem:[#allocation2 + $0xa0] sm:$0xff] %vm1135, %v2979
      %2999 = vst.msk [vmem:[#allocation2 + $0xa8] sm:$0xff] %vm1135, %v2981
      %3000 = vst.msk [vmem:[#allocation2 + $0xb0] sm:$0xff] %vm1135, %v2983
      %3001 = vst.msk [vmem:[#allocation2 + $0xb8] sm:$0xff] %vm1135, %v2985
      %3002 = vrot.lane.b32.xlu0 %v2202, 64
      %v3003 = vpop.permute.xlu0 %3002
      %3004 = vrot.lane.b32.xlu0 %v2205, 64
      %v3005 = vpop.permute.xlu0 %3004
      %3006 = vrot.lane.b32.xlu0 %v2208, 64
      %v3007 = vpop.permute.xlu0 %3006
      %3008 = vrot.lane.b32.xlu0 %v2211, 64
      %v3009 = vpop.permute.xlu0 %3008
      %3010 = vrot.lane.b32.xlu0 %v2214, 64
      %v3011 = vpop.permute.xlu0 %3010
      %3012 = vrot.lane.b32.xlu0 %v2217, 64
      %v3013 = vpop.permute.xlu0 %3012
      %3014 = vrot.lane.b32.xlu0 %v2342, 64
      %v3015 = vpop.permute.xlu0 %3014
      %3016 = vrot.lane.b32.xlu0 %v2446, 64
      %v3017 = vpop.permute.xlu0 %3016
      %3026 = vst.msk [vmem:[#allocation2 + $0x80] sm:$0xff] %vm1172, %v3003
      %3027 = vst.msk [vmem:[#allocation2 + $0x88] sm:$0xff] %vm1172, %v3005
      %3028 = vst.msk [vmem:[#allocation2 + $0x90] sm:$0xff] %vm1172, %v3007
      %3029 = vst.msk [vmem:[#allocation2 + $0x98] sm:$0xff] %vm1172, %v3009
      %3030 = vst.msk [vmem:[#allocation2 + $0xa0] sm:$0xff] %vm1172, %v3011
      %3031 = vst.msk [vmem:[#allocation2 + $0xa8] sm:$0xff] %vm1172, %v3013
      %3032 = vst.msk [vmem:[#allocation2 + $0xb0] sm:$0xff] %vm1172, %v3015
      %3033 = vst.msk [vmem:[#allocation2 + $0xb8] sm:$0xff] %vm1172, %v3017
      %3034 = vrot.lane.b32.xlu0 %v2258, 68
      %v3035 = vpop.permute.xlu0 %3034
      %3036 = vrot.lane.b32.xlu0 %v2261, 68
      %v3037 = vpop.permute.xlu0 %3036
      %3038 = vrot.lane.b32.xlu0 %v2264, 68
      %v3039 = vpop.permute.xlu0 %3038
      %3040 = vrot.lane.b32.xlu0 %v2267, 68
      %v3041 = vpop.permute.xlu0 %3040
      %3042 = vrot.lane.b32.xlu0 %v2270, 68
      %v3043 = vpop.permute.xlu0 %3042
      %3044 = vrot.lane.b32.xlu0 %v2273, 68
      %v3045 = vpop.permute.xlu0 %3044
      %3046 = vrot.lane.b32.xlu0 %v2377, 68
      %v3047 = vpop.permute.xlu0 %3046
      %3048 = vrot.lane.b32.xlu0 %v2481, 68
      %v3049 = vpop.permute.xlu0 %3048
      %3058 = vst.msk [vmem:[#allocation2 + $0x80] sm:$0xff] %vm1208, %v3035
      %3059 = vst.msk [vmem:[#allocation2 + $0x88] sm:$0xff] %vm1208, %v3037
      %3060 = vst.msk [vmem:[#allocation2 + $0x90] sm:$0xff] %vm1208, %v3039
      %3061 = vst.msk [vmem:[#allocation2 + $0x98] sm:$0xff] %vm1208, %v3041
      %3062 = vst.msk [vmem:[#allocation2 + $0xa0] sm:$0xff] %vm1208, %v3043
      %3063 = vst.msk [vmem:[#allocation2 + $0xa8] sm:$0xff] %vm1208, %v3045
      %3064 = vst.msk [vmem:[#allocation2 + $0xb0] sm:$0xff] %vm1208, %v3047
      %3065 = vst.msk [vmem:[#allocation2 + $0xb8] sm:$0xff] %vm1208, %v3049
      %3074 = vrot.lane.b32.xlu0 %v444, 72
      %v3075 = vpop.permute.xlu0 %3074
      %3076 = vrot.lane.b32.xlu0 %v446, 72
      %v3077 = vpop.permute.xlu0 %3076
      %3078 = vrot.lane.b32.xlu0 %v448, 72
      %v3079 = vpop.permute.xlu0 %3078
      %3080 = vrot.lane.b32.xlu0 %v450, 72
      %v3081 = vpop.permute.xlu0 %3080
      %3082 = vrot.lane.b32.xlu0 %v452, 72
      %v3083 = vpop.permute.xlu0 %3082
      %3084 = vrot.lane.b32.xlu0 %v454, 72
      %v3085 = vpop.permute.xlu0 %3084
      %3086 = vrot.lane.b32.xlu0 %v456, 72
      %v3087 = vpop.permute.xlu0 %3086
      %3088 = vrot.lane.b32.xlu0 %v458, 72
      %v3089 = vpop.permute.xlu0 %3088
      %3098 = vst.msk [vmem:[#allocation2 + $0x80] sm:$0xff] %vm1249, %v3075
      %3099 = vst.msk [vmem:[#allocation2 + $0x88] sm:$0xff] %vm1249, %v3077
      %3100 = vst.msk [vmem:[#allocation2 + $0x90] sm:$0xff] %vm1249, %v3079
      %3101 = vst.msk [vmem:[#allocation2 + $0x98] sm:$0xff] %vm1249, %v3081
      %3102 = vst.msk [vmem:[#allocation2 + $0xa0] sm:$0xff] %vm1249, %v3083
      %3103 = vst.msk [vmem:[#allocation2 + $0xa8] sm:$0xff] %vm1249, %v3085
      %3104 = vst.msk [vmem:[#allocation2 + $0xb0] sm:$0xff] %vm1249, %v3087
      %3105 = vst.msk [vmem:[#allocation2 + $0xb8] sm:$0xff] %vm1249, %v3089
      %v3114 = vrot.slane %v444, 1
      %v3115 = vrot.slane %v445, 1
      %v3116 = vsel %vm510, %v3114, %v3115
      %v3117 = vrot.slane %v446, 1
      %v3118 = vrot.slane %v447, 1
      %v3119 = vsel %vm510, %v3117, %v3118
      %v3120 = vrot.slane %v448, 1
      %v3121 = vrot.slane %v449, 1
      %v3122 = vsel %vm510, %v3120, %v3121
      %v3123 = vrot.slane %v450, 1
      %v3124 = vrot.slane %v451, 1
      %v3125 = vsel %vm510, %v3123, %v3124
      %v3126 = vrot.slane %v452, 1
      %v3127 = vrot.slane %v453, 1
      %v3128 = vsel %vm510, %v3126, %v3127
      %v3129 = vrot.slane %v454, 1
      %v3130 = vrot.slane %v455, 1
      %v3131 = vsel %vm510, %v3129, %v3130
      %v3132 = vrot.slane %v456, 1
      %v3133 = vrot.slane %v457, 1
      %v3134 = vsel %vm510, %v3132, %v3133
      %v3135 = vrot.slane %v458, 1
      %v3136 = vrot.slane %v459, 1
      %v3137 = vsel %vm510, %v3135, %v3136
      %3138 = vrot.lane.b32.xlu0 %v3116, 76
      %v3139 = vpop.permute.xlu0 %3138
      %3140 = vrot.lane.b32.xlu0 %v3119, 76
      %v3141 = vpop.permute.xlu0 %3140
      %3142 = vrot.lane.b32.xlu0 %v3122, 76
      %v3143 = vpop.permute.xlu0 %3142
      %3144 = vrot.lane.b32.xlu0 %v3125, 76
      %v3145 = vpop.permute.xlu0 %3144
      %3146 = vrot.lane.b32.xlu0 %v3128, 76
      %v3147 = vpop.permute.xlu0 %3146
      %3148 = vrot.lane.b32.xlu0 %v3131, 76
      %v3149 = vpop.permute.xlu0 %3148
      %3150 = vrot.lane.b32.xlu0 %v3134, 76
      %v3151 = vpop.permute.xlu0 %3150
      %3152 = vrot.lane.b32.xlu0 %v3137, 76
      %v3153 = vpop.permute.xlu0 %3152
      %3162 = vst.msk [vmem:[#allocation2 + $0x80] sm:$0xff] %vm1314, %v3139
      %3163 = vst.msk [vmem:[#allocation2 + $0x88] sm:$0xff] %vm1314, %v3141
      %3164 = vst.msk [vmem:[#allocation2 + $0x90] sm:$0xff] %vm1314, %v3143
      %3165 = vst.msk [vmem:[#allocation2 + $0x98] sm:$0xff] %vm1314, %v3145
      %3166 = vst.msk [vmem:[#allocation2 + $0xa0] sm:$0xff] %vm1314, %v3147
      %3167 = vst.msk [vmem:[#allocation2 + $0xa8] sm:$0xff] %vm1314, %v3149
      %3168 = vst.msk [vmem:[#allocation2 + $0xb0] sm:$0xff] %vm1314, %v3151
      %3169 = vst.msk [vmem:[#allocation2 + $0xb8] sm:$0xff] %vm1314, %v3153
      %v3170 = vrot.slane %v444, 2
      %v3171 = vrot.slane %v445, 2
      %v3172 = vsel %vm568, %v3170, %v3171
      %v3173 = vrot.slane %v446, 2
      %v3174 = vrot.slane %v447, 2
      %v3175 = vsel %vm568, %v3173, %v3174
      %v3176 = vrot.slane %v448, 2
      %v3177 = vrot.slane %v449, 2
      %v3178 = vsel %vm568, %v3176, %v3177
      %v3179 = vrot.slane %v450, 2
      %v3180 = vrot.slane %v451, 2
      %v3181 = vsel %vm568, %v3179, %v3180
      %v3182 = vrot.slane %v452, 2
      %v3183 = vrot.slane %v453, 2
      %v3184 = vsel %vm568, %v3182, %v3183
      %v3185 = vrot.slane %v454, 2
      %v3186 = vrot.slane %v455, 2
      %v3187 = vsel %vm568, %v3185, %v3186
      %v3188 = vrot.slane %v456, 2
      %v3189 = vrot.slane %v457, 2
      %v3190 = vsel %vm568, %v3188, %v3189
      %v3191 = vrot.slane %v458, 2
      %v3192 = vrot.slane %v459, 2
      %v3193 = vsel %vm568, %v3191, %v3192
      %3194 = vrot.lane.b32.xlu0 %v3172, 80
      %v3195 = vpop.permute.xlu0 %3194
      %3196 = vrot.lane.b32.xlu0 %v3175, 80
      %v3197 = vpop.permute.xlu0 %3196
      %3198 = vrot.lane.b32.xlu0 %v3178, 80
      %v3199 = vpop.permute.xlu0 %3198
      %3200 = vrot.lane.b32.xlu0 %v3181, 80
      %v3201 = vpop.permute.xlu0 %3200
      %3202 = vrot.lane.b32.xlu0 %v3184, 80
      %v3203 = vpop.permute.xlu0 %3202
      %3204 = vrot.lane.b32.xlu0 %v3187, 80
      %v3205 = vpop.permute.xlu0 %3204
      %3206 = vrot.lane.b32.xlu0 %v3190, 80
      %v3207 = vpop.permute.xlu0 %3206
      %3208 = vrot.lane.b32.xlu0 %v3193, 80
      %v3209 = vpop.permute.xlu0 %3208
      %3218 = vst.msk [vmem:[#allocation2 + $0x80] sm:$0xff] %vm1371, %v3195
      %3219 = vst.msk [vmem:[#allocation2 + $0x88] sm:$0xff] %vm1371, %v3197
      %3220 = vst.msk [vmem:[#allocation2 + $0x90] sm:$0xff] %vm1371, %v3199
      %3221 = vst.msk [vmem:[#allocation2 + $0x98] sm:$0xff] %vm1371, %v3201
      %3222 = vst.msk [vmem:[#allocation2 + $0xa0] sm:$0xff] %vm1371, %v3203
      %3223 = vst.msk [vmem:[#allocation2 + $0xa8] sm:$0xff] %vm1371, %v3205
      %3224 = vst.msk [vmem:[#allocation2 + $0xb0] sm:$0xff] %vm1371, %v3207
      %3225 = vst.msk [vmem:[#allocation2 + $0xb8] sm:$0xff] %vm1371, %v3209
      %3227 = vrot.lane.b32.xlu0 %v446, 84
      %v3228 = vpop.permute.xlu0 %3227
      %3229 = vrot.lane.b32.xlu0 %v448, 84
      %v3230 = vpop.permute.xlu0 %3229
      %3231 = vrot.lane.b32.xlu0 %v450, 84
      %v3232 = vpop.permute.xlu0 %3231
      %3233 = vrot.lane.b32.xlu0 %v452, 84
      %v3234 = vpop.permute.xlu0 %3233
      %3235 = vrot.lane.b32.xlu0 %v454, 84
      %v3236 = vpop.permute.xlu0 %3235
      %3237 = vrot.lane.b32.xlu0 %v456, 84
      %v3238 = vpop.permute.xlu0 %3237
      %3239 = vrot.lane.b32.xlu0 %v458, 84
      %v3240 = vpop.permute.xlu0 %3239
      %3241 = vrot.lane.b32.xlu0 %v460, 84
      %v3242 = vpop.permute.xlu0 %3241
      %3251 = vst.msk [vmem:[#allocation2 + $0x80] sm:$0xff] %vm1405, %v3228
      %3252 = vst.msk [vmem:[#allocation2 + $0x88] sm:$0xff] %vm1405, %v3230
      %3253 = vst.msk [vmem:[#allocation2 + $0x90] sm:$0xff] %vm1405, %v3232
      %3254 = vst.msk [vmem:[#allocation2 + $0x98] sm:$0xff] %vm1405, %v3234
      %3255 = vst.msk [vmem:[#allocation2 + $0xa0] sm:$0xff] %vm1405, %v3236
      %3256 = vst.msk [vmem:[#allocation2 + $0xa8] sm:$0xff] %vm1405, %v3238
      %3257 = vst.msk [vmem:[#allocation2 + $0xb0] sm:$0xff] %vm1405, %v3240
      %3258 = vst.msk [vmem:[#allocation2 + $0xb8] sm:$0xff] %vm1405, %v3242
      %v3260 = vrot.slane %v460, 1
      %v3261 = vrot.slane %v461, 1
      %v3262 = vsel %vm510, %v3260, %v3261
      %3263 = vrot.lane.b32.xlu0 %v3119, 88
      %v3264 = vpop.permute.xlu0 %3263
      %3265 = vrot.lane.b32.xlu0 %v3122, 88
      %v3266 = vpop.permute.xlu0 %3265
      %3267 = vrot.lane.b32.xlu0 %v3125, 88
      %v3268 = vpop.permute.xlu0 %3267
      %3269 = vrot.lane.b32.xlu0 %v3128, 88
      %v3270 = vpop.permute.xlu0 %3269
      %3271 = vrot.lane.b32.xlu0 %v3131, 88
      %v3272 = vpop.permute.xlu0 %3271
      %3273 = vrot.lane.b32.xlu0 %v3134, 88
      %v3274 = vpop.permute.xlu0 %3273
      %3275 = vrot.lane.b32.xlu0 %v3137, 88
      %v3276 = vpop.permute.xlu0 %3275
      %3277 = vrot.lane.b32.xlu0 %v3262, 88
      %v3278 = vpop.permute.xlu0 %3277
      %3287 = vst.msk [vmem:[#allocation2 + $0x80] sm:$0xff] %vm1442, %v3264
      %3288 = vst.msk [vmem:[#allocation2 + $0x88] sm:$0xff] %vm1442, %v3266
      %3289 = vst.msk [vmem:[#allocation2 + $0x90] sm:$0xff] %vm1442, %v3268
      %3290 = vst.msk [vmem:[#allocation2 + $0x98] sm:$0xff] %vm1442, %v3270
      %3291 = vst.msk [vmem:[#allocation2 + $0xa0] sm:$0xff] %vm1442, %v3272
      %3292 = vst.msk [vmem:[#allocation2 + $0xa8] sm:$0xff] %vm1442, %v3274
      %3293 = vst.msk [vmem:[#allocation2 + $0xb0] sm:$0xff] %vm1442, %v3276
      %3294 = vst.msk [vmem:[#allocation2 + $0xb8] sm:$0xff] %vm1442, %v3278
      %v3295 = vrot.slane %v460, 2
      %v3296 = vrot.slane %v461, 2
      %v3297 = vsel %vm568, %v3295, %v3296
      %3298 = vrot.lane.b32.xlu0 %v3175, 92
      %v3299 = vpop.permute.xlu0 %3298
      %3300 = vrot.lane.b32.xlu0 %v3178, 92
      %v3301 = vpop.permute.xlu0 %3300
      %3302 = vrot.lane.b32.xlu0 %v3181, 92
      %v3303 = vpop.permute.xlu0 %3302
      %3304 = vrot.lane.b32.xlu0 %v3184, 92
      %v3305 = vpop.permute.xlu0 %3304
      %3306 = vrot.lane.b32.xlu0 %v3187, 92
      %v3307 = vpop.permute.xlu0 %3306
      %3308 = vrot.lane.b32.xlu0 %v3190, 92
      %v3309 = vpop.permute.xlu0 %3308
      %3310 = vrot.lane.b32.xlu0 %v3193, 92
      %v3311 = vpop.permute.xlu0 %3310
      %3312 = vrot.lane.b32.xlu0 %v3297, 92
      %v3313 = vpop.permute.xlu0 %3312
      %3322 = vst.msk [vmem:[#allocation2 + $0x80] sm:$0xff] %vm1478, %v3299
      %3323 = vst.msk [vmem:[#allocation2 + $0x88] sm:$0xff] %vm1478, %v3301
      %3324 = vst.msk [vmem:[#allocation2 + $0x90] sm:$0xff] %vm1478, %v3303
      %3325 = vst.msk [vmem:[#allocation2 + $0x98] sm:$0xff] %vm1478, %v3305
      %3326 = vst.msk [vmem:[#allocation2 + $0xa0] sm:$0xff] %vm1478, %v3307
      %3327 = vst.msk [vmem:[#allocation2 + $0xa8] sm:$0xff] %vm1478, %v3309
      %3328 = vst.msk [vmem:[#allocation2 + $0xb0] sm:$0xff] %vm1478, %v3311
      %3329 = vst.msk [vmem:[#allocation2 + $0xb8] sm:$0xff] %vm1478, %v3313
      %3331 = vrot.lane.b32.xlu0 %v448, 96
      %v3332 = vpop.permute.xlu0 %3331
      %3333 = vrot.lane.b32.xlu0 %v450, 96
      %v3334 = vpop.permute.xlu0 %3333
      %3335 = vrot.lane.b32.xlu0 %v452, 96
      %v3336 = vpop.permute.xlu0 %3335
      %3337 = vrot.lane.b32.xlu0 %v454, 96
      %v3338 = vpop.permute.xlu0 %3337
      %3339 = vrot.lane.b32.xlu0 %v456, 96
      %v3340 = vpop.permute.xlu0 %3339
      %3341 = vrot.lane.b32.xlu0 %v458, 96
      %v3342 = vpop.permute.xlu0 %3341
      %3343 = vrot.lane.b32.xlu0 %v460, 96
      %v3344 = vpop.permute.xlu0 %3343
      %3345 = vrot.lane.b32.xlu0 %v462, 96
      %v3346 = vpop.permute.xlu0 %3345
      %3355 = vst.msk [vmem:[#allocation2 + $0x80] sm:$0xff] %vm1512, %v3332
      %3356 = vst.msk [vmem:[#allocation2 + $0x88] sm:$0xff] %vm1512, %v3334
      %3357 = vst.msk [vmem:[#allocation2 + $0x90] sm:$0xff] %vm1512, %v3336
      %3358 = vst.msk [vmem:[#allocation2 + $0x98] sm:$0xff] %vm1512, %v3338
      %3359 = vst.msk [vmem:[#allocation2 + $0xa0] sm:$0xff] %vm1512, %v3340
      %3360 = vst.msk [vmem:[#allocation2 + $0xa8] sm:$0xff] %vm1512, %v3342
      %3361 = vst.msk [vmem:[#allocation2 + $0xb0] sm:$0xff] %vm1512, %v3344
      %3362 = vst.msk [vmem:[#allocation2 + $0xb8] sm:$0xff] %vm1512, %v3346
      %v3364 = vrot.slane %v462, 1
      %v3365 = vrot.slane %v463, 1
      %v3366 = vsel %vm510, %v3364, %v3365
      %3367 = vrot.lane.b32.xlu0 %v3122, 100
      %v3368 = vpop.permute.xlu0 %3367
      %3369 = vrot.lane.b32.xlu0 %v3125, 100
      %v3370 = vpop.permute.xlu0 %3369
      %3371 = vrot.lane.b32.xlu0 %v3128, 100
      %v3372 = vpop.permute.xlu0 %3371
      %3373 = vrot.lane.b32.xlu0 %v3131, 100
      %v3374 = vpop.permute.xlu0 %3373
      %3375 = vrot.lane.b32.xlu0 %v3134, 100
      %v3376 = vpop.permute.xlu0 %3375
      %3377 = vrot.lane.b32.xlu0 %v3137, 100
      %v3378 = vpop.permute.xlu0 %3377
      %3379 = vrot.lane.b32.xlu0 %v3262, 100
      %v3380 = vpop.permute.xlu0 %3379
      %3381 = vrot.lane.b32.xlu0 %v3366, 100
      %v3382 = vpop.permute.xlu0 %3381
      %3391 = vst.msk [vmem:[#allocation2 + $0x80] sm:$0xff] %vm1549, %v3368
      %3392 = vst.msk [vmem:[#allocation2 + $0x88] sm:$0xff] %vm1549, %v3370
      %3393 = vst.msk [vmem:[#allocation2 + $0x90] sm:$0xff] %vm1549, %v3372
      %3394 = vst.msk [vmem:[#allocation2 + $0x98] sm:$0xff] %vm1549, %v3374
      %3395 = vst.msk [vmem:[#allocation2 + $0xa0] sm:$0xff] %vm1549, %v3376
      %3396 = vst.msk [vmem:[#allocation2 + $0xa8] sm:$0xff] %vm1549, %v3378
      %3397 = vst.msk [vmem:[#allocation2 + $0xb0] sm:$0xff] %vm1549, %v3380
      %3398 = vst.msk [vmem:[#allocation2 + $0xb8] sm:$0xff] %vm1549, %v3382
      %v3399 = vrot.slane %v462, 2
      %v3400 = vrot.slane %v463, 2
      %v3401 = vsel %vm568, %v3399, %v3400
      %3402 = vrot.lane.b32.xlu0 %v3178, 104
      %v3403 = vpop.permute.xlu0 %3402
      %3404 = vrot.lane.b32.xlu0 %v3181, 104
      %v3405 = vpop.permute.xlu0 %3404
      %3406 = vrot.lane.b32.xlu0 %v3184, 104
      %v3407 = vpop.permute.xlu0 %3406
      %3408 = vrot.lane.b32.xlu0 %v3187, 104
      %v3409 = vpop.permute.xlu0 %3408
      %3410 = vrot.lane.b32.xlu0 %v3190, 104
      %v3411 = vpop.permute.xlu0 %3410
      %3412 = vrot.lane.b32.xlu0 %v3193, 104
      %v3413 = vpop.permute.xlu0 %3412
      %3414 = vrot.lane.b32.xlu0 %v3297, 104
      %v3415 = vpop.permute.xlu0 %3414
      %3416 = vrot.lane.b32.xlu0 %v3401, 104
      %v3417 = vpop.permute.xlu0 %3416
      %3426 = vst.msk [vmem:[#allocation2 + $0x80] sm:$0xff] %vm1585, %v3403
      %3427 = vst.msk [vmem:[#allocation2 + $0x88] sm:$0xff] %vm1585, %v3405
      %3428 = vst.msk [vmem:[#allocation2 + $0x90] sm:$0xff] %vm1585, %v3407
      %3429 = vst.msk [vmem:[#allocation2 + $0x98] sm:$0xff] %vm1585, %v3409
      %3430 = vst.msk [vmem:[#allocation2 + $0xa0] sm:$0xff] %vm1585, %v3411
      %3431 = vst.msk [vmem:[#allocation2 + $0xa8] sm:$0xff] %vm1585, %v3413
      %3432 = vst.msk [vmem:[#allocation2 + $0xb0] sm:$0xff] %vm1585, %v3415
      %3433 = vst.msk [vmem:[#allocation2 + $0xb8] sm:$0xff] %vm1585, %v3417
      %3434 = vst.msk [vmem:[#allocation2 + $0xc0] sm:$0xff] %vm485, %v424
      %3435 = vst.msk [vmem:[#allocation2 + $0xc8] sm:$0xff] %vm485, %v426
      %3436 = vst.msk [vmem:[#allocation2 + $0xd0] sm:$0xff] %vm485, %v428
      %3437 = vst.msk [vmem:[#allocation2 + $0xd8] sm:$0xff] %vm485, %v430
      %3438 = vst.msk [vmem:[#allocation2 + $0xe0] sm:$0xff] %vm485, %v432
      %3439 = vst.msk [vmem:[#allocation2 + $0xe8] sm:$0xff] %vm485, %v434
      %3440 = vst.msk [vmem:[#allocation2 + $0xf0] sm:$0xff] %vm485, %v436
      %3441 = vst.msk [vmem:[#allocation2 + $0xf8] sm:$0xff] %vm485, %v438
      %3442 = vrot.lane.b32.xlu0 %v2196, 4
      %v3443 = vpop.permute.xlu0 %3442
      %3444 = vrot.lane.b32.xlu0 %v2199, 4
      %v3445 = vpop.permute.xlu0 %3444
      %3446 = vrot.lane.b32.xlu0 %v2202, 4
      %v3447 = vpop.permute.xlu0 %3446
      %3448 = vrot.lane.b32.xlu0 %v2205, 4
      %v3449 = vpop.permute.xlu0 %3448
      %3450 = vrot.lane.b32.xlu0 %v2208, 4
      %v3451 = vpop.permute.xlu0 %3450
      %3452 = vrot.lane.b32.xlu0 %v2211, 4
      %v3453 = vpop.permute.xlu0 %3452
      %3454 = vrot.lane.b32.xlu0 %v2214, 4
      %v3455 = vpop.permute.xlu0 %3454
      %3456 = vrot.lane.b32.xlu0 %v2217, 4
      %v3457 = vpop.permute.xlu0 %3456
      %3466 = vst.msk [vmem:[#allocation2 + $0xc0] sm:$0xff] %vm559, %v3443
      %3467 = vst.msk [vmem:[#allocation2 + $0xc8] sm:$0xff] %vm559, %v3445
      %3468 = vst.msk [vmem:[#allocation2 + $0xd0] sm:$0xff] %vm559, %v3447
      %3469 = vst.msk [vmem:[#allocation2 + $0xd8] sm:$0xff] %vm559, %v3449
      %3470 = vst.msk [vmem:[#allocation2 + $0xe0] sm:$0xff] %vm559, %v3451
      %3471 = vst.msk [vmem:[#allocation2 + $0xe8] sm:$0xff] %vm559, %v3453
      %3472 = vst.msk [vmem:[#allocation2 + $0xf0] sm:$0xff] %vm559, %v3455
      %3473 = vst.msk [vmem:[#allocation2 + $0xf8] sm:$0xff] %vm559, %v3457
      %3474 = vrot.lane.b32.xlu0 %v2252, 8
      %v3475 = vpop.permute.xlu0 %3474
      %3476 = vrot.lane.b32.xlu0 %v2255, 8
      %v3477 = vpop.permute.xlu0 %3476
      %3478 = vrot.lane.b32.xlu0 %v2258, 8
      %v3479 = vpop.permute.xlu0 %3478
      %3480 = vrot.lane.b32.xlu0 %v2261, 8
      %v3481 = vpop.permute.xlu0 %3480
      %3482 = vrot.lane.b32.xlu0 %v2264, 8
      %v3483 = vpop.permute.xlu0 %3482
      %3484 = vrot.lane.b32.xlu0 %v2267, 8
      %v3485 = vpop.permute.xlu0 %3484
      %3486 = vrot.lane.b32.xlu0 %v2270, 8
      %v3487 = vpop.permute.xlu0 %3486
      %3488 = vrot.lane.b32.xlu0 %v2273, 8
      %v3489 = vpop.permute.xlu0 %3488
      %3498 = vst.msk [vmem:[#allocation2 + $0xc0] sm:$0xff] %vm617, %v3475
      %3499 = vst.msk [vmem:[#allocation2 + $0xc8] sm:$0xff] %vm617, %v3477
      %3500 = vst.msk [vmem:[#allocation2 + $0xd0] sm:$0xff] %vm617, %v3479
      %3501 = vst.msk [vmem:[#allocation2 + $0xd8] sm:$0xff] %vm617, %v3481
      %3502 = vst.msk [vmem:[#allocation2 + $0xe0] sm:$0xff] %vm617, %v3483
      %3503 = vst.msk [vmem:[#allocation2 + $0xe8] sm:$0xff] %vm617, %v3485
      %3504 = vst.msk [vmem:[#allocation2 + $0xf0] sm:$0xff] %vm617, %v3487
      %3505 = vst.msk [vmem:[#allocation2 + $0xf8] sm:$0xff] %vm617, %v3489
      %3506 = vrot.lane.b32.xlu0 %v426, 12
      %v3507 = vpop.permute.xlu0 %3506
      %3508 = vrot.lane.b32.xlu0 %v428, 12
      %v3509 = vpop.permute.xlu0 %3508
      %3510 = vrot.lane.b32.xlu0 %v430, 12
      %v3511 = vpop.permute.xlu0 %3510
      %3512 = vrot.lane.b32.xlu0 %v432, 12
      %v3513 = vpop.permute.xlu0 %3512
      %3514 = vrot.lane.b32.xlu0 %v434, 12
      %v3515 = vpop.permute.xlu0 %3514
      %3516 = vrot.lane.b32.xlu0 %v436, 12
      %v3517 = vpop.permute.xlu0 %3516
      %3518 = vrot.lane.b32.xlu0 %v438, 12
      %v3519 = vpop.permute.xlu0 %3518
      %3520 = vrot.lane.b32.xlu0 %v440, 12
      %v3521 = vpop.permute.xlu0 %3520
      %3530 = vst.msk [vmem:[#allocation2 + $0xc0] sm:$0xff] %vm651, %v3507
      %3531 = vst.msk [vmem:[#allocation2 + $0xc8] sm:$0xff] %vm651, %v3509
      %3532 = vst.msk [vmem:[#allocation2 + $0xd0] sm:$0xff] %vm651, %v3511
      %3533 = vst.msk [vmem:[#allocation2 + $0xd8] sm:$0xff] %vm651, %v3513
      %3534 = vst.msk [vmem:[#allocation2 + $0xe0] sm:$0xff] %vm651, %v3515
      %3535 = vst.msk [vmem:[#allocation2 + $0xe8] sm:$0xff] %vm651, %v3517
      %3536 = vst.msk [vmem:[#allocation2 + $0xf0] sm:$0xff] %vm651, %v3519
      %3537 = vst.msk [vmem:[#allocation2 + $0xf8] sm:$0xff] %vm651, %v3521
      %3538 = vrot.lane.b32.xlu0 %v2199, 16
      %v3539 = vpop.permute.xlu0 %3538
      %3540 = vrot.lane.b32.xlu0 %v2202, 16
      %v3541 = vpop.permute.xlu0 %3540
      %3542 = vrot.lane.b32.xlu0 %v2205, 16
      %v3543 = vpop.permute.xlu0 %3542
      %3544 = vrot.lane.b32.xlu0 %v2208, 16
      %v3545 = vpop.permute.xlu0 %3544
      %3546 = vrot.lane.b32.xlu0 %v2211, 16
      %v3547 = vpop.permute.xlu0 %3546
      %3548 = vrot.lane.b32.xlu0 %v2214, 16
      %v3549 = vpop.permute.xlu0 %3548
      %3550 = vrot.lane.b32.xlu0 %v2217, 16
      %v3551 = vpop.permute.xlu0 %3550
      %3552 = vrot.lane.b32.xlu0 %v2342, 16
      %v3553 = vpop.permute.xlu0 %3552
      %3562 = vst.msk [vmem:[#allocation2 + $0xc0] sm:$0xff] %vm688, %v3539
      %3563 = vst.msk [vmem:[#allocation2 + $0xc8] sm:$0xff] %vm688, %v3541
      %3564 = vst.msk [vmem:[#allocation2 + $0xd0] sm:$0xff] %vm688, %v3543
      %3565 = vst.msk [vmem:[#allocation2 + $0xd8] sm:$0xff] %vm688, %v3545
      %3566 = vst.msk [vmem:[#allocation2 + $0xe0] sm:$0xff] %vm688, %v3547
      %3567 = vst.msk [vmem:[#allocation2 + $0xe8] sm:$0xff] %vm688, %v3549
      %3568 = vst.msk [vmem:[#allocation2 + $0xf0] sm:$0xff] %vm688, %v3551
      %3569 = vst.msk [vmem:[#allocation2 + $0xf8] sm:$0xff] %vm688, %v3553
      %3570 = vrot.lane.b32.xlu0 %v2255, 20
      %v3571 = vpop.permute.xlu0 %3570
      %3572 = vrot.lane.b32.xlu0 %v2258, 20
      %v3573 = vpop.permute.xlu0 %3572
      %3574 = vrot.lane.b32.xlu0 %v2261, 20
      %v3575 = vpop.permute.xlu0 %3574
      %3576 = vrot.lane.b32.xlu0 %v2264, 20
      %v3577 = vpop.permute.xlu0 %3576
      %3578 = vrot.lane.b32.xlu0 %v2267, 20
      %v3579 = vpop.permute.xlu0 %3578
      %3580 = vrot.lane.b32.xlu0 %v2270, 20
      %v3581 = vpop.permute.xlu0 %3580
      %3582 = vrot.lane.b32.xlu0 %v2273, 20
      %v3583 = vpop.permute.xlu0 %3582
      %3584 = vrot.lane.b32.xlu0 %v2377, 20
      %v3585 = vpop.permute.xlu0 %3584
      %3594 = vst.msk [vmem:[#allocation2 + $0xc0] sm:$0xff] %vm724, %v3571
      %3595 = vst.msk [vmem:[#allocation2 + $0xc8] sm:$0xff] %vm724, %v3573
      %3596 = vst.msk [vmem:[#allocation2 + $0xd0] sm:$0xff] %vm724, %v3575
      %3597 = vst.msk [vmem:[#allocation2 + $0xd8] sm:$0xff] %vm724, %v3577
      %3598 = vst.msk [vmem:[#allocation2 + $0xe0] sm:$0xff] %vm724, %v3579
      %3599 = vst.msk [vmem:[#allocation2 + $0xe8] sm:$0xff] %vm724, %v3581
      %3600 = vst.msk [vmem:[#allocation2 + $0xf0] sm:$0xff] %vm724, %v3583
      %3601 = vst.msk [vmem:[#allocation2 + $0xf8] sm:$0xff] %vm724, %v3585
      %3602 = vrot.lane.b32.xlu0 %v428, 24
      %v3603 = vpop.permute.xlu0 %3602
      %3604 = vrot.lane.b32.xlu0 %v430, 24
      %v3605 = vpop.permute.xlu0 %3604
      %3606 = vrot.lane.b32.xlu0 %v432, 24
      %v3607 = vpop.permute.xlu0 %3606
      %3608 = vrot.lane.b32.xlu0 %v434, 24
      %v3609 = vpop.permute.xlu0 %3608
      %3610 = vrot.lane.b32.xlu0 %v436, 24
      %v3611 = vpop.permute.xlu0 %3610
      %3612 = vrot.lane.b32.xlu0 %v438, 24
      %v3613 = vpop.permute.xlu0 %3612
      %3614 = vrot.lane.b32.xlu0 %v440, 24
      %v3615 = vpop.permute.xlu0 %3614
      %3616 = vrot.lane.b32.xlu0 %v442, 24
      %v3617 = vpop.permute.xlu0 %3616
      %3626 = vst.msk [vmem:[#allocation2 + $0xc0] sm:$0xff] %vm758, %v3603
      %3627 = vst.msk [vmem:[#allocation2 + $0xc8] sm:$0xff] %vm758, %v3605
      %3628 = vst.msk [vmem:[#allocation2 + $0xd0] sm:$0xff] %vm758, %v3607
      %3629 = vst.msk [vmem:[#allocation2 + $0xd8] sm:$0xff] %vm758, %v3609
      %3630 = vst.msk [vmem:[#allocation2 + $0xe0] sm:$0xff] %vm758, %v3611
      %3631 = vst.msk [vmem:[#allocation2 + $0xe8] sm:$0xff] %vm758, %v3613
      %3632 = vst.msk [vmem:[#allocation2 + $0xf0] sm:$0xff] %vm758, %v3615
      %3633 = vst.msk [vmem:[#allocation2 + $0xf8] sm:$0xff] %vm758, %v3617
      %3634 = vrot.lane.b32.xlu0 %v2202, 28
      %v3635 = vpop.permute.xlu0 %3634
      %3636 = vrot.lane.b32.xlu0 %v2205, 28
      %v3637 = vpop.permute.xlu0 %3636
      %3638 = vrot.lane.b32.xlu0 %v2208, 28
      %v3639 = vpop.permute.xlu0 %3638
      %3640 = vrot.lane.b32.xlu0 %v2211, 28
      %v3641 = vpop.permute.xlu0 %3640
      %3642 = vrot.lane.b32.xlu0 %v2214, 28
      %v3643 = vpop.permute.xlu0 %3642
      %3644 = vrot.lane.b32.xlu0 %v2217, 28
      %v3645 = vpop.permute.xlu0 %3644
      %3646 = vrot.lane.b32.xlu0 %v2342, 28
      %v3647 = vpop.permute.xlu0 %3646
      %3648 = vrot.lane.b32.xlu0 %v2446, 28
      %v3649 = vpop.permute.xlu0 %3648
      %3658 = vst.msk [vmem:[#allocation2 + $0xc0] sm:$0xff] %vm795, %v3635
      %3659 = vst.msk [vmem:[#allocation2 + $0xc8] sm:$0xff] %vm795, %v3637
      %3660 = vst.msk [vmem:[#allocation2 + $0xd0] sm:$0xff] %vm795, %v3639
      %3661 = vst.msk [vmem:[#allocation2 + $0xd8] sm:$0xff] %vm795, %v3641
      %3662 = vst.msk [vmem:[#allocation2 + $0xe0] sm:$0xff] %vm795, %v3643
      %3663 = vst.msk [vmem:[#allocation2 + $0xe8] sm:$0xff] %vm795, %v3645
      %3664 = vst.msk [vmem:[#allocation2 + $0xf0] sm:$0xff] %vm795, %v3647
      %3665 = vst.msk [vmem:[#allocation2 + $0xf8] sm:$0xff] %vm795, %v3649
      %3666 = vrot.lane.b32.xlu0 %v2258, 32
      %v3667 = vpop.permute.xlu0 %3666
      %3668 = vrot.lane.b32.xlu0 %v2261, 32
      %v3669 = vpop.permute.xlu0 %3668
      %3670 = vrot.lane.b32.xlu0 %v2264, 32
      %v3671 = vpop.permute.xlu0 %3670
      %3672 = vrot.lane.b32.xlu0 %v2267, 32
      %v3673 = vpop.permute.xlu0 %3672
      %3674 = vrot.lane.b32.xlu0 %v2270, 32
      %v3675 = vpop.permute.xlu0 %3674
      %3676 = vrot.lane.b32.xlu0 %v2273, 32
      %v3677 = vpop.permute.xlu0 %3676
      %3678 = vrot.lane.b32.xlu0 %v2377, 32
      %v3679 = vpop.permute.xlu0 %3678
      %3680 = vrot.lane.b32.xlu0 %v2481, 32
      %v3681 = vpop.permute.xlu0 %3680
      %3690 = vst.msk [vmem:[#allocation2 + $0xc0] sm:$0xff] %vm831, %v3667
      %3691 = vst.msk [vmem:[#allocation2 + $0xc8] sm:$0xff] %vm831, %v3669
      %3692 = vst.msk [vmem:[#allocation2 + $0xd0] sm:$0xff] %vm831, %v3671
      %3693 = vst.msk [vmem:[#allocation2 + $0xd8] sm:$0xff] %vm831, %v3673
      %3694 = vst.msk [vmem:[#allocation2 + $0xe0] sm:$0xff] %vm831, %v3675
      %3695 = vst.msk [vmem:[#allocation2 + $0xe8] sm:$0xff] %vm831, %v3677
      %3696 = vst.msk [vmem:[#allocation2 + $0xf0] sm:$0xff] %vm831, %v3679
      %3697 = vst.msk [vmem:[#allocation2 + $0xf8] sm:$0xff] %vm831, %v3681
      %3698 = vrot.lane.b32.xlu0 %v444, 36
      %v3699 = vpop.permute.xlu0 %3698
      %3700 = vrot.lane.b32.xlu0 %v446, 36
      %v3701 = vpop.permute.xlu0 %3700
      %3702 = vrot.lane.b32.xlu0 %v448, 36
      %v3703 = vpop.permute.xlu0 %3702
      %3704 = vrot.lane.b32.xlu0 %v450, 36
      %v3705 = vpop.permute.xlu0 %3704
      %3706 = vrot.lane.b32.xlu0 %v452, 36
      %v3707 = vpop.permute.xlu0 %3706
      %3708 = vrot.lane.b32.xlu0 %v454, 36
      %v3709 = vpop.permute.xlu0 %3708
      %3710 = vrot.lane.b32.xlu0 %v456, 36
      %v3711 = vpop.permute.xlu0 %3710
      %3712 = vrot.lane.b32.xlu0 %v458, 36
      %v3713 = vpop.permute.xlu0 %3712
      %3722 = vst.msk [vmem:[#allocation2 + $0xc0] sm:$0xff] %vm872, %v3699
      %3723 = vst.msk [vmem:[#allocation2 + $0xc8] sm:$0xff] %vm872, %v3701
      %3724 = vst.msk [vmem:[#allocation2 + $0xd0] sm:$0xff] %vm872, %v3703
      %3725 = vst.msk [vmem:[#allocation2 + $0xd8] sm:$0xff] %vm872, %v3705
      %3726 = vst.msk [vmem:[#allocation2 + $0xe0] sm:$0xff] %vm872, %v3707
      %3727 = vst.msk [vmem:[#allocation2 + $0xe8] sm:$0xff] %vm872, %v3709
      %3728 = vst.msk [vmem:[#allocation2 + $0xf0] sm:$0xff] %vm872, %v3711
      %3729 = vst.msk [vmem:[#allocation2 + $0xf8] sm:$0xff] %vm872, %v3713
      %3730 = vrot.lane.b32.xlu0 %v3116, 40
      %v3731 = vpop.permute.xlu0 %3730
      %3732 = vrot.lane.b32.xlu0 %v3119, 40
      %v3733 = vpop.permute.xlu0 %3732
      %3734 = vrot.lane.b32.xlu0 %v3122, 40
      %v3735 = vpop.permute.xlu0 %3734
      %3736 = vrot.lane.b32.xlu0 %v3125, 40
      %v3737 = vpop.permute.xlu0 %3736
      %3738 = vrot.lane.b32.xlu0 %v3128, 40
      %v3739 = vpop.permute.xlu0 %3738
      %3740 = vrot.lane.b32.xlu0 %v3131, 40
      %v3741 = vpop.permute.xlu0 %3740
      %3742 = vrot.lane.b32.xlu0 %v3134, 40
      %v3743 = vpop.permute.xlu0 %3742
      %3744 = vrot.lane.b32.xlu0 %v3137, 40
      %v3745 = vpop.permute.xlu0 %3744
      %3754 = vst.msk [vmem:[#allocation2 + $0xc0] sm:$0xff] %vm937, %v3731
      %3755 = vst.msk [vmem:[#allocation2 + $0xc8] sm:$0xff] %vm937, %v3733
      %3756 = vst.msk [vmem:[#allocation2 + $0xd0] sm:$0xff] %vm937, %v3735
      %3757 = vst.msk [vmem:[#allocation2 + $0xd8] sm:$0xff] %vm937, %v3737
      %3758 = vst.msk [vmem:[#allocation2 + $0xe0] sm:$0xff] %vm937, %v3739
      %3759 = vst.msk [vmem:[#allocation2 + $0xe8] sm:$0xff] %vm937, %v3741
      %3760 = vst.msk [vmem:[#allocation2 + $0xf0] sm:$0xff] %vm937, %v3743
      %3761 = vst.msk [vmem:[#allocation2 + $0xf8] sm:$0xff] %vm937, %v3745
      %3762 = vrot.lane.b32.xlu0 %v3172, 44
      %v3763 = vpop.permute.xlu0 %3762
      %3764 = vrot.lane.b32.xlu0 %v3175, 44
      %v3765 = vpop.permute.xlu0 %3764
      %3766 = vrot.lane.b32.xlu0 %v3178, 44
      %v3767 = vpop.permute.xlu0 %3766
      %3768 = vrot.lane.b32.xlu0 %v3181, 44
      %v3769 = vpop.permute.xlu0 %3768
      %3770 = vrot.lane.b32.xlu0 %v3184, 44
      %v3771 = vpop.permute.xlu0 %3770
      %3772 = vrot.lane.b32.xlu0 %v3187, 44
      %v3773 = vpop.permute.xlu0 %3772
      %3774 = vrot.lane.b32.xlu0 %v3190, 44
      %v3775 = vpop.permute.xlu0 %3774
      %3776 = vrot.lane.b32.xlu0 %v3193, 44
      %v3777 = vpop.permute.xlu0 %3776
      %3786 = vst.msk [vmem:[#allocation2 + $0xc0] sm:$0xff] %vm994, %v3763
      %3787 = vst.msk [vmem:[#allocation2 + $0xc8] sm:$0xff] %vm994, %v3765
      %3788 = vst.msk [vmem:[#allocation2 + $0xd0] sm:$0xff] %vm994, %v3767
      %3789 = vst.msk [vmem:[#allocation2 + $0xd8] sm:$0xff] %vm994, %v3769
      %3790 = vst.msk [vmem:[#allocation2 + $0xe0] sm:$0xff] %vm994, %v3771
      %3791 = vst.msk [vmem:[#allocation2 + $0xe8] sm:$0xff] %vm994, %v3773
      %3792 = vst.msk [vmem:[#allocation2 + $0xf0] sm:$0xff] %vm994, %v3775
      %3793 = vst.msk [vmem:[#allocation2 + $0xf8] sm:$0xff] %vm994, %v3777
      %3794 = vrot.lane.b32.xlu0 %v446, 48
      %v3795 = vpop.permute.xlu0 %3794
      %3796 = vrot.lane.b32.xlu0 %v448, 48
      %v3797 = vpop.permute.xlu0 %3796
      %3798 = vrot.lane.b32.xlu0 %v450, 48
      %v3799 = vpop.permute.xlu0 %3798
      %3800 = vrot.lane.b32.xlu0 %v452, 48
      %v3801 = vpop.permute.xlu0 %3800
      %3802 = vrot.lane.b32.xlu0 %v454, 48
      %v3803 = vpop.permute.xlu0 %3802
      %3804 = vrot.lane.b32.xlu0 %v456, 48
      %v3805 = vpop.permute.xlu0 %3804
      %3806 = vrot.lane.b32.xlu0 %v458, 48
      %v3807 = vpop.permute.xlu0 %3806
      %3808 = vrot.lane.b32.xlu0 %v460, 48
      %v3809 = vpop.permute.xlu0 %3808
      %3818 = vst.msk [vmem:[#allocation2 + $0xc0] sm:$0xff] %vm1028, %v3795
      %3819 = vst.msk [vmem:[#allocation2 + $0xc8] sm:$0xff] %vm1028, %v3797
      %3820 = vst.msk [vmem:[#allocation2 + $0xd0] sm:$0xff] %vm1028, %v3799
      %3821 = vst.msk [vmem:[#allocation2 + $0xd8] sm:$0xff] %vm1028, %v3801
      %3822 = vst.msk [vmem:[#allocation2 + $0xe0] sm:$0xff] %vm1028, %v3803
      %3823 = vst.msk [vmem:[#allocation2 + $0xe8] sm:$0xff] %vm1028, %v3805
      %3824 = vst.msk [vmem:[#allocation2 + $0xf0] sm:$0xff] %vm1028, %v3807
      %3825 = vst.msk [vmem:[#allocation2 + $0xf8] sm:$0xff] %vm1028, %v3809
      %3826 = vrot.lane.b32.xlu0 %v3119, 52
      %v3827 = vpop.permute.xlu0 %3826
      %3828 = vrot.lane.b32.xlu0 %v3122, 52
      %v3829 = vpop.permute.xlu0 %3828
      %3830 = vrot.lane.b32.xlu0 %v3125, 52
      %v3831 = vpop.permute.xlu0 %3830
      %3832 = vrot.lane.b32.xlu0 %v3128, 52
      %v3833 = vpop.permute.xlu0 %3832
      %3834 = vrot.lane.b32.xlu0 %v3131, 52
      %v3835 = vpop.permute.xlu0 %3834
      %3836 = vrot.lane.b32.xlu0 %v3134, 52
      %v3837 = vpop.permute.xlu0 %3836
      %3838 = vrot.lane.b32.xlu0 %v3137, 52
      %v3839 = vpop.permute.xlu0 %3838
      %3840 = vrot.lane.b32.xlu0 %v3262, 52
      %v3841 = vpop.permute.xlu0 %3840
      %3850 = vst.msk [vmem:[#allocation2 + $0xc0] sm:$0xff] %vm1065, %v3827
      %3851 = vst.msk [vmem:[#allocation2 + $0xc8] sm:$0xff] %vm1065, %v3829
      %3852 = vst.msk [vmem:[#allocation2 + $0xd0] sm:$0xff] %vm1065, %v3831
      %3853 = vst.msk [vmem:[#allocation2 + $0xd8] sm:$0xff] %vm1065, %v3833
      %3854 = vst.msk [vmem:[#allocation2 + $0xe0] sm:$0xff] %vm1065, %v3835
      %3855 = vst.msk [vmem:[#allocation2 + $0xe8] sm:$0xff] %vm1065, %v3837
      %3856 = vst.msk [vmem:[#allocation2 + $0xf0] sm:$0xff] %vm1065, %v3839
      %3857 = vst.msk [vmem:[#allocation2 + $0xf8] sm:$0xff] %vm1065, %v3841
      %3858 = vrot.lane.b32.xlu0 %v3175, 56
      %v3859 = vpop.permute.xlu0 %3858
      %3860 = vrot.lane.b32.xlu0 %v3178, 56
      %v3861 = vpop.permute.xlu0 %3860
      %3862 = vrot.lane.b32.xlu0 %v3181, 56
      %v3863 = vpop.permute.xlu0 %3862
      %3864 = vrot.lane.b32.xlu0 %v3184, 56
      %v3865 = vpop.permute.xlu0 %3864
      %3866 = vrot.lane.b32.xlu0 %v3187, 56
      %v3867 = vpop.permute.xlu0 %3866
      %3868 = vrot.lane.b32.xlu0 %v3190, 56
      %v3869 = vpop.permute.xlu0 %3868
      %3870 = vrot.lane.b32.xlu0 %v3193, 56
      %v3871 = vpop.permute.xlu0 %3870
      %3872 = vrot.lane.b32.xlu0 %v3297, 56
      %v3873 = vpop.permute.xlu0 %3872
      %3882 = vst.msk [vmem:[#allocation2 + $0xc0] sm:$0xff] %vm1101, %v3859
      %3883 = vst.msk [vmem:[#allocation2 + $0xc8] sm:$0xff] %vm1101, %v3861
      %3884 = vst.msk [vmem:[#allocation2 + $0xd0] sm:$0xff] %vm1101, %v3863
      %3885 = vst.msk [vmem:[#allocation2 + $0xd8] sm:$0xff] %vm1101, %v3865
      %3886 = vst.msk [vmem:[#allocation2 + $0xe0] sm:$0xff] %vm1101, %v3867
      %3887 = vst.msk [vmem:[#allocation2 + $0xe8] sm:$0xff] %vm1101, %v3869
      %3888 = vst.msk [vmem:[#allocation2 + $0xf0] sm:$0xff] %vm1101, %v3871
      %3889 = vst.msk [vmem:[#allocation2 + $0xf8] sm:$0xff] %vm1101, %v3873
      %3890 = vrot.lane.b32.xlu0 %v448, 60
      %v3891 = vpop.permute.xlu0 %3890
      %3892 = vrot.lane.b32.xlu0 %v450, 60
      %v3893 = vpop.permute.xlu0 %3892
      %3894 = vrot.lane.b32.xlu0 %v452, 60
      %v3895 = vpop.permute.xlu0 %3894
      %3896 = vrot.lane.b32.xlu0 %v454, 60
      %v3897 = vpop.permute.xlu0 %3896
      %3898 = vrot.lane.b32.xlu0 %v456, 60
      %v3899 = vpop.permute.xlu0 %3898
      %3900 = vrot.lane.b32.xlu0 %v458, 60
      %v3901 = vpop.permute.xlu0 %3900
      %3902 = vrot.lane.b32.xlu0 %v460, 60
      %v3903 = vpop.permute.xlu0 %3902
      %3904 = vrot.lane.b32.xlu0 %v462, 60
      %v3905 = vpop.permute.xlu0 %3904
      %3914 = vst.msk [vmem:[#allocation2 + $0xc0] sm:$0xff] %vm1135, %v3891
      %3915 = vst.msk [vmem:[#allocation2 + $0xc8] sm:$0xff] %vm1135, %v3893
      %3916 = vst.msk [vmem:[#allocation2 + $0xd0] sm:$0xff] %vm1135, %v3895
      %3917 = vst.msk [vmem:[#allocation2 + $0xd8] sm:$0xff] %vm1135, %v3897
      %3918 = vst.msk [vmem:[#allocation2 + $0xe0] sm:$0xff] %vm1135, %v3899
      %3919 = vst.msk [vmem:[#allocation2 + $0xe8] sm:$0xff] %vm1135, %v3901
      %3920 = vst.msk [vmem:[#allocation2 + $0xf0] sm:$0xff] %vm1135, %v3903
      %3921 = vst.msk [vmem:[#allocation2 + $0xf8] sm:$0xff] %vm1135, %v3905
      %3922 = vrot.lane.b32.xlu0 %v3122, 64
      %v3923 = vpop.permute.xlu0 %3922
      %3924 = vrot.lane.b32.xlu0 %v3125, 64
      %v3925 = vpop.permute.xlu0 %3924
      %3926 = vrot.lane.b32.xlu0 %v3128, 64
      %v3927 = vpop.permute.xlu0 %3926
      %3928 = vrot.lane.b32.xlu0 %v3131, 64
      %v3929 = vpop.permute.xlu0 %3928
      %3930 = vrot.lane.b32.xlu0 %v3134, 64
      %v3931 = vpop.permute.xlu0 %3930
      %3932 = vrot.lane.b32.xlu0 %v3137, 64
      %v3933 = vpop.permute.xlu0 %3932
      %3934 = vrot.lane.b32.xlu0 %v3262, 64
      %v3935 = vpop.permute.xlu0 %3934
      %3936 = vrot.lane.b32.xlu0 %v3366, 64
      %v3937 = vpop.permute.xlu0 %3936
      %3946 = vst.msk [vmem:[#allocation2 + $0xc0] sm:$0xff] %vm1172, %v3923
      %3947 = vst.msk [vmem:[#allocation2 + $0xc8] sm:$0xff] %vm1172, %v3925
      %3948 = vst.msk [vmem:[#allocation2 + $0xd0] sm:$0xff] %vm1172, %v3927
      %3949 = vst.msk [vmem:[#allocation2 + $0xd8] sm:$0xff] %vm1172, %v3929
      %3950 = vst.msk [vmem:[#allocation2 + $0xe0] sm:$0xff] %vm1172, %v3931
      %3951 = vst.msk [vmem:[#allocation2 + $0xe8] sm:$0xff] %vm1172, %v3933
      %3952 = vst.msk [vmem:[#allocation2 + $0xf0] sm:$0xff] %vm1172, %v3935
      %3953 = vst.msk [vmem:[#allocation2 + $0xf8] sm:$0xff] %vm1172, %v3937
      %3954 = vrot.lane.b32.xlu0 %v3178, 68
      %v3955 = vpop.permute.xlu0 %3954
      %3956 = vrot.lane.b32.xlu0 %v3181, 68
      %v3957 = vpop.permute.xlu0 %3956
      %3958 = vrot.lane.b32.xlu0 %v3184, 68
      %v3959 = vpop.permute.xlu0 %3958
      %3960 = vrot.lane.b32.xlu0 %v3187, 68
      %v3961 = vpop.permute.xlu0 %3960
      %3962 = vrot.lane.b32.xlu0 %v3190, 68
      %v3963 = vpop.permute.xlu0 %3962
      %3964 = vrot.lane.b32.xlu0 %v3193, 68
      %v3965 = vpop.permute.xlu0 %3964
      %3966 = vrot.lane.b32.xlu0 %v3297, 68
      %v3967 = vpop.permute.xlu0 %3966
      %3968 = vrot.lane.b32.xlu0 %v3401, 68
      %v3969 = vpop.permute.xlu0 %3968
      %3978 = vst.msk [vmem:[#allocation2 + $0xc0] sm:$0xff] %vm1208, %v3955
      %3979 = vst.msk [vmem:[#allocation2 + $0xc8] sm:$0xff] %vm1208, %v3957
      %3980 = vst.msk [vmem:[#allocation2 + $0xd0] sm:$0xff] %vm1208, %v3959
      %3981 = vst.msk [vmem:[#allocation2 + $0xd8] sm:$0xff] %vm1208, %v3961
      %3982 = vst.msk [vmem:[#allocation2 + $0xe0] sm:$0xff] %vm1208, %v3963
      %3983 = vst.msk [vmem:[#allocation2 + $0xe8] sm:$0xff] %vm1208, %v3965
      %3984 = vst.msk [vmem:[#allocation2 + $0xf0] sm:$0xff] %vm1208, %v3967
      %3985 = vst.msk [vmem:[#allocation2 + $0xf8] sm:$0xff] %vm1208, %v3969
      %3994 = vrot.lane.b32.xlu0 %v465, 72
      %v3995 = vpop.permute.xlu0 %3994
      %3996 = vrot.lane.b32.xlu0 %v467, 72
      %v3997 = vpop.permute.xlu0 %3996
      %3998 = vrot.lane.b32.xlu0 %v469, 72
      %v3999 = vpop.permute.xlu0 %3998
      %4000 = vrot.lane.b32.xlu0 %v471, 72
      %v4001 = vpop.permute.xlu0 %4000
      %4002 = vrot.lane.b32.xlu0 %v473, 72
      %v4003 = vpop.permute.xlu0 %4002
      %4004 = vrot.lane.b32.xlu0 %v475, 72
      %v4005 = vpop.permute.xlu0 %4004
      %4006 = vrot.lane.b32.xlu0 %v477, 72
      %v4007 = vpop.permute.xlu0 %4006
      %4008 = vrot.lane.b32.xlu0 %v479, 72
      %v4009 = vpop.permute.xlu0 %4008
      %4018 = vst.msk [vmem:[#allocation2 + $0xc0] sm:$0xff] %vm1249, %v3995
      %4019 = vst.msk [vmem:[#allocation2 + $0xc8] sm:$0xff] %vm1249, %v3997
      %4020 = vst.msk [vmem:[#allocation2 + $0xd0] sm:$0xff] %vm1249, %v3999
      %4021 = vst.msk [vmem:[#allocation2 + $0xd8] sm:$0xff] %vm1249, %v4001
      %4022 = vst.msk [vmem:[#allocation2 + $0xe0] sm:$0xff] %vm1249, %v4003
      %4023 = vst.msk [vmem:[#allocation2 + $0xe8] sm:$0xff] %vm1249, %v4005
      %4024 = vst.msk [vmem:[#allocation2 + $0xf0] sm:$0xff] %vm1249, %v4007
      %4025 = vst.msk [vmem:[#allocation2 + $0xf8] sm:$0xff] %vm1249, %v4009
      %v4034 = vrot.slane %v465, 1
      %v4035 = vrot.slane %v466, 1
      %v4036 = vsel %vm510, %v4034, %v4035
      %v4037 = vrot.slane %v467, 1
      %v4038 = vrot.slane %v468, 1
      %v4039 = vsel %vm510, %v4037, %v4038
      %v4040 = vrot.slane %v469, 1
      %v4041 = vrot.slane %v470, 1
      %v4042 = vsel %vm510, %v4040, %v4041
      %v4043 = vrot.slane %v471, 1
      %v4044 = vrot.slane %v472, 1
      %v4045 = vsel %vm510, %v4043, %v4044
      %v4046 = vrot.slane %v473, 1
      %v4047 = vrot.slane %v474, 1
      %v4048 = vsel %vm510, %v4046, %v4047
      %v4049 = vrot.slane %v475, 1
      %v4050 = vrot.slane %v476, 1
      %v4051 = vsel %vm510, %v4049, %v4050
      %v4052 = vrot.slane %v477, 1
      %v4053 = vrot.slane %v478, 1
      %v4054 = vsel %vm510, %v4052, %v4053
      %v4055 = vrot.slane %v479, 1
      %v4056 = vrot.slane %v480, 1
      %v4057 = vsel %vm510, %v4055, %v4056
      %4058 = vrot.lane.b32.xlu0 %v4036, 76
      %v4059 = vpop.permute.xlu0 %4058
      %4060 = vrot.lane.b32.xlu0 %v4039, 76
      %v4061 = vpop.permute.xlu0 %4060
      %4062 = vrot.lane.b32.xlu0 %v4042, 76
      %v4063 = vpop.permute.xlu0 %4062
      %4064 = vrot.lane.b32.xlu0 %v4045, 76
      %v4065 = vpop.permute.xlu0 %4064
      %4066 = vrot.lane.b32.xlu0 %v4048, 76
      %v4067 = vpop.permute.xlu0 %4066
      %4068 = vrot.lane.b32.xlu0 %v4051, 76
      %v4069 = vpop.permute.xlu0 %4068
      %4070 = vrot.lane.b32.xlu0 %v4054, 76
      %v4071 = vpop.permute.xlu0 %4070
      %4072 = vrot.lane.b32.xlu0 %v4057, 76
      %v4073 = vpop.permute.xlu0 %4072
      %4082 = vst.msk [vmem:[#allocation2 + $0xc0] sm:$0xff] %vm1314, %v4059
      %4083 = vst.msk [vmem:[#allocation2 + $0xc8] sm:$0xff] %vm1314, %v4061
      %4084 = vst.msk [vmem:[#allocation2 + $0xd0] sm:$0xff] %vm1314, %v4063
      %4085 = vst.msk [vmem:[#allocation2 + $0xd8] sm:$0xff] %vm1314, %v4065
      %4086 = vst.msk [vmem:[#allocation2 + $0xe0] sm:$0xff] %vm1314, %v4067
      %4087 = vst.msk [vmem:[#allocation2 + $0xe8] sm:$0xff] %vm1314, %v4069
      %4088 = vst.msk [vmem:[#allocation2 + $0xf0] sm:$0xff] %vm1314, %v4071
      %4089 = vst.msk [vmem:[#allocation2 + $0xf8] sm:$0xff] %vm1314, %v4073
      %v4090 = vrot.slane %v465, 2
      %v4091 = vrot.slane %v466, 2
      %v4092 = vsel %vm568, %v4090, %v4091
      %v4093 = vrot.slane %v467, 2
      %v4094 = vrot.slane %v468, 2
      %v4095 = vsel %vm568, %v4093, %v4094
      %v4096 = vrot.slane %v469, 2
      %v4097 = vrot.slane %v470, 2
      %v4098 = vsel %vm568, %v4096, %v4097
      %v4099 = vrot.slane %v471, 2
      %v4100 = vrot.slane %v472, 2
      %v4101 = vsel %vm568, %v4099, %v4100
      %v4102 = vrot.slane %v473, 2
      %v4103 = vrot.slane %v474, 2
      %v4104 = vsel %vm568, %v4102, %v4103
      %v4105 = vrot.slane %v475, 2
      %v4106 = vrot.slane %v476, 2
      %v4107 = vsel %vm568, %v4105, %v4106
      %v4108 = vrot.slane %v477, 2
      %v4109 = vrot.slane %v478, 2
      %v4110 = vsel %vm568, %v4108, %v4109
      %v4111 = vrot.slane %v479, 2
      %v4112 = vrot.slane %v480, 2
      %v4113 = vsel %vm568, %v4111, %v4112
      %4114 = vrot.lane.b32.xlu0 %v4092, 80
      %v4115 = vpop.permute.xlu0 %4114
      %4116 = vrot.lane.b32.xlu0 %v4095, 80
      %v4117 = vpop.permute.xlu0 %4116
      %4118 = vrot.lane.b32.xlu0 %v4098, 80
      %v4119 = vpop.permute.xlu0 %4118
      %4120 = vrot.lane.b32.xlu0 %v4101, 80
      %v4121 = vpop.permute.xlu0 %4120
      %4122 = vrot.lane.b32.xlu0 %v4104, 80
      %v4123 = vpop.permute.xlu0 %4122
      %4124 = vrot.lane.b32.xlu0 %v4107, 80
      %v4125 = vpop.permute.xlu0 %4124
      %4126 = vrot.lane.b32.xlu0 %v4110, 80
      %v4127 = vpop.permute.xlu0 %4126
      %4128 = vrot.lane.b32.xlu0 %v4113, 80
      %v4129 = vpop.permute.xlu0 %4128
      %4138 = vst.msk [vmem:[#allocation2 + $0xc0] sm:$0xff] %vm1371, %v4115
      %4139 = vst.msk [vmem:[#allocation2 + $0xc8] sm:$0xff] %vm1371, %v4117
      %4140 = vst.msk [vmem:[#allocation2 + $0xd0] sm:$0xff] %vm1371, %v4119
      %4141 = vst.msk [vmem:[#allocation2 + $0xd8] sm:$0xff] %vm1371, %v4121
      %4142 = vst.msk [vmem:[#allocation2 + $0xe0] sm:$0xff] %vm1371, %v4123
      %4143 = vst.msk [vmem:[#allocation2 + $0xe8] sm:$0xff] %vm1371, %v4125
      %4144 = vst.msk [vmem:[#allocation2 + $0xf0] sm:$0xff] %vm1371, %v4127
      %4145 = vst.msk [vmem:[#allocation2 + $0xf8] sm:$0xff] %vm1371, %v4129
      %4147 = vrot.lane.b32.xlu0 %v467, 84
      %v4148 = vpop.permute.xlu0 %4147
      %4149 = vrot.lane.b32.xlu0 %v469, 84
      %v4150 = vpop.permute.xlu0 %4149
      %4151 = vrot.lane.b32.xlu0 %v471, 84
      %v4152 = vpop.permute.xlu0 %4151
      %4153 = vrot.lane.b32.xlu0 %v473, 84
      %v4154 = vpop.permute.xlu0 %4153
      %4155 = vrot.lane.b32.xlu0 %v475, 84
      %v4156 = vpop.permute.xlu0 %4155
      %4157 = vrot.lane.b32.xlu0 %v477, 84
      %v4158 = vpop.permute.xlu0 %4157
      %4159 = vrot.lane.b32.xlu0 %v479, 84
      %v4160 = vpop.permute.xlu0 %4159
      %4161 = vrot.lane.b32.xlu0 %v481, 84
      %v4162 = vpop.permute.xlu0 %4161
      %4171 = vst.msk [vmem:[#allocation2 + $0xc0] sm:$0xff] %vm1405, %v4148
      %4172 = vst.msk [vmem:[#allocation2 + $0xc8] sm:$0xff] %vm1405, %v4150
      %4173 = vst.msk [vmem:[#allocation2 + $0xd0] sm:$0xff] %vm1405, %v4152
      %4174 = vst.msk [vmem:[#allocation2 + $0xd8] sm:$0xff] %vm1405, %v4154
      %4175 = vst.msk [vmem:[#allocation2 + $0xe0] sm:$0xff] %vm1405, %v4156
      %4176 = vst.msk [vmem:[#allocation2 + $0xe8] sm:$0xff] %vm1405, %v4158
      %4177 = vst.msk [vmem:[#allocation2 + $0xf0] sm:$0xff] %vm1405, %v4160
      %4178 = vst.msk [vmem:[#allocation2 + $0xf8] sm:$0xff] %vm1405, %v4162
      %v4180 = vrot.slane %v481, 1
      %v4181 = vrot.slane %v482, 1
      %v4182 = vsel %vm510, %v4180, %v4181
      %4183 = vrot.lane.b32.xlu0 %v4039, 88
      %v4184 = vpop.permute.xlu0 %4183
      %4185 = vrot.lane.b32.xlu0 %v4042, 88
      %v4186 = vpop.permute.xlu0 %4185
      %4187 = vrot.lane.b32.xlu0 %v4045, 88
      %v4188 = vpop.permute.xlu0 %4187
      %4189 = vrot.lane.b32.xlu0 %v4048, 88
      %v4190 = vpop.permute.xlu0 %4189
      %4191 = vrot.lane.b32.xlu0 %v4051, 88
      %v4192 = vpop.permute.xlu0 %4191
      %4193 = vrot.lane.b32.xlu0 %v4054, 88
      %v4194 = vpop.permute.xlu0 %4193
      %4195 = vrot.lane.b32.xlu0 %v4057, 88
      %v4196 = vpop.permute.xlu0 %4195
      %4197 = vrot.lane.b32.xlu0 %v4182, 88
      %v4198 = vpop.permute.xlu0 %4197
      %4207 = vst.msk [vmem:[#allocation2 + $0xc0] sm:$0xff] %vm1442, %v4184
      %4208 = vst.msk [vmem:[#allocation2 + $0xc8] sm:$0xff] %vm1442, %v4186
      %4209 = vst.msk [vmem:[#allocation2 + $0xd0] sm:$0xff] %vm1442, %v4188
      %4210 = vst.msk [vmem:[#allocation2 + $0xd8] sm:$0xff] %vm1442, %v4190
      %4211 = vst.msk [vmem:[#allocation2 + $0xe0] sm:$0xff] %vm1442, %v4192
      %4212 = vst.msk [vmem:[#allocation2 + $0xe8] sm:$0xff] %vm1442, %v4194
      %4213 = vst.msk [vmem:[#allocation2 + $0xf0] sm:$0xff] %vm1442, %v4196
      %4214 = vst.msk [vmem:[#allocation2 + $0xf8] sm:$0xff] %vm1442, %v4198
      %v4215 = vrot.slane %v481, 2
      %v4216 = vrot.slane %v482, 2
      %v4217 = vsel %vm568, %v4215, %v4216
      %4218 = vrot.lane.b32.xlu0 %v4095, 92
      %v4219 = vpop.permute.xlu0 %4218
      %4220 = vrot.lane.b32.xlu0 %v4098, 92
      %v4221 = vpop.permute.xlu0 %4220
      %4222 = vrot.lane.b32.xlu0 %v4101, 92
      %v4223 = vpop.permute.xlu0 %4222
      %4224 = vrot.lane.b32.xlu0 %v4104, 92
      %v4225 = vpop.permute.xlu0 %4224
      %4226 = vrot.lane.b32.xlu0 %v4107, 92
      %v4227 = vpop.permute.xlu0 %4226
      %4228 = vrot.lane.b32.xlu0 %v4110, 92
      %v4229 = vpop.permute.xlu0 %4228
      %4230 = vrot.lane.b32.xlu0 %v4113, 92
      %v4231 = vpop.permute.xlu0 %4230
      %4232 = vrot.lane.b32.xlu0 %v4217, 92
      %v4233 = vpop.permute.xlu0 %4232
      %4242 = vst.msk [vmem:[#allocation2 + $0xc0] sm:$0xff] %vm1478, %v4219
      %4243 = vst.msk [vmem:[#allocation2 + $0xc8] sm:$0xff] %vm1478, %v4221
      %4244 = vst.msk [vmem:[#allocation2 + $0xd0] sm:$0xff] %vm1478, %v4223
      %4245 = vst.msk [vmem:[#allocation2 + $0xd8] sm:$0xff] %vm1478, %v4225
      %4246 = vst.msk [vmem:[#allocation2 + $0xe0] sm:$0xff] %vm1478, %v4227
      %4247 = vst.msk [vmem:[#allocation2 + $0xe8] sm:$0xff] %vm1478, %v4229
      %4248 = vst.msk [vmem:[#allocation2 + $0xf0] sm:$0xff] %vm1478, %v4231
      %4249 = vst.msk [vmem:[#allocation2 + $0xf8] sm:$0xff] %vm1478, %v4233
      %4251 = vrot.lane.b32.xlu0 %v469, 96
      %v4252 = vpop.permute.xlu0 %4251
      %4253 = vrot.lane.b32.xlu0 %v471, 96
      %v4254 = vpop.permute.xlu0 %4253
      %4255 = vrot.lane.b32.xlu0 %v473, 96
      %v4256 = vpop.permute.xlu0 %4255
      %4257 = vrot.lane.b32.xlu0 %v475, 96
      %v4258 = vpop.permute.xlu0 %4257
      %4259 = vrot.lane.b32.xlu0 %v477, 96
      %v4260 = vpop.permute.xlu0 %4259
      %4261 = vrot.lane.b32.xlu0 %v479, 96
      %v4262 = vpop.permute.xlu0 %4261
      %4263 = vrot.lane.b32.xlu0 %v481, 96
      %v4264 = vpop.permute.xlu0 %4263
      %4265 = vrot.lane.b32.xlu0 %v483, 96
      %v4266 = vpop.permute.xlu0 %4265
      %4275 = vst.msk [vmem:[#allocation2 + $0xc0] sm:$0xff] %vm1512, %v4252
      %4276 = vst.msk [vmem:[#allocation2 + $0xc8] sm:$0xff] %vm1512, %v4254
      %4277 = vst.msk [vmem:[#allocation2 + $0xd0] sm:$0xff] %vm1512, %v4256
      %4278 = vst.msk [vmem:[#allocation2 + $0xd8] sm:$0xff] %vm1512, %v4258
      %4279 = vst.msk [vmem:[#allocation2 + $0xe0] sm:$0xff] %vm1512, %v4260
      %4280 = vst.msk [vmem:[#allocation2 + $0xe8] sm:$0xff] %vm1512, %v4262
      %4281 = vst.msk [vmem:[#allocation2 + $0xf0] sm:$0xff] %vm1512, %v4264
      %4282 = vst.msk [vmem:[#allocation2 + $0xf8] sm:$0xff] %vm1512, %v4266
      %v4284 = vrot.slane %v483, 1
      %v4285 = vrot.slane %v484, 1
      %v4286 = vsel %vm510, %v4284, %v4285
      %4287 = vrot.lane.b32.xlu0 %v4042, 100
      %v4288 = vpop.permute.xlu0 %4287
      %4289 = vrot.lane.b32.xlu0 %v4045, 100
      %v4290 = vpop.permute.xlu0 %4289
      %4291 = vrot.lane.b32.xlu0 %v4048, 100
      %v4292 = vpop.permute.xlu0 %4291
      %4293 = vrot.lane.b32.xlu0 %v4051, 100
      %v4294 = vpop.permute.xlu0 %4293
      %4295 = vrot.lane.b32.xlu0 %v4054, 100
      %v4296 = vpop.permute.xlu0 %4295
      %4297 = vrot.lane.b32.xlu0 %v4057, 100
      %v4298 = vpop.permute.xlu0 %4297
      %4299 = vrot.lane.b32.xlu0 %v4182, 100
      %v4300 = vpop.permute.xlu0 %4299
      %4301 = vrot.lane.b32.xlu0 %v4286, 100
      %v4302 = vpop.permute.xlu0 %4301
      %4311 = vst.msk [vmem:[#allocation2 + $0xc0] sm:$0xff] %vm1549, %v4288
      %4312 = vst.msk [vmem:[#allocation2 + $0xc8] sm:$0xff] %vm1549, %v4290
      %4313 = vst.msk [vmem:[#allocation2 + $0xd0] sm:$0xff] %vm1549, %v4292
      %4314 = vst.msk [vmem:[#allocation2 + $0xd8] sm:$0xff] %vm1549, %v4294
      %4315 = vst.msk [vmem:[#allocation2 + $0xe0] sm:$0xff] %vm1549, %v4296
      %4316 = vst.msk [vmem:[#allocation2 + $0xe8] sm:$0xff] %vm1549, %v4298
      %4317 = vst.msk [vmem:[#allocation2 + $0xf0] sm:$0xff] %vm1549, %v4300
      %4318 = vst.msk [vmem:[#allocation2 + $0xf8] sm:$0xff] %vm1549, %v4302
      %v4319 = vrot.slane %v483, 2
      %v4320 = vrot.slane %v484, 2
      %v4321 = vsel %vm568, %v4319, %v4320
      %4322 = vrot.lane.b32.xlu0 %v4098, 104
      %v4323 = vpop.permute.xlu0 %4322
      %4324 = vrot.lane.b32.xlu0 %v4101, 104
      %v4325 = vpop.permute.xlu0 %4324
      %4326 = vrot.lane.b32.xlu0 %v4104, 104
      %v4327 = vpop.permute.xlu0 %4326
      %4328 = vrot.lane.b32.xlu0 %v4107, 104
      %v4329 = vpop.permute.xlu0 %4328
      %4330 = vrot.lane.b32.xlu0 %v4110, 104
      %v4331 = vpop.permute.xlu0 %4330
      %4332 = vrot.lane.b32.xlu0 %v4113, 104
      %v4333 = vpop.permute.xlu0 %4332
      %4334 = vrot.lane.b32.xlu0 %v4217, 104
      %v4335 = vpop.permute.xlu0 %4334
      %4336 = vrot.lane.b32.xlu0 %v4321, 104
      %v4337 = vpop.permute.xlu0 %4336
      %4346 = vst.msk [vmem:[#allocation2 + $0xc0] sm:$0xff] %vm1585, %v4323
      %4347 = vst.msk [vmem:[#allocation2 + $0xc8] sm:$0xff] %vm1585, %v4325
      %4348 = vst.msk [vmem:[#allocation2 + $0xd0] sm:$0xff] %vm1585, %v4327
      %4349 = vst.msk [vmem:[#allocation2 + $0xd8] sm:$0xff] %vm1585, %v4329
      %4350 = vst.msk [vmem:[#allocation2 + $0xe0] sm:$0xff] %vm1585, %v4331
      %4351 = vst.msk [vmem:[#allocation2 + $0xe8] sm:$0xff] %vm1585, %v4333
      %4352 = vst.msk [vmem:[#allocation2 + $0xf0] sm:$0xff] %vm1585, %v4335
      %4353 = vst.msk [vmem:[#allocation2 + $0xf8] sm:$0xff] %vm1585, %v4337
      %v4354 = vld [vmem:[#allocation2] sm:$0xff]
      %v4355 = vld [vmem:[#allocation2 + $0x8] sm:$0xff]
      %v4356 = vld [vmem:[#allocation2 + $0x10] sm:$0xff]
      %v4357 = vld [vmem:[#allocation2 + $0x18] sm:$0xff]
      %v4358 = vld [vmem:[#allocation2 + $0x20] sm:$0xff]
      %v4359 = vld [vmem:[#allocation2 + $0x28] sm:$0xff]
      %v4360 = vld [vmem:[#allocation2 + $0x30] sm:$0xff]
      %v4361 = vld [vmem:[#allocation2 + $0x38] sm:$0xff]
      %v4362 = vld [vmem:[#allocation2 + $0x40] sm:$0xff]
      %v4363 = vld [vmem:[#allocation2 + $0x48] sm:$0xff]
      %v4364 = vld [vmem:[#allocation2 + $0x50] sm:$0xff]
      %v4365 = vld [vmem:[#allocation2 + $0x58] sm:$0xff]
      %v4366 = vld [vmem:[#allocation2 + $0x60] sm:$0xff]
      %v4367 = vld [vmem:[#allocation2 + $0x68] sm:$0xff]
      %v4368 = vld [vmem:[#allocation2 + $0x70] sm:$0xff]
      %v4369 = vld [vmem:[#allocation2 + $0x78] sm:$0xff]
      %v4370 = vld [vmem:[#allocation2 + $0x80] sm:$0xff]
      %v4371 = vld [vmem:[#allocation2 + $0x88] sm:$0xff]
      %v4372 = vld [vmem:[#allocation2 + $0x90] sm:$0xff]
      %v4373 = vld [vmem:[#allocation2 + $0x98] sm:$0xff]
      %v4374 = vld [vmem:[#allocation2 + $0xa0] sm:$0xff]
      %v4375 = vld [vmem:[#allocation2 + $0xa8] sm:$0xff]
      %v4376 = vld [vmem:[#allocation2 + $0xb0] sm:$0xff]
      %v4377 = vld [vmem:[#allocation2 + $0xb8] sm:$0xff]
      %v4378 = vld [vmem:[#allocation2 + $0xc0] sm:$0xff]
      %v4379 = vld [vmem:[#allocation2 + $0xc8] sm:$0xff]
      %v4380 = vld [vmem:[#allocation2 + $0xd0] sm:$0xff]
      %v4381 = vld [vmem:[#allocation2 + $0xd8] sm:$0xff]
      %v4382 = vld [vmem:[#allocation2 + $0xe0] sm:$0xff]
      %v4383 = vld [vmem:[#allocation2 + $0xe8] sm:$0xff]
      %v4384 = vld [vmem:[#allocation2 + $0xf0] sm:$0xff]
      %v4385 = vld [vmem:[#allocation2 + $0xf8] sm:$0xff]
      %v4386 = vld [vmem:[%s3] sm:$0xff]
      %v4387 = vld [vmem:[%s3 + $0x8] sm:$0xff]
      %v4388 = vld [vmem:[%s3 + $0x10] sm:$0xff]
      %v4389 = vld [vmem:[%s3 + $0x18] sm:$0xff]
      %v4390 = vld [vmem:[%s3 + $0x20] sm:$0xff]
      %v4391 = vld [vmem:[%s3 + $0x28] sm:$0xff]
      %v4392 = vld [vmem:[%s3 + $0x30] sm:$0xff]
      %v4393 = vld [vmem:[%s3 + $0x38] sm:$0xff]
      %v4394 = vld [vmem:[%s3 + $0x40] sm:$0xff]
      %v4395 = vld [vmem:[%s3 + $0x48] sm:$0xff]
      %v4396 = vld [vmem:[%s3 + $0x50] sm:$0xff]
      %v4397 = vld [vmem:[%s3 + $0x58] sm:$0xff]
      %v4398 = vld [vmem:[%s3 + $0x60] sm:$0xff]
      %v4399 = vld [vmem:[%s3 + $0x68] sm:$0xf]
      %v4400 = vld [vmem:[%s4] sm:$0x1]
      %v4402 = vlaneseq
      %v4403 = vshrl.u32 %v4402, 7
      %v4404 = vsub.s32 0, %v4403
      %v4405 = vrot.slane %v4400, %v4404
      %vm4407 = vcmask 883712
      %v4409 = vsel %vm4407, %v4354, 0
      %v4412 = vsel %vm4407, %v4355, 0
      %v4415 = vsel %vm4407, %v4356, 0
      %v4418 = vsel %vm4407, %v4357, 0
      %v4421 = vsel %vm4407, %v4358, 0
      %v4424 = vsel %vm4407, %v4359, 0
      %v4427 = vsel %vm4407, %v4360, 0
      %v4430 = vsel %vm4407, %v4361, 0
      %v4433 = vsel %vm4407, %v4362, 0
      %v4436 = vsel %vm4407, %v4363, 0
      %v4439 = vsel %vm4407, %v4364, 0
      %v4442 = vsel %vm4407, %v4365, 0
      %v4445 = vsel %vm4407, %v4366, 0
      %v4448 = vsel %vm4407, %v4367, 0
      %v4451 = vsel %vm4407, %v4368, 0
      %v4454 = vsel %vm4407, %v4369, 0
      %v4457 = vsel %vm4407, %v4370, 0
      %v4460 = vsel %vm4407, %v4371, 0
      %v4463 = vsel %vm4407, %v4372, 0
      %v4466 = vsel %vm4407, %v4373, 0
      %v4469 = vsel %vm4407, %v4374, 0
      %v4472 = vsel %vm4407, %v4375, 0
      %v4475 = vsel %vm4407, %v4376, 0
      %v4478 = vsel %vm4407, %v4377, 0
      %v4481 = vsel %vm4407, %v4378, 0
      %v4484 = vsel %vm4407, %v4379, 0
      %v4487 = vsel %vm4407, %v4380, 0
      %v4490 = vsel %vm4407, %v4381, 0
      %v4493 = vsel %vm4407, %v4382, 0
      %v4496 = vsel %vm4407, %v4383, 0
      %v4499 = vsel %vm4407, %v4384, 0
      %v4502 = vsel %vm4407, %v4385, 0
      %vm4504 = vcmask 1043456
      %v4506 = vsel %vm4504, %v4399, 0
      %4508 = vmatprep.subr.mxu0 0.0
      %4509 = vmatpush1.msra.mxu0 %v4386
      %4510 = vmatprep.subr.mxu0 0.0
      %4511 = vmatpush1.msra.mxu0 %v4387
      %4512 = vmatprep.subr.mxu0 0.0
      %4513 = vmatpush1.msra.mxu0 %v4388
      %4514 = vmatprep.subr.mxu0 0.0
      %4515 = vmatpush1.msra.mxu0 %v4389
      %4516 = vmatprep.subr.mxu0 0.0
      %4517 = vmatpush1.msra.mxu0 %v4390
      %4518 = vmatprep.subr.mxu0 0.0
      %4519 = vmatpush1.msra.mxu0 %v4391
      %4520 = vmatprep.subr.mxu0 0.0
      %4521 = vmatpush1.msra.mxu0 %v4392
      %4522 = vmatprep.subr.mxu0 0.0
      %4523 = vmatpush1.msra.mxu0 %v4393
      %4524 = vmatprep.subr.mxu0 0.0
      %4525 = vmatpush1.msra.mxu0 %v4394
      %4526 = vmatprep.subr.mxu0 0.0
      %4527 = vmatpush1.msra.mxu0 %v4395
      %4528 = vmatprep.subr.mxu0 0.0
      %4529 = vmatpush1.msra.mxu0 %v4396
      %4530 = vmatprep.subr.mxu0 0.0
      %4531 = vmatpush1.msra.mxu0 %v4397
      %4532 = vmatprep.subr.mxu0 0.0
      %4533 = vmatpush1.msra.mxu0 %v4398
      %4534 = vmatprep.subr.mxu0 0.0
      %4535 = vmatpush1.msra.mxu0 %v4506
      %4536 = vmatprep.subr.mxu0 0.0
      %4537 = vmatpush1.msra.mxu0 0.0
      %4538 = vmatprep.subr.mxu0 0.0
      %4539 = vmatpush1.msra.mxu0 0.0
      %4540 = vmatprep.subr.mxu0 0.0
      %4541 = vmatpush1.msra.mxu0 0.0
      %4542 = vmatprep.subr.mxu0 0.0
      %4543 = vmatpush1.msra.mxu0 0.0
      %4544 = vmatprep.subr.mxu0 0.0
      %4545 = vmatpush1.msra.mxu0 0.0
      %4546 = vmatprep.subr.mxu0 0.0
      %4547 = vmatpush1.msra.mxu0 0.0
      %4548 = vmatprep.subr.mxu0 0.0
      %4549 = vmatpush1.msra.mxu0 0.0
      %4550 = vmatprep.subr.mxu0 0.0
      %4551 = vmatpush1.msra.mxu0 0.0
      %4552 = vmatprep.subr.mxu0 0.0
      %4553 = vmatpush1.msra.mxu0 0.0
      %4554 = vmatprep.subr.mxu0 0.0
      %4555 = vmatpush1.msra.mxu0 0.0
      %4556 = vmatprep.subr.mxu0 0.0
      %4557 = vmatpush1.msra.mxu0 0.0
      %4558 = vmatprep.subr.mxu0 0.0
      %4559 = vmatpush1.msra.mxu0 0.0
      %4560 = vmatprep.subr.mxu0 0.0
      %4561 = vmatpush1.msra.mxu0 0.0
      %4562 = vmatprep.subr.mxu0 0.0
      %4563 = vmatpush1.msra.mxu0 0.0
      %4564 = vmatprep.subr.mxu0 0.0
      %4565 = vmatpush1.msra.mxu0 0.0
      %4566 = vmatprep.subr.mxu0 0.0
      %4567 = vmatpush1.msra.mxu0 0.0
      %4568 = vmatprep.subr.mxu0 0.0
      %4569 = vmatpush1.msra.mxu0 0.0
      %4570 = vmatprep.subr.mxu0 0.0
      %4571 = vmatpush1.msra.mxu0 0.0
      %4572 = vmatprep.mubr.f32.mxu0 0.0
      %4573 = vmatmul.mubr.f32.gmra.mrb[0].mxu0 %v4409
      %v4574 = vpop.f32.mrb[0].mxu0
      %v4575 = vadd.f32 %v4405, %v4574
      %v4576 = vpop.f32.mrb[0].mxu0
      %4577 = vmatprep.mubr.f32.mxu0 0.0
      %4578 = vmatmul.mubr.f32.gmra.mrb[0].mxu0 %v4412
      %v4579 = vpop.f32.mrb[0].mxu0
      %v4580 = vadd.f32 %v4405, %v4579
      %v4581 = vpop.f32.mrb[0].mxu0
      %4582 = vmatprep.mubr.f32.mxu0 0.0
      %4583 = vmatmul.mubr.f32.gmra.mrb[0].mxu0 %v4415
      %v4584 = vpop.f32.mrb[0].mxu0
      %v4585 = vadd.f32 %v4405, %v4584
      %v4586 = vpop.f32.mrb[0].mxu0
      %4587 = vmatprep.mubr.f32.mxu0 0.0
      %4588 = vmatmul.mubr.f32.gmra.mrb[0].mxu0 %v4418
      %v4589 = vpop.f32.mrb[0].mxu0
      %v4590 = vadd.f32 %v4405, %v4589
      %v4591 = vpop.f32.mrb[0].mxu0
      %4592 = vmatprep.mubr.f32.mxu0 0.0
      %4593 = vmatmul.mubr.f32.gmra.mrb[0].mxu0 %v4421
      %v4594 = vpop.f32.mrb[0].mxu0
      %v4595 = vadd.f32 %v4405, %v4594
      %v4596 = vpop.f32.mrb[0].mxu0
      %4597 = vmatprep.mubr.f32.mxu0 0.0
      %4598 = vmatmul.mubr.f32.gmra.mrb[0].mxu0 %v4424
      %v4599 = vpop.f32.mrb[0].mxu0
      %v4600 = vadd.f32 %v4405, %v4599
      %v4601 = vpop.f32.mrb[0].mxu0
      %4602 = vmatprep.mubr.f32.mxu0 0.0
      %4603 = vmatmul.mubr.f32.gmra.mrb[0].mxu0 %v4427
      %v4604 = vpop.f32.mrb[0].mxu0
      %v4605 = vadd.f32 %v4405, %v4604
      %v4606 = vpop.f32.mrb[0].mxu0
      %4607 = vmatprep.mubr.f32.mxu0 0.0
      %4608 = vmatmul.mubr.f32.gmra.mrb[0].mxu0 %v4430
      %v4609 = vpop.f32.mrb[0].mxu0
      %v4610 = vadd.f32 %v4405, %v4609
      %v4611 = vpop.f32.mrb[0].mxu0
      %4612 = vmatprep.mubr.f32.mxu0 0.0
      %4613 = vmatmul.mubr.f32.gmra.mrb[0].mxu0 %v4433
      %v4614 = vpop.f32.mrb[0].mxu0
      %v4615 = vadd.f32 %v4405, %v4614
      %v4616 = vpop.f32.mrb[0].mxu0
      %4617 = vmatprep.mubr.f32.mxu0 0.0
      %4618 = vmatmul.mubr.f32.gmra.mrb[0].mxu0 %v4436
      %v4619 = vpop.f32.mrb[0].mxu0
      %v4620 = vadd.f32 %v4405, %v4619
      %v4621 = vpop.f32.mrb[0].mxu0
      %4622 = vmatprep.mubr.f32.mxu0 0.0
      %4623 = vmatmul.mubr.f32.gmra.mrb[0].mxu0 %v4439
      %v4624 = vpop.f32.mrb[0].mxu0
      %v4625 = vadd.f32 %v4405, %v4624
      %v4626 = vpop.f32.mrb[0].mxu0
      %4627 = vmatprep.mubr.f32.mxu0 0.0
      %4628 = vmatmul.mubr.f32.gmra.mrb[0].mxu0 %v4442
      %v4629 = vpop.f32.mrb[0].mxu0
      %v4630 = vadd.f32 %v4405, %v4629
      %v4631 = vpop.f32.mrb[0].mxu0
      %4632 = vmatprep.mubr.f32.mxu0 0.0
      %4633 = vmatmul.mubr.f32.gmra.mrb[0].mxu0 %v4445
      %v4634 = vpop.f32.mrb[0].mxu0
      %v4635 = vadd.f32 %v4405, %v4634
      %v4636 = vpop.f32.mrb[0].mxu0
      %4637 = vmatprep.mubr.f32.mxu0 0.0
      %4638 = vmatmul.mubr.f32.gmra.mrb[0].mxu0 %v4448
      %v4639 = vpop.f32.mrb[0].mxu0
      %v4640 = vadd.f32 %v4405, %v4639
      %v4641 = vpop.f32.mrb[0].mxu0
      %4642 = vmatprep.mubr.f32.mxu0 0.0
      %4643 = vmatmul.mubr.f32.gmra.mrb[0].mxu0 %v4451
      %v4644 = vpop.f32.mrb[0].mxu0
      %v4645 = vadd.f32 %v4405, %v4644
      %v4646 = vpop.f32.mrb[0].mxu0
      %4647 = vmatprep.mubr.f32.mxu0 0.0
      %4648 = vmatmul.mubr.f32.gmra.mrb[0].mxu0 %v4454
      %v4649 = vpop.f32.mrb[0].mxu0
      %v4650 = vadd.f32 %v4405, %v4649
      %v4651 = vpop.f32.mrb[0].mxu0
      %4652 = vmatprep.mubr.f32.mxu0 0.0
      %4653 = vmatmul.mubr.f32.gmra.mrb[0].mxu0 %v4457
      %v4654 = vpop.f32.mrb[0].mxu0
      %v4655 = vadd.f32 %v4405, %v4654
      %v4656 = vpop.f32.mrb[0].mxu0
      %4657 = vmatprep.mubr.f32.mxu0 0.0
      %4658 = vmatmul.mubr.f32.gmra.mrb[0].mxu0 %v4460
      %v4659 = vpop.f32.mrb[0].mxu0
      %v4660 = vadd.f32 %v4405, %v4659
      %v4661 = vpop.f32.mrb[0].mxu0
      %4662 = vmatprep.mubr.f32.mxu0 0.0
      %4663 = vmatmul.mubr.f32.gmra.mrb[0].mxu0 %v4463
      %v4664 = vpop.f32.mrb[0].mxu0
      %v4665 = vadd.f32 %v4405, %v4664
      %v4666 = vpop.f32.mrb[0].mxu0
      %4667 = vmatprep.mubr.f32.mxu0 0.0
      %4668 = vmatmul.mubr.f32.gmra.mrb[0].mxu0 %v4466
      %v4669 = vpop.f32.mrb[0].mxu0
      %v4670 = vadd.f32 %v4405, %v4669
      %v4671 = vpop.f32.mrb[0].mxu0
      %4672 = vmatprep.mubr.f32.mxu0 0.0
      %4673 = vmatmul.mubr.f32.gmra.mrb[0].mxu0 %v4469
      %v4674 = vpop.f32.mrb[0].mxu0
      %v4675 = vadd.f32 %v4405, %v4674
      %v4676 = vpop.f32.mrb[0].mxu0
      %4677 = vmatprep.mubr.f32.mxu0 0.0
      %4678 = vmatmul.mubr.f32.gmra.mrb[0].mxu0 %v4472
      %v4679 = vpop.f32.mrb[0].mxu0
      %v4680 = vadd.f32 %v4405, %v4679
      %v4681 = vpop.f32.mrb[0].mxu0
      %4682 = vmatprep.mubr.f32.mxu0 0.0
      %4683 = vmatmul.mubr.f32.gmra.mrb[0].mxu0 %v4475
      %v4684 = vpop.f32.mrb[0].mxu0
      %v4685 = vadd.f32 %v4405, %v4684
      %v4686 = vpop.f32.mrb[0].mxu0
      %4687 = vmatprep.mubr.f32.mxu0 0.0
      %4688 = vmatmul.mubr.f32.gmra.mrb[0].mxu0 %v4478
      %v4689 = vpop.f32.mrb[0].mxu0
      %v4690 = vadd.f32 %v4405, %v4689
      %v4691 = vpop.f32.mrb[0].mxu0
      %4692 = vmatprep.mubr.f32.mxu0 0.0
      %4693 = vmatmul.mubr.f32.gmra.mrb[0].mxu0 %v4481
      %v4694 = vpop.f32.mrb[0].mxu0
      %v4695 = vadd.f32 %v4405, %v4694
      %v4696 = vpop.f32.mrb[0].mxu0
      %4697 = vmatprep.mubr.f32.mxu0 0.0
      %4698 = vmatmul.mubr.f32.gmra.mrb[0].mxu0 %v4484
      %v4699 = vpop.f32.mrb[0].mxu0
      %v4700 = vadd.f32 %v4405, %v4699
      %v4701 = vpop.f32.mrb[0].mxu0
      %4702 = vmatprep.mubr.f32.mxu0 0.0
      %4703 = vmatmul.mubr.f32.gmra.mrb[0].mxu0 %v4487
      %v4704 = vpop.f32.mrb[0].mxu0
      %v4705 = vadd.f32 %v4405, %v4704
      %v4706 = vpop.f32.mrb[0].mxu0
      %4707 = vmatprep.mubr.f32.mxu0 0.0
      %4708 = vmatmul.mubr.f32.gmra.mrb[0].mxu0 %v4490
      %v4709 = vpop.f32.mrb[0].mxu0
      %v4710 = vadd.f32 %v4405, %v4709
      %v4711 = vpop.f32.mrb[0].mxu0
      %4712 = vmatprep.mubr.f32.mxu0 0.0
      %4713 = vmatmul.mubr.f32.gmra.mrb[0].mxu0 %v4493
      %v4714 = vpop.f32.mrb[0].mxu0
      %v4715 = vadd.f32 %v4405, %v4714
      %v4716 = vpop.f32.mrb[0].mxu0
      %4717 = vmatprep.mubr.f32.mxu0 0.0
      %4718 = vmatmul.mubr.f32.gmra.mrb[0].mxu0 %v4496
      %v4719 = vpop.f32.mrb[0].mxu0
      %v4720 = vadd.f32 %v4405, %v4719
      %v4721 = vpop.f32.mrb[0].mxu0
      %4722 = vmatprep.mubr.f32.mxu0 0.0
      %4723 = vmatmul.mubr.f32.gmra.mrb[0].mxu0 %v4499
      %v4724 = vpop.f32.mrb[0].mxu0
      %v4725 = vadd.f32 %v4405, %v4724
      %v4726 = vpop.f32.mrb[0].mxu0
      %4727 = vmatprep.mubr.f32.mxu0 0.0
      %4728 = vmatmul.mubr.f32.gmra.mrb[0].mxu0 %v4502
      %v4729 = vpop.f32.mrb[0].mxu0
      %v4730 = vadd.f32 %v4405, %v4729
      %v4731 = vpop.f32.mrb[0].mxu0
      %4732 = vdwg.mxu0
      %vm4733 = vcmask 523264
      %4734 = vst.msk [vmem:[%s359] sm:$0xff] %vm4733, %v4575
      %4735 = vst.msk [vmem:[%s359 + $0x8] sm:$0xff] %vm4733, %v4580
      %4736 = vst.msk [vmem:[%s359 + $0x10] sm:$0xff] %vm4733, %v4585
      %4737 = vst.msk [vmem:[%s359 + $0x18] sm:$0xff] %vm4733, %v4590
      %4738 = vst.msk [vmem:[%s359 + $0x20] sm:$0xff] %vm4733, %v4595
      %4739 = vst.msk [vmem:[%s359 + $0x28] sm:$0xff] %vm4733, %v4600
      %4740 = vst.msk [vmem:[%s359 + $0x30] sm:$0xff] %vm4733, %v4605
      %4741 = vst.msk [vmem:[%s359 + $0x38] sm:$0xff] %vm4733, %v4610
      %s4742 = scalar_lea.vmem %s359, 64
      %4743 = vst.msk [vmem:[%s4742] sm:$0xff] %vm4733, %v4615
      %4744 = vst.msk [vmem:[%s4742 + $0x8] sm:$0xff] %vm4733, %v4620
      %4745 = vst.msk [vmem:[%s4742 + $0x10] sm:$0xff] %vm4733, %v4625
      %4746 = vst.msk [vmem:[%s4742 + $0x18] sm:$0xff] %vm4733, %v4630
      %4747 = vst.msk [vmem:[%s4742 + $0x20] sm:$0xff] %vm4733, %v4635
      %4748 = vst.msk [vmem:[%s4742 + $0x28] sm:$0xff] %vm4733, %v4640
      %4749 = vst.msk [vmem:[%s4742 + $0x30] sm:$0xff] %vm4733, %v4645
      %4750 = vst.msk [vmem:[%s4742 + $0x38] sm:$0xff] %vm4733, %v4650
      %s4751 = scalar_lea.vmem %s359, 128
      %4752 = vst.msk [vmem:[%s4751] sm:$0xff] %vm4733, %v4655
      %4753 = vst.msk [vmem:[%s4751 + $0x8] sm:$0xff] %vm4733, %v4660
      %4754 = vst.msk [vmem:[%s4751 + $0x10] sm:$0xff] %vm4733, %v4665
      %4755 = vst.msk [vmem:[%s4751 + $0x18] sm:$0xff] %vm4733, %v4670
      %4756 = vst.msk [vmem:[%s4751 + $0x20] sm:$0xff] %vm4733, %v4675
      %4757 = vst.msk [vmem:[%s4751 + $0x28] sm:$0xff] %vm4733, %v4680
      %4758 = vst.msk [vmem:[%s4751 + $0x30] sm:$0xff] %vm4733, %v4685
      %4759 = vst.msk [vmem:[%s4751 + $0x38] sm:$0xff] %vm4733, %v4690
      %s4760 = scalar_lea.vmem %s359, 192
      %4761 = vst.msk [vmem:[%s4760] sm:$0xff] %vm4733, %v4695
      %4762 = vst.msk [vmem:[%s4760 + $0x8] sm:$0xff] %vm4733, %v4700
      %4763 = vst.msk [vmem:[%s4760 + $0x10] sm:$0xff] %vm4733, %v4705
      %4764 = vst.msk [vmem:[%s4760 + $0x18] sm:$0xff] %vm4733, %v4710
      %4765 = vst.msk [vmem:[%s4760 + $0x20] sm:$0xff] %vm4733, %v4715
      %4766 = vst.msk [vmem:[%s4760 + $0x28] sm:$0xff] %vm4733, %v4720
      %4767 = vst.msk [vmem:[%s4760 + $0x30] sm:$0xff] %vm4733, %v4725
      %4768 = vst.msk [vmem:[%s4760 + $0x38] sm:$0xff] %vm4733, %v4730
      %s4769 = smul.u32 4, %s21
      %p4770 = scmp.lt.s32.totalorder %s20, 1
      %s4771 = scalar_select %p4770, %s20, 1
      %p4772 = scmp.lt.s32.totalorder %s4769, 7
      %s4773 = scalar_select %p4772, %s4769, 7
      %s4774 = smul.addr %s4773, 8
      %s4775 = smul.addr %s4771, 64
      %s4776 = sadd.s32 %s4774, %s4775
      %s4777 = smul.addr %s4776, 8
      %s4778 = scalar_lea.vmem %s5, %s4777
      // Predicated region
      $region41: #{upsample_forward.1} parent=39 // pred_check
        %p4779 = pneg %p178
      $region42: #{upsample_forward.1} parent=39 // pred_check_branch
        %4781 = sbr.rel (%p4779) target = $region44
      $region43: #{upsample_forward.1} parent=39 // pred_region
        %s4782 = smul.u32 4, %s21
      $region44: #{upsample_forward.1} parent=39 // pred_fallthru
        _
    $region40: #{upsample_forward.1} parent=5 // pred_fallthru
      _
    %p4783 = scmp.le.s32.totalorder 2, %s11
    // Predicated region
    $region45: #{upsample_forward.1} parent=5 // pred_check
      %p4784 = pneg %p4783
    $region46: #{upsample_forward.1} parent=5 // pred_check_branch
      %4786 = sbr.rel (%p4784) target = $region48
    $region47: #{upsample_forward.1} parent=5 // pred_region
      %s4787 = ssub.s32 %s11, 2
      // Predicated region
      $region49: #{upsample_forward.1} parent=47 // pred_check
        %p4788 = pneg %p184
      $region50: #{upsample_forward.1} parent=47 // pred_check_branch
        %4790 = sbr.rel (%p4788) target = $region52
      $region51: #{upsample_forward.1} parent=47 // pred_region
        %s4791 = smul.u32 4, %s23
        %p4792 = scmp.lt.s32.totalorder %s22, 1
        %s4793 = scalar_select %p4792, %s22, 1
        %p4794 = scmp.lt.s32.totalorder %s4791, 7
        %s4795 = scalar_select %p4794, %s4791, 7
        %s4796 = smul.addr %s4795, 8
        %s4797 = smul.addr %s4793, 64
        %s4798 = sadd.s32 %s4796, %s4797
        %s4799 = smul.addr %s4798, 8
        %s4800 = scalar_lea.vmem %s5, %s4799
      $region52: #{upsample_forward.1} parent=47 // pred_fallthru
        _
    $region48: #{upsample_forward.1} parent=5 // pred_fallthru
      _
  $region6: #{upsample_forward.1} parent=0 // loop_footer
    %s15 = sadd.s32 1, %s11
  $region7: #{upsample_forward.1} parent=0 // loop_footer_branch
    %10 = sbr.rel target = $region3
  $region8: #{upsample_forward.1} parent=0 // loop_exit
    _

</llo_original>
